<compile_context>
chip_gen: v5e
topology: v5e:2x2
jax: 0.10.0
libtpu: 0.0.40
codegen_flags: <defaults>
</compile_context>

<pallas_src>
import functools

import jax
import jax.numpy as jnp
from jax.experimental import pallas as pl
from jax.experimental.pallas import tpu as pltpu

# ---------------- small synthetic "EVABig" config ----------------
NUM_MELS = 16
UP_INIT_CH = 32
UP_RATES = (2, 2)          # total hop = 4
UP_KERNELS = (4, 4)        # kernel = 2 * rate
RES_KERNELS = (3, 5)
RES_DILATIONS = (1, 3)
LRELU_SLOPE = 0.1

MATMUL_DTYPE = jnp.bfloat16   # MXU operand dtype (accumulation stays f32)
ACT_DTYPE = jnp.bfloat16      # inter-stage activation storage dtype


# ---------------- in-kernel helpers ----------------
def _lrelu(x):
    return jnp.where(x > 0, x, LRELU_SLOPE * x)


def _pad_time(x, left, right):
    """Zero-pad a (C, T) value along the time (lane) axis, in VMEM."""
    c = x.shape[0]
    parts = []
    if left:
        parts.append(jnp.zeros((c, left), x.dtype))
    parts.append(x)
    if right:
        parts.append(jnp.zeros((c, right), x.dtype))
    if len(parts) == 1:
        return x
    return jnp.concatenate(parts, axis=1)


def _im2col(xp, offsets, tout):
    """Stack time-shifted slices along the channel axis -> (n_taps*Cin, tout)."""
    cols = [xp[:, o:o + tout] for o in offsets]
    col = cols[0] if len(cols) == 1 else jnp.concatenate(cols, axis=0)
    return col.astype(MATMUL_DTYPE)


def _conv1d(x, w_ref, b_ref, *, k, dilation, padding):
    """Stride-1 conv as one MXU matmul.

    x: (Cin, T) f32 value; w_ref: (Cout, K*Cin) bf16; b_ref: (Cout, 1) f32.
    """
    t = x.shape[1]
    tout = t + 2 * padding - dilation * (k - 1)
    xp = _pad_time(x, padding, padding)
    xcol = _im2col(xp, [i * dilation for i in range(k)], tout)
    acc = jnp.dot(w_ref[...], xcol, preferred_element_type=jnp.float32)
    return acc + b_ref[...]


def _convT_phases(x, w_refs, b_ref, *, phase_meta, lp, rp, qs):
    """Polyphase ConvTranspose1d: one matmul per output phase, no zero-insert.

    x is already pre-activated; zeros stay zero under leaky_relu, so padding
    after the activation is exact.
    """
    xp = _pad_time(x, lp, rp)
    outs = []
    for w_ref, (m_taps, off), q in zip(w_refs, phase_meta, qs):
        xcol = _im2col(xp, [m + off + lp for m in range(m_taps)], q)
        outs.append(jnp.dot(w_ref[...], xcol,
                            preferred_element_type=jnp.float32) + b_ref[...])
    return outs


def _resblocks(x, rb_refs):
    """HiFi-GAN resblock group: xt += conv(lrelu(xt)) per dilation, sum / nk."""
    xs = None
    for j, ks in enumerate(RES_KERNELS):
        xt = x
        for d_idx, dil in enumerate(RES_DILATIONS):
            w_ref, b_ref = rb_refs[j][d_idx]
            pad = (ks * dil - dil) // 2
            xt = xt + _conv1d(_lrelu(xt), w_ref, b_ref,
                              k=ks, dilation=dil, padding=pad)
        xs = xt if xs is None else xs + xt
    return xs * (1.0 / len(RES_KERNELS))


# ---------------- fused stage kernels ----------------
def _stage_pre_kernel(c_ref, wpre, bpre, wu0, wu1, bu, o0_ref, o1_ref, *,
                      up_meta):
    # conv_pre + first upsample (polyphase), one batch element per grid step.
    x = _conv1d(c_ref[...].astype(jnp.float32), wpre, bpre,
                k=7, dilation=1, padding=3)
    y0, y1 = _convT_phases(_lrelu(x), (wu0, wu1), bu, **up_meta)
    o0_ref[...] = y0.astype(o0_ref.dtype)
    o1_ref[...] = y1.astype(o1_ref.dtype)


def _stage_mid_kernel(x_ref, w00, b00, w01, b01, w10, b10, w11, b11,
                      wu0, wu1, bu, o0_ref, o1_ref, *, up_meta):
    # resblocks of stage 0 + second upsample (polyphase).
    rb = (((w00, b00), (w01, b01)), ((w10, b10), (w11, b11)))
    x = _resblocks(x_ref[...].astype(jnp.float32), rb)
    y0, y1 = _convT_phases(_lrelu(x), (wu0, wu1), bu, **up_meta)
    o0_ref[...] = y0.astype(o0_ref.dtype)
    o1_ref[...] = y1.astype(o1_ref.dtype)


def _stage_post_kernel(x_ref, w00, b00, w01, b01, w10, b10, w11, b11,
                       wpost, bpost, o_ref):
    # resblocks of stage 1 + conv_post + tanh.
    rb = (((w00, b00), (w01, b01)), ((w10, b10), (w11, b11)))
    x = _resblocks(x_ref[...].astype(jnp.float32), rb)
    y = _conv1d(_lrelu(x), wpost, bpost, k=7, dilation=1, padding=3)
    o_ref[...] = jnp.tanh(y).astype(o_ref.dtype)


# ---------------- pallas_call wrapper ----------------
def _stage_call(kernel, x, weights, out_shapes):
    bsz = x.shape[0]

    def act_spec(shape):
        # squeeze the leading batch dim; (C, T) tile = full last-two dims.
        return pl.BlockSpec((None,) + tuple(shape[1:]), lambda b: (b, 0, 0))

    in_specs = [act_spec(x.shape)]
    for w in weights:
        assert w.ndim == 2
        in_specs.append(pl.BlockSpec(w.shape, lambda b: (0, 0)))

    out_specs = tuple(act_spec(s.shape) for s in out_shapes)
    return pl.pallas_call(
        kernel,
        grid=(bsz,),
        in_specs=in_specs,
        out_specs=out_specs,
        out_shape=tuple(out_shapes),
        compiler_params=pltpu.CompilerParams(
            dimension_semantics=("parallel",)),
    )(x, *weights)


# ---------------- weight packing (hoisted to init) ----------------
def _pack_conv_w(w):
    # (Cout, Cin, K) -> (Cout, K*Cin), matching tap-major im2col rows.
    cout, cin, k = w.shape
    return jnp.transpose(w, (0, 2, 1)).reshape(cout, k * cin).astype(MATMUL_DTYPE)


def _pack_bias(b):
    return b.reshape(-1, 1).astype(jnp.float32)


def _convT_phase_meta(k, s, p):
    """Static polyphase metadata: per phase (first tap k0, #taps, input offset)."""
    pad_eq = k - 1 - p
    meta = []
    for rho in range(s):
        k0 = (pad_eq - rho) % s
        m_taps = -(-(k - k0) // s)            # ceil((k - k0) / s)
        off = (rho + k0 - pad_eq) // s        # exact integer by construction
        meta.append((k0, m_taps, off))
    return meta


def _pack_convT_w(w, s, p):
    """PyTorch ConvTranspose1d weight (Cin, Cout, K) -> per-phase (Cout, M*Cin)."""
    cin, cout, k = w.shape
    wf = jnp.transpose(w[:, :, ::-1], (1, 0, 2))    # (Cout, Cin, K), flipped taps
    packed = []
    for (k0, m_taps, _off) in _convT_phase_meta(k, s, p):
        sub = wf[:, :, k0::s][:, :, :m_taps]        # (Cout, Cin, M)
        packed.append(jnp.transpose(sub, (0, 2, 1))
                      .reshape(cout, m_taps * cin).astype(MATMUL_DTYPE))
    return packed


def _convT_runtime_meta(t_in, k, s, p):
    """Shape-dependent polyphase metadata (phase lengths, halo pads)."""
    lout = (t_in - 1) * s - 2 * p + k
    full_meta = _convT_phase_meta(k, s, p)
    phase_meta = tuple((m, off) for (_k0, m, off) in full_meta)
    qs = tuple(-(-(lout - rho) // s) for rho in range(s))
    lp = max(0, -min(off for _m, off in phase_meta))
    rp = 0
    for (m_taps, off), q in zip(phase_meta, qs):
        rp = max(rp, (q - 1) + (m_taps - 1) + off - (t_in - 1))
    rp = max(rp, 0)
    return dict(phase_meta=phase_meta, lp=lp, rp=rp, qs=qs), lout, qs


def _interleave_phases(phases):
    """XLA-level interleave: s arrays (B, C, Q) -> (B, C, s*Q)."""
    stacked = jnp.stack(phases, axis=-1)            # (B, C, Q, s)
    b, c, q, s = stacked.shape
    return stacked.reshape(b, c, q * s)


# ---------------- deterministic parameter init ----------------
def init_raw_params(key):
    keys = list(jax.random.split(key, 128))
    kit = iter(keys)

    def mk(shape, scale=0.1):
        return (jax.random.normal(next(kit), shape) * scale).astype(jnp.float32)

    params = {}
    params["conv_pre"] = {"w": mk((UP_INIT_CH, NUM_MELS, 7)),
                          "b": mk((UP_INIT_CH,), 0.01)}
    ups, resblocks = [], []
    ch = UP_INIT_CH
    for i, (r, ku) in enumerate(zip(UP_RATES, UP_KERNELS)):
        cout = UP_INIT_CH // (2 ** (i + 1))
        # PyTorch ConvTranspose1d weight layout: (Cin, Cout, K)
        ups.append({"w": mk((ch, cout, ku)), "b": mk((cout,), 0.01)})
        ch = cout
        stage_blocks = []
        for ks in RES_KERNELS:
            convs = [{"w": mk((ch, ch, ks)), "b": mk((ch,), 0.01)}
                     for _ in RES_DILATIONS]
            stage_blocks.append(convs)
        resblocks.append(stage_blocks)
    params["ups"] = ups
    params["resblocks"] = resblocks
    params["conv_post"] = {"w": mk((1, ch, 7)), "b": mk((1,), 0.01)}
    return params


def pack_params(raw):
    """Hoist all layout transforms / flips / casts out of the forward pass."""
    packed = {"conv_pre": {"w": _pack_conv_w(raw["conv_pre"]["w"]),
                           "b": _pack_bias(raw["conv_pre"]["b"])}}
    ups = []
    for i, (r, ku) in enumerate(zip(UP_RATES, UP_KERNELS)):
        p = (ku - r) // 2
        ups.append({"ws": _pack_convT_w(raw["ups"][i]["w"], r, p),
                    "b": _pack_bias(raw["ups"][i]["b"])})
    packed["ups"] = ups
    rbs = []
    for i in range(len(UP_RATES)):
        stage = []
        for j in range(len(RES_KERNELS)):
            convs = [{"w": _pack_conv_w(raw["resblocks"][i][j][d]["w"]),
                      "b": _pack_bias(raw["resblocks"][i][j][d]["b"])}
                     for d in range(len(RES_DILATIONS))]
            stage.append(convs)
        rbs.append(stage)
    packed["resblocks"] = rbs
    packed["conv_post"] = {"w": _pack_conv_w(raw["conv_post"]["w"]),
                           "b": _pack_bias(raw["conv_post"]["b"])}
    return packed


# ---------------- generator forward (EVABig stand-in) ----------------
def evagan_big_forward(mel, packed):
    """EVAGANBig.forward:  c = mel.transpose(1, 2); audio = model(c)."""
    assert len(UP_RATES) == 2 and all(r == 2 for r in UP_RATES)
    c = jnp.swapaxes(mel, 1, 2)                 # (B, T, n_mels) -> (B, n_mels, T)
    bsz, _n_mels, t0 = c.shape

    # --- stage A: conv_pre + upsample 0 (polyphase) --------------------------
    p0 = (UP_KERNELS[0] - UP_RATES[0]) // 2
    meta0, lout0, qs0 = _convT_runtime_meta(t0, UP_KERNELS[0], UP_RATES[0], p0)
    assert len(set(qs0)) == 1
    up0 = packed["ups"][0]
    ch0 = up0["b"].shape[0]
    w_pre = [packed["conv_pre"]["w"], packed["conv_pre"]["b"],
             up0["ws"][0], up0["ws"][1], up0["b"]]
    out_sh0 = tuple(jax.ShapeDtypeStruct((bsz, ch0, q), ACT_DTYPE) for q in qs0)
    phases0 = _stage_call(functools.partial(_stage_pre_kernel, up_meta=meta0),
                          c, w_pre, out_sh0)
    x = _interleave_phases(list(phases0))       # (B, ch0, lout0)

    # --- stage B: resblocks(stage 0) + upsample 1 (polyphase) ----------------
    p1 = (UP_KERNELS[1] - UP_RATES[1]) // 2
    meta1, lout1, qs1 = _convT_runtime_meta(lout0, UP_KERNELS[1], UP_RATES[1], p1)
    assert len(set(qs1)) == 1
    up1 = packed["ups"][1]
    ch1 = up1["b"].shape[0]
    rb0 = packed["resblocks"][0]
    w_mid = [rb0[0][0]["w"], rb0[0][0]["b"], rb0[0][1]["w"], rb0[0][1]["b"],
             rb0[1][0]["w"], rb0[1][0]["b"], rb0[1][1]["w"], rb0[1][1]["b"],
             up1["ws"][0], up1["ws"][1], up1["b"]]
    out_sh1 = tuple(jax.ShapeDtypeStruct((bsz, ch1, q), ACT_DTYPE) for q in qs1)
    phases1 = _stage_call(functools.partial(_stage_mid_kernel, up_meta=meta1),
                          x, w_mid, out_sh1)
    x = _interleave_phases(list(phases1))       # (B, ch1, lout1)

    # --- stage C: resblocks(stage 1) + conv_post + tanh ----------------------
    rb1 = packed["resblocks"][1]
    w_post = [rb1[0][0]["w"], rb1[0][0]["b"], rb1[0][1]["w"], rb1[0][1]["b"],
              rb1[1][0]["w"], rb1[1][0]["b"], rb1[1][1]["w"], rb1[1][1]["b"],
              packed["conv_post"]["w"], packed["conv_post"]["b"]]
    out_sh2 = (jax.ShapeDtypeStruct((bsz, 1, lout1), jnp.float32),)
    audio = _stage_call(_stage_post_kernel, x, w_post, out_sh2)[0]
    return audio  # (B, 1, T * prod(UP_RATES))


# ---------------- pure-XLA f32 reference (for a numerical self-check) --------
def _ref_forward(mel, raw):
    def conv(x, w, b, dilation=1, padding=0):
        y = jax.lax.conv_general_dilated(
            x, w, window_strides=(1,), padding=[(padding, padding)],
            rhs_dilation=(dilation,), dimension_numbers=("NCH", "OIH", "NCH"))
        return y + b[None, :, None]

    def convT(x, w, b, stride, padding):
        k = w.shape[2]
        w_eq = jnp.transpose(w[:, :, ::-1], (1, 0, 2))
        y = jax.lax.conv_general_dilated(
            x, w_eq, window_strides=(1,),
            padding=[(k - 1 - padding, k - 1 - padding)],
            lhs_dilation=(stride,), dimension_numbers=("NCH", "OIH", "NCH"))
        return y + b[None, :, None]

    def lrelu(x):
        return jnp.where(x > 0, x, LRELU_SLOPE * x)

    c = jnp.swapaxes(mel, 1, 2)
    x = conv(c, raw["conv_pre"]["w"], raw["conv_pre"]["b"], padding=3)
    for i, (r, ku) in enumerate(zip(UP_RATES, UP_KERNELS)):
        up = raw["ups"][i]
        x = convT(lrelu(x), up["w"], up["b"], stride=r, padding=(ku - r) // 2)
        xs = None
        for j, ks in enumerate(RES_KERNELS):
            xt = x
            for d_idx, dil in enumerate(RES_DILATIONS):
                cv = raw["resblocks"][i][j][d_idx]
                pad = (ks * dil - dil) // 2
                xt = xt + conv(lrelu(xt), cv["w"], cv["b"],
                               dilation=dil, padding=pad)
            xs = xt if xs is None else xs + xt
        x = xs / len(RES_KERNELS)
    return jnp.tanh(conv(lrelu(x), raw["conv_post"]["w"],
                         raw["conv_post"]["b"], padding=3))


if __name__ == "__main__":
    key = jax.random.PRNGKey(0)
    kp, kx = jax.random.split(key)
    raw_params = init_raw_params(kp)
    packed_params = pack_params(raw_params)

    # mel input in the wrapper's convention: (batch, frames, num_mels)
    mel = jax.random.normal(kx, (2, 8, NUM_MELS), dtype=jnp.float32)

    fwd = jax.jit(evagan_big_forward)
    audio = jax.block_until_ready(fwd(mel, packed_params))

    expected_t = mel.shape[1]
    for r in UP_RATES:
        expected_t *= r
    assert audio.shape == (2, 1, expected_t), audio.shape
    assert bool(jnp.all(jnp.isfinite(audio)))

    # Numerical self-check vs. pure-XLA f32 reference (Pallas path uses bf16
    # MXU operands, so tolerance is loose but catches any indexing bug).
    ref = _ref_forward(mel, raw_params)
    assert ref.shape == audio.shape
    max_err = float(jnp.max(jnp.abs(audio.astype(jnp.float32) - ref)))
    assert max_err < 1e-1, max_err

    print("KERNEL_OK")
</pallas_src>

<mosaic_0001>
module attributes {stable_mosaic.version = 11 : i64} {
  func.func @_stage_pre_kernel(%arg0: i32, %arg1: memref<1x16x8xf32, #tpu.memory_space<vmem>>, %arg2: memref<32x112xbf16, #tpu.memory_space<vmem>>, %arg3: memref<32x1xf32, #tpu.memory_space<vmem>>, %arg4: memref<16x64xbf16, #tpu.memory_space<vmem>>, %arg5: memref<16x64xbf16, #tpu.memory_space<vmem>>, %arg6: memref<16x1xf32, #tpu.memory_space<vmem>>, %arg7: memref<1x16x8xbf16, #tpu.memory_space<vmem>>, %arg8: memref<1x16x8xbf16, #tpu.memory_space<vmem>>) attributes {dimension_semantics = [#tpu.dimension_semantics<parallel>], iteration_bounds = array<i64: 2>, scalar_prefetch = 0 : i64, scratch_operands = 0 : i64, tpu.core_type = #tpu.core_type<tc>, window_params = [{transform_indices = @transform_0, window_bounds = array<i64: 1, 16, 8>}, {pipeline_mode = #tpu.pipeline_mode<synchronous>, transform_indices = @transform_1, window_bounds = array<i64: 32, 112>}, {pipeline_mode = #tpu.pipeline_mode<synchronous>, transform_indices = @transform_2, window_bounds = array<i64: 32, 1>}, {pipeline_mode = #tpu.pipeline_mode<synchronous>, transform_indices = @transform_3, window_bounds = array<i64: 16, 64>}, {pipeline_mode = #tpu.pipeline_mode<synchronous>, transform_indices = @transform_4, window_bounds = array<i64: 16, 64>}, {pipeline_mode = #tpu.pipeline_mode<synchronous>, transform_indices = @transform_5, window_bounds = array<i64: 16, 1>}, {transform_indices = @transform_6, window_bounds = array<i64: 1, 16, 8>}, {transform_indices = @transform_7, window_bounds = array<i64: 1, 16, 8>}]} {
    %c0 = arith.constant 0 : index
    %c0_0 = arith.constant 0 : index
    %c0_1 = arith.constant 0 : index
    %0 = vector.load %arg1[%c0, %c0_0, %c0_1] : memref<1x16x8xf32, #tpu.memory_space<vmem>>, vector<1x16x8xf32>
    %1 = vector.shape_cast %0 : vector<1x16x8xf32> to vector<16x8xf32>
    %cst = arith.constant 0.000000e+00 : f32
    %2 = vector.broadcast %cst : f32 to vector<16x3xf32>
    %cst_2 = arith.constant 0.000000e+00 : f32
    %3 = vector.broadcast %cst_2 : f32 to vector<16x3xf32>
    %4 = tpu.concatenate %2, %1, %3 in 1 : vector<16x3xf32>, vector<16x8xf32>, vector<16x3xf32> -> vector<16x14xf32>
    %5 = vector.extract_strided_slice %4 {offsets = [0, 0], sizes = [16, 8], strides = [1, 1]} : vector<16x14xf32> to vector<16x8xf32>
    %6 = vector.extract_strided_slice %4 {offsets = [0, 1], sizes = [16, 8], strides = [1, 1]} : vector<16x14xf32> to vector<16x8xf32>
    %7 = vector.extract_strided_slice %4 {offsets = [0, 2], sizes = [16, 8], strides = [1, 1]} : vector<16x14xf32> to vector<16x8xf32>
    %8 = vector.extract_strided_slice %4 {offsets = [0, 3], sizes = [16, 8], strides = [1, 1]} : vector<16x14xf32> to vector<16x8xf32>
    %9 = vector.extract_strided_slice %4 {offsets = [0, 4], sizes = [16, 8], strides = [1, 1]} : vector<16x14xf32> to vector<16x8xf32>
    %10 = vector.extract_strided_slice %4 {offsets = [0, 5], sizes = [16, 8], strides = [1, 1]} : vector<16x14xf32> to vector<16x8xf32>
    %11 = vector.extract_strided_slice %4 {offsets = [0, 6], sizes = [16, 8], strides = [1, 1]} : vector<16x14xf32> to vector<16x8xf32>
    %12 = tpu.concatenate %5, %6, %7, %8, %9, %10, %11 in 0 : vector<16x8xf32>, vector<16x8xf32>, vector<16x8xf32>, vector<16x8xf32>, vector<16x8xf32>, vector<16x8xf32>, vector<16x8xf32> -> vector<112x8xf32>
    %13 = arith.truncf %12 : vector<112x8xf32> to vector<112x8xbf16>
    %c0_3 = arith.constant 0 : index
    %c0_4 = arith.constant 0 : index
    %14 = vector.load %arg2[%c0_3, %c0_4] : memref<32x112xbf16, #tpu.memory_space<vmem>>, vector<32x112xbf16>
    %cst_5 = arith.constant dense<0.000000e+00> : vector<32x8xf32>
    %15 = tpu.matmul %14, %13, %cst_5 {dimension_numbers = #tpu.dot_dimension_numbers<[1], [0], [0], [1], [0, 0, 1, 1], [], []>} : vector<32x112xbf16>, vector<112x8xbf16>, vector<32x8xf32> -> vector<32x8xf32>
    %c0_6 = arith.constant 0 : index
    %c0_7 = arith.constant 0 : index
    %16 = vector.load %arg3[%c0_6, %c0_7] : memref<32x1xf32, #tpu.memory_space<vmem>>, vector<32x1xf32>
    %17 = vector.broadcast %16 : vector<32x1xf32> to vector<32x8xf32>
    %18 = arith.addf %15, %17 : vector<32x8xf32>
    %cst_8 = arith.constant 0.000000e+00 : f32
    %19 = vector.broadcast %cst_8 : f32 to vector<32x8xf32>
    %20 = arith.cmpf ogt, %18, %19 : vector<32x8xf32>
    %cst_9 = arith.constant 1.000000e-01 : f32
    %21 = vector.broadcast %cst_9 : f32 to vector<32x8xf32>
    %22 = arith.mulf %21, %18 : vector<32x8xf32>
    %23 = arith.select %20, %18, %22 : vector<32x8xi1>, vector<32x8xf32>
    %cst_10 = arith.constant 0.000000e+00 : f32
    %24 = vector.broadcast %cst_10 : f32 to vector<32x1xf32>
    %cst_11 = arith.constant 0.000000e+00 : f32
    %25 = vector.broadcast %cst_11 : f32 to vector<32x1xf32>
    %26 = tpu.concatenate %24, %23, %25 in 1 : vector<32x1xf32>, vector<32x8xf32>, vector<32x1xf32> -> vector<32x10xf32>
    %27 = vector.extract_strided_slice %26 {offsets = [0, 0], sizes = [32, 8], strides = [1, 1]} : vector<32x10xf32> to vector<32x8xf32>
    %28 = vector.extract_strided_slice %26 {offsets = [0, 1], sizes = [32, 8], strides = [1, 1]} : vector<32x10xf32> to vector<32x8xf32>
    %29 = tpu.concatenate %27, %28 in 0 : vector<32x8xf32>, vector<32x8xf32> -> vector<64x8xf32>
    %30 = arith.truncf %29 : vector<64x8xf32> to vector<64x8xbf16>
    %c0_12 = arith.constant 0 : index
    %c0_13 = arith.constant 0 : index
    %31 = vector.load %arg4[%c0_12, %c0_13] : memref<16x64xbf16, #tpu.memory_space<vmem>>, vector<16x64xbf16>
    %cst_14 = arith.constant dense<0.000000e+00> : vector<16x8xf32>
    %32 = tpu.matmul %31, %30, %cst_14 {dimension_numbers = #tpu.dot_dimension_numbers<[1], [0], [0], [1], [0, 0, 1, 1], [], []>} : vector<16x64xbf16>, vector<64x8xbf16>, vector<16x8xf32> -> vector<16x8xf32>
    %c0_15 = arith.constant 0 : index
    %c0_16 = arith.constant 0 : index
    %33 = vector.load %arg6[%c0_15, %c0_16] : memref<16x1xf32, #tpu.memory_space<vmem>>, vector<16x1xf32>
    %34 = vector.broadcast %33 : vector<16x1xf32> to vector<16x8xf32>
    %35 = arith.addf %32, %34 : vector<16x8xf32>
    %36 = vector.extract_strided_slice %26 {offsets = [0, 1], sizes = [32, 8], strides = [1, 1]} : vector<32x10xf32> to vector<32x8xf32>
    %37 = vector.extract_strided_slice %26 {offsets = [0, 2], sizes = [32, 8], strides = [1, 1]} : vector<32x10xf32> to vector<32x8xf32>
    %38 = tpu.concatenate %36, %37 in 0 : vector<32x8xf32>, vector<32x8xf32> -> vector<64x8xf32>
    %39 = arith.truncf %38 : vector<64x8xf32> to vector<64x8xbf16>
    %c0_17 = arith.constant 0 : index
    %c0_18 = arith.constant 0 : index
    %40 = vector.load %arg5[%c0_17, %c0_18] : memref<16x64xbf16, #tpu.memory_space<vmem>>, vector<16x64xbf16>
    %cst_19 = arith.constant dense<0.000000e+00> : vector<16x8xf32>
    %41 = tpu.matmul %40, %39, %cst_19 {dimension_numbers = #tpu.dot_dimension_numbers<[1], [0], [0], [1], [0, 0, 1, 1], [], []>} : vector<16x64xbf16>, vector<64x8xbf16>, vector<16x8xf32> -> vector<16x8xf32>
    %c0_20 = arith.constant 0 : index
    %c0_21 = arith.constant 0 : index
    %42 = vector.load %arg6[%c0_20, %c0_21] : memref<16x1xf32, #tpu.memory_space<vmem>>, vector<16x1xf32>
    %43 = vector.broadcast %42 : vector<16x1xf32> to vector<16x8xf32>
    %44 = arith.addf %41, %43 : vector<16x8xf32>
    %45 = arith.truncf %35 : vector<16x8xf32> to vector<16x8xbf16>
    %c0_22 = arith.constant 0 : index
    %c0_23 = arith.constant 0 : index
    %c0_24 = arith.constant 0 : index
    %46 = vector.load %arg7[%c0_22, %c0_23, %c0_24] : memref<1x16x8xbf16, #tpu.memory_space<vmem>>, vector<1x16x8xbf16>
    %47 = vector.shape_cast %46 : vector<1x16x8xbf16> to vector<16x8xbf16>
    %48 = vector.shape_cast %45 : vector<16x8xbf16> to vector<1x16x8xbf16>
    tpu.vector_store %arg7[%c0_22, %c0_23, %c0_24], %48 {strides = array<i32>} : memref<1x16x8xbf16, #tpu.memory_space<vmem>>, vector<1x16x8xbf16>,
    %49 = arith.truncf %44 : vector<16x8xf32> to vector<16x8xbf16>
    %c0_25 = arith.constant 0 : index
    %c0_26 = arith.constant 0 : index
    %c0_27 = arith.constant 0 : index
    %50 = vector.load %arg8[%c0_25, %c0_26, %c0_27] : memref<1x16x8xbf16, #tpu.memory_space<vmem>>, vector<1x16x8xbf16>
    %51 = vector.shape_cast %50 : vector<1x16x8xbf16> to vector<16x8xbf16>
    %52 = vector.shape_cast %49 : vector<16x8xbf16> to vector<1x16x8xbf16>
    tpu.vector_store %arg8[%c0_25, %c0_26, %c0_27], %52 {strides = array<i32>} : memref<1x16x8xbf16, #tpu.memory_space<vmem>>, vector<1x16x8xbf16>,
    return
  }
  func.func @transform_0(%arg0: i32) -> (i32, i32, i32) {
    %c0_i32 = arith.constant 0 : i32
    %c0_i32_0 = arith.constant 0 : i32
    %c0_i32_1 = arith.constant 0 : i32
    return %arg0, %c0_i32, %c0_i32_0 : i32, i32, i32
  }
  func.func @transform_1(%arg0: i32) -> (i32, i32) {
    %c0_i32 = arith.constant 0 : i32
    %c0_i32_0 = arith.constant 0 : i32
    %c0_i32_1 = arith.constant 0 : i32
    return %c0_i32, %c0_i32_0 : i32, i32
  }
  func.func @transform_2(%arg0: i32) -> (i32, i32) {
    %c0_i32 = arith.constant 0 : i32
    %c0_i32_0 = arith.constant 0 : i32
    %c0_i32_1 = arith.constant 0 : i32
    return %c0_i32, %c0_i32_0 : i32, i32
  }
  func.func @transform_3(%arg0: i32) -> (i32, i32) {
    %c0_i32 = arith.constant 0 : i32
    %c0_i32_0 = arith.constant 0 : i32
    %c0_i32_1 = arith.constant 0 : i32
    return %c0_i32, %c0_i32_0 : i32, i32
  }
  func.func @transform_4(%arg0: i32) -> (i32, i32) {
    %c0_i32 = arith.constant 0 : i32
    %c0_i32_0 = arith.constant 0 : i32
    %c0_i32_1 = arith.constant 0 : i32
    return %c0_i32, %c0_i32_0 : i32, i32
  }
  func.func @transform_5(%arg0: i32) -> (i32, i32) {
    %c0_i32 = arith.constant 0 : i32
    %c0_i32_0 = arith.constant 0 : i32
    %c0_i32_1 = arith.constant 0 : i32
    return %c0_i32, %c0_i32_0 : i32, i32
  }
  func.func @transform_6(%arg0: i32) -> (i32, i32, i32) {
    %c0_i32 = arith.constant 0 : i32
    %c0_i32_0 = arith.constant 0 : i32
    %c0_i32_1 = arith.constant 0 : i32
    return %arg0, %c0_i32, %c0_i32_0 : i32, i32, i32
  }
  func.func @transform_7(%arg0: i32) -> (i32, i32, i32) {
    %c0_i32 = arith.constant 0 : i32
    %c0_i32_0 = arith.constant 0 : i32
    %c0_i32_1 = arith.constant 0 : i32
    return %arg0, %c0_i32, %c0_i32_0 : i32, i32, i32
  }
}

module attributes {stable_mosaic.version = 11 : i64} {
  func.func @_stage_mid_kernel(%arg0: i32, %arg1: memref<1x16x16xbf16, #tpu.memory_space<vmem>>, %arg2: memref<16x48xbf16, #tpu.memory_space<vmem>>, %arg3: memref<16x1xf32, #tpu.memory_space<vmem>>, %arg4: memref<16x48xbf16, #tpu.memory_space<vmem>>, %arg5: memref<16x1xf32, #tpu.memory_space<vmem>>, %arg6: memref<16x80xbf16, #tpu.memory_space<vmem>>, %arg7: memref<16x1xf32, #tpu.memory_space<vmem>>, %arg8: memref<16x80xbf16, #tpu.memory_space<vmem>>, %arg9: memref<16x1xf32, #tpu.memory_space<vmem>>, %arg10: memref<8x32xbf16, #tpu.memory_space<vmem>>, %arg11: memref<8x32xbf16, #tpu.memory_space<vmem>>, %arg12: memref<8x1xf32, #tpu.memory_space<vmem>>, %arg13: memref<1x8x16xbf16, #tpu.memory_space<vmem>>, %arg14: memref<1x8x16xbf16, #tpu.memory_space<vmem>>) attributes {dimension_semantics = [#tpu.dimension_semantics<parallel>], iteration_bounds = array<i64: 2>, scalar_prefetch = 0 : i64, scratch_operands = 0 : i64, tpu.core_type = #tpu.core_type<tc>, window_params = [{transform_indices = @transform_0, window_bounds = array<i64: 1, 16, 16>}, {pipeline_mode = #tpu.pipeline_mode<synchronous>, transform_indices = @transform_1, window_bounds = array<i64: 16, 48>}, {pipeline_mode = #tpu.pipeline_mode<synchronous>, transform_indices = @transform_2, window_bounds = array<i64: 16, 1>}, {pipeline_mode = #tpu.pipeline_mode<synchronous>, transform_indices = @transform_3, window_bounds = array<i64: 16, 48>}, {pipeline_mode = #tpu.pipeline_mode<synchronous>, transform_indices = @transform_4, window_bounds = array<i64: 16, 1>}, {pipeline_mode = #tpu.pipeline_mode<synchronous>, transform_indices = @transform_5, window_bounds = array<i64: 16, 80>}, {pipeline_mode = #tpu.pipeline_mode<synchronous>, transform_indices = @transform_6, window_bounds = array<i64: 16, 1>}, {pipeline_mode = #tpu.pipeline_mode<synchronous>, transform_indices = @transform_7, window_bounds = array<i64: 16, 80>}, {pipeline_mode = #tpu.pipeline_mode<synchronous>, transform_indices = @transform_8, window_bounds = array<i64: 16, 1>}, {pipeline_mode = #tpu.pipeline_mode<synchronous>, transform_indices = @transform_9, window_bounds = array<i64: 8, 32>}, {pipeline_mode = #tpu.pipeline_mode<synchronous>, transform_indices = @transform_10, window_bounds = array<i64: 8, 32>}, {pipeline_mode = #tpu.pipeline_mode<synchronous>, transform_indices = @transform_11, window_bounds = array<i64: 8, 1>}, {transform_indices = @transform_12, window_bounds = array<i64: 1, 8, 16>}, {transform_indices = @transform_13, window_bounds = array<i64: 1, 8, 16>}]} {
    %c0 = arith.constant 0 : index
    %c0_0 = arith.constant 0 : index
    %c0_1 = arith.constant 0 : index
    %0 = vector.load %arg1[%c0, %c0_0, %c0_1] : memref<1x16x16xbf16, #tpu.memory_space<vmem>>, vector<1x16x16xbf16>
    %1 = vector.shape_cast %0 : vector<1x16x16xbf16> to vector<16x16xbf16>
    %2 = arith.extf %1 : vector<16x16xbf16> to vector<16x16xf32>
    %cst = arith.constant 0.000000e+00 : f32
    %3 = vector.broadcast %cst : f32 to vector<16x16xf32>
    %4 = arith.cmpf ogt, %2, %3 : vector<16x16xf32>
    %cst_2 = arith.constant 1.000000e-01 : f32
    %5 = vector.broadcast %cst_2 : f32 to vector<16x16xf32>
    %6 = arith.mulf %5, %2 : vector<16x16xf32>
    %7 = arith.select %4, %2, %6 : vector<16x16xi1>, vector<16x16xf32>
    %cst_3 = arith.constant 0.000000e+00 : f32
    %8 = vector.broadcast %cst_3 : f32 to vector<16x1xf32>
    %cst_4 = arith.constant 0.000000e+00 : f32
    %9 = vector.broadcast %cst_4 : f32 to vector<16x1xf32>
    %10 = tpu.concatenate %8, %7, %9 in 1 : vector<16x1xf32>, vector<16x16xf32>, vector<16x1xf32> -> vector<16x18xf32>
    %11 = vector.extract_strided_slice %10 {offsets = [0, 0], sizes = [16, 16], strides = [1, 1]} : vector<16x18xf32> to vector<16x16xf32>
    %12 = vector.extract_strided_slice %10 {offsets = [0, 1], sizes = [16, 16], strides = [1, 1]} : vector<16x18xf32> to vector<16x16xf32>
    %13 = vector.extract_strided_slice %10 {offsets = [0, 2], sizes = [16, 16], strides = [1, 1]} : vector<16x18xf32> to vector<16x16xf32>
    %14 = tpu.concatenate %11, %12, %13 in 0 : vector<16x16xf32>, vector<16x16xf32>, vector<16x16xf32> -> vector<48x16xf32>
    %15 = arith.truncf %14 : vector<48x16xf32> to vector<48x16xbf16>
    %c0_5 = arith.constant 0 : index
    %c0_6 = arith.constant 0 : index
    %16 = vector.load %arg2[%c0_5, %c0_6] : memref<16x48xbf16, #tpu.memory_space<vmem>>, vector<16x48xbf16>
    %cst_7 = arith.constant dense<0.000000e+00> : vector<16x16xf32>
    %17 = tpu.matmul %16, %15, %cst_7 {dimension_numbers = #tpu.dot_dimension_numbers<[1], [0], [0], [1], [0, 0, 1, 1], [], []>} : vector<16x48xbf16>, vector<48x16xbf16>, vector<16x16xf32> -> vector<16x16xf32>
    %c0_8 = arith.constant 0 : index
    %c0_9 = arith.constant 0 : index
    %18 = vector.load %arg3[%c0_8, %c0_9] : memref<16x1xf32, #tpu.memory_space<vmem>>, vector<16x1xf32>
    %19 = vector.broadcast %18 : vector<16x1xf32> to vector<16x16xf32>
    %20 = arith.addf %17, %19 : vector<16x16xf32>
    %21 = arith.addf %2, %20 : vector<16x16xf32>
    %cst_10 = arith.constant 0.000000e+00 : f32
    %22 = vector.broadcast %cst_10 : f32 to vector<16x16xf32>
    %23 = arith.cmpf ogt, %21, %22 : vector<16x16xf32>
    %cst_11 = arith.constant 1.000000e-01 : f32
    %24 = vector.broadcast %cst_11 : f32 to vector<16x16xf32>
    %25 = arith.mulf %24, %21 : vector<16x16xf32>
    %26 = arith.select %23, %21, %25 : vector<16x16xi1>, vector<16x16xf32>
    %cst_12 = arith.constant 0.000000e+00 : f32
    %27 = vector.broadcast %cst_12 : f32 to vector<16x3xf32>
    %cst_13 = arith.constant 0.000000e+00 : f32
    %28 = vector.broadcast %cst_13 : f32 to vector<16x3xf32>
    %29 = tpu.concatenate %27, %26, %28 in 1 : vector<16x3xf32>, vector<16x16xf32>, vector<16x3xf32> -> vector<16x22xf32>
    %30 = vector.extract_strided_slice %29 {offsets = [0, 0], sizes = [16, 16], strides = [1, 1]} : vector<16x22xf32> to vector<16x16xf32>
    %31 = vector.extract_strided_slice %29 {offsets = [0, 3], sizes = [16, 16], strides = [1, 1]} : vector<16x22xf32> to vector<16x16xf32>
    %32 = vector.extract_strided_slice %29 {offsets = [0, 6], sizes = [16, 16], strides = [1, 1]} : vector<16x22xf32> to vector<16x16xf32>
    %33 = tpu.concatenate %30, %31, %32 in 0 : vector<16x16xf32>, vector<16x16xf32>, vector<16x16xf32> -> vector<48x16xf32>
    %34 = arith.truncf %33 : vector<48x16xf32> to vector<48x16xbf16>
    %c0_14 = arith.constant 0 : index
    %c0_15 = arith.constant 0 : index
    %35 = vector.load %arg4[%c0_14, %c0_15] : memref<16x48xbf16, #tpu.memory_space<vmem>>, vector<16x48xbf16>
    %cst_16 = arith.constant dense<0.000000e+00> : vector<16x16xf32>
    %36 = tpu.matmul %35, %34, %cst_16 {dimension_numbers = #tpu.dot_dimension_numbers<[1], [0], [0], [1], [0, 0, 1, 1], [], []>} : vector<16x48xbf16>, vector<48x16xbf16>, vector<16x16xf32> -> vector<16x16xf32>
    %c0_17 = arith.constant 0 : index
    %c0_18 = arith.constant 0 : index
    %37 = vector.load %arg5[%c0_17, %c0_18] : memref<16x1xf32, #tpu.memory_space<vmem>>, vector<16x1xf32>
    %38 = vector.broadcast %37 : vector<16x1xf32> to vector<16x16xf32>
    %39 = arith.addf %36, %38 : vector<16x16xf32>
    %40 = arith.addf %21, %39 : vector<16x16xf32>
    %cst_19 = arith.constant 0.000000e+00 : f32
    %41 = vector.broadcast %cst_19 : f32 to vector<16x16xf32>
    %42 = arith.cmpf ogt, %2, %41 : vector<16x16xf32>
    %cst_20 = arith.constant 1.000000e-01 : f32
    %43 = vector.broadcast %cst_20 : f32 to vector<16x16xf32>
    %44 = arith.mulf %43, %2 : vector<16x16xf32>
    %45 = arith.select %42, %2, %44 : vector<16x16xi1>, vector<16x16xf32>
    %cst_21 = arith.constant 0.000000e+00 : f32
    %46 = vector.broadcast %cst_21 : f32 to vector<16x2xf32>
    %cst_22 = arith.constant 0.000000e+00 : f32
    %47 = vector.broadcast %cst_22 : f32 to vector<16x2xf32>
    %48 = tpu.concatenate %46, %45, %47 in 1 : vector<16x2xf32>, vector<16x16xf32>, vector<16x2xf32> -> vector<16x20xf32>
    %49 = vector.extract_strided_slice %48 {offsets = [0, 0], sizes = [16, 16], strides = [1, 1]} : vector<16x20xf32> to vector<16x16xf32>
    %50 = vector.extract_strided_slice %48 {offsets = [0, 1], sizes = [16, 16], strides = [1, 1]} : vector<16x20xf32> to vector<16x16xf32>
    %51 = vector.extract_strided_slice %48 {offsets = [0, 2], sizes = [16, 16], strides = [1, 1]} : vector<16x20xf32> to vector<16x16xf32>
    %52 = vector.extract_strided_slice %48 {offsets = [0, 3], sizes = [16, 16], strides = [1, 1]} : vector<16x20xf32> to vector<16x16xf32>
    %53 = vector.extract_strided_slice %48 {offsets = [0, 4], sizes = [16, 16], strides = [1, 1]} : vector<16x20xf32> to vector<16x16xf32>
    %54 = tpu.concatenate %49, %50, %51, %52, %53 in 0 : vector<16x16xf32>, vector<16x16xf32>, vector<16x16xf32>, vector<16x16xf32>, vector<16x16xf32> -> vector<80x16xf32>
    %55 = arith.truncf %54 : vector<80x16xf32> to vector<80x16xbf16>
    %c0_23 = arith.constant 0 : index
    %c0_24 = arith.constant 0 : index
    %56 = vector.load %arg6[%c0_23, %c0_24] : memref<16x80xbf16, #tpu.memory_space<vmem>>, vector<16x80xbf16>
    %cst_25 = arith.constant dense<0.000000e+00> : vector<16x16xf32>
    %57 = tpu.matmul %56, %55, %cst_25 {dimension_numbers = #tpu.dot_dimension_numbers<[1], [0], [0], [1], [0, 0, 1, 1], [], []>} : vector<16x80xbf16>, vector<80x16xbf16>, vector<16x16xf32> -> vector<16x16xf32>
    %c0_26 = arith.constant 0 : index
    %c0_27 = arith.constant 0 : index
    %58 = vector.load %arg7[%c0_26, %c0_27] : memref<16x1xf32, #tpu.memory_space<vmem>>, vector<16x1xf32>
    %59 = vector.broadcast %58 : vector<16x1xf32> to vector<16x16xf32>
    %60 = arith.addf %57, %59 : vector<16x16xf32>
    %61 = arith.addf %2, %60 : vector<16x16xf32>
    %cst_28 = arith.constant 0.000000e+00 : f32
    %62 = vector.broadcast %cst_28 : f32 to vector<16x16xf32>
    %63 = arith.cmpf ogt, %61, %62 : vector<16x16xf32>
    %cst_29 = arith.constant 1.000000e-01 : f32
    %64 = vector.broadcast %cst_29 : f32 to vector<16x16xf32>
    %65 = arith.mulf %64, %61 : vector<16x16xf32>
    %66 = arith.select %63, %61, %65 : vector<16x16xi1>, vector<16x16xf32>
    %cst_30 = arith.constant 0.000000e+00 : f32
    %67 = vector.broadcast %cst_30 : f32 to vector<16x6xf32>
    %cst_31 = arith.constant 0.000000e+00 : f32
    %68 = vector.broadcast %cst_31 : f32 to vector<16x6xf32>
    %69 = tpu.concatenate %67, %66, %68 in 1 : vector<16x6xf32>, vector<16x16xf32>, vector<16x6xf32> -> vector<16x28xf32>
    %70 = vector.extract_strided_slice %69 {offsets = [0, 0], sizes = [16, 16], strides = [1, 1]} : vector<16x28xf32> to vector<16x16xf32>
    %71 = vector.extract_strided_slice %69 {offsets = [0, 3], sizes = [16, 16], strides = [1, 1]} : vector<16x28xf32> to vector<16x16xf32>
    %72 = vector.extract_strided_slice %69 {offsets = [0, 6], sizes = [16, 16], strides = [1, 1]} : vector<16x28xf32> to vector<16x16xf32>
    %73 = vector.extract_strided_slice %69 {offsets = [0, 9], sizes = [16, 16], strides = [1, 1]} : vector<16x28xf32> to vector<16x16xf32>
    %74 = vector.extract_strided_slice %69 {offsets = [0, 12], sizes = [16, 16], strides = [1, 1]} : vector<16x28xf32> to vector<16x16xf32>
    %75 = tpu.concatenate %70, %71, %72, %73, %74 in 0 : vector<16x16xf32>, vector<16x16xf32>, vector<16x16xf32>, vector<16x16xf32>, vector<16x16xf32> -> vector<80x16xf32>
    %76 = arith.truncf %75 : vector<80x16xf32> to vector<80x16xbf16>
    %c0_32 = arith.constant 0 : index
    %c0_33 = arith.constant 0 : index
    %77 = vector.load %arg8[%c0_32, %c0_33] : memref<16x80xbf16, #tpu.memory_space<vmem>>, vector<16x80xbf16>
    %cst_34 = arith.constant dense<0.000000e+00> : vector<16x16xf32>
    %78 = tpu.matmul %77, %76, %cst_34 {dimension_numbers = #tpu.dot_dimension_numbers<[1], [0], [0], [1], [0, 0, 1, 1], [], []>} : vector<16x80xbf16>, vector<80x16xbf16>, vector<16x16xf32> -> vector<16x16xf32>
    %c0_35 = arith.constant 0 : index
    %c0_36 = arith.constant 0 : index
    %79 = vector.load %arg9[%c0_35, %c0_36] : memref<16x1xf32, #tpu.memory_space<vmem>>, vector<16x1xf32>
    %80 = vector.broadcast %79 : vector<16x1xf32> to vector<16x16xf32>
    %81 = arith.addf %78, %80 : vector<16x16xf32>
    %82 = arith.addf %61, %81 : vector<16x16xf32>
    %83 = arith.addf %40, %82 : vector<16x16xf32>
    %cst_37 = arith.constant 5.000000e-01 : f32
    %84 = vector.broadcast %cst_37 : f32 to vector<16x16xf32>
    %85 = arith.mulf %83, %84 : vector<16x16xf32>
    %cst_38 = arith.constant 0.000000e+00 : f32
    %86 = vector.broadcast %cst_38 : f32 to vector<16x16xf32>
    %87 = arith.cmpf ogt, %85, %86 : vector<16x16xf32>
    %cst_39 = arith.constant 1.000000e-01 : f32
    %88 = vector.broadcast %cst_39 : f32 to vector<16x16xf32>
    %89 = arith.mulf %88, %85 : vector<16x16xf32>
    %90 = arith.select %87, %85, %89 : vector<16x16xi1>, vector<16x16xf32>
    %cst_40 = arith.constant 0.000000e+00 : f32
    %91 = vector.broadcast %cst_40 : f32 to vector<16x1xf32>
    %cst_41 = arith.constant 0.000000e+00 : f32
    %92 = vector.broadcast %cst_41 : f32 to vector<16x1xf32>
    %93 = tpu.concatenate %91, %90, %92 in 1 : vector<16x1xf32>, vector<16x16xf32>, vector<16x1xf32> -> vector<16x18xf32>
    %94 = vector.extract_strided_slice %93 {offsets = [0, 0], sizes = [16, 16], strides = [1, 1]} : vector<16x18xf32> to vector<16x16xf32>
    %95 = vector.extract_strided_slice %93 {offsets = [0, 1], sizes = [16, 16], strides = [1, 1]} : vector<16x18xf32> to vector<16x16xf32>
    %96 = tpu.concatenate %94, %95 in 0 : vector<16x16xf32>, vector<16x16xf32> -> vector<32x16xf32>
    %97 = arith.truncf %96 : vector<32x16xf32> to vector<32x16xbf16>
    %c0_42 = arith.constant 0 : index
    %c0_43 = arith.constant 0 : index
    %98 = vector.load %arg10[%c0_42, %c0_43] : memref<8x32xbf16, #tpu.memory_space<vmem>>, vector<8x32xbf16>
    %cst_44 = arith.constant dense<0.000000e+00> : vector<8x16xf32>
    %99 = tpu.matmul %98, %97, %cst_44 {dimension_numbers = #tpu.dot_dimension_numbers<[1], [0], [0], [1], [0, 0, 1, 1], [], []>} : vector<8x32xbf16>, vector<32x16xbf16>, vector<8x16xf32> -> vector<8x16xf32>
    %c0_45 = arith.constant 0 : index
    %c0_46 = arith.constant 0 : index
    %100 = vector.load %arg12[%c0_45, %c0_46] : memref<8x1xf32, #tpu.memory_space<vmem>>, vector<8x1xf32>
    %101 = vector.broadcast %100 : vector<8x1xf32> to vector<8x16xf32>
    %102 = arith.addf %99, %101 : vector<8x16xf32>
    %103 = vector.extract_strided_slice %93 {offsets = [0, 1], sizes = [16, 16], strides = [1, 1]} : vector<16x18xf32> to vector<16x16xf32>
    %104 = vector.extract_strided_slice %93 {offsets = [0, 2], sizes = [16, 16], strides = [1, 1]} : vector<16x18xf32> to vector<16x16xf32>
    %105 = tpu.concatenate %103, %104 in 0 : vector<16x16xf32>, vector<16x16xf32> -> vector<32x16xf32>
    %106 = arith.truncf %105 : vector<32x16xf32> to vector<32x16xbf16>
    %c0_47 = arith.constant 0 : index
    %c0_48 = arith.constant 0 : index
    %107 = vector.load %arg11[%c0_47, %c0_48] : memref<8x32xbf16, #tpu.memory_space<vmem>>, vector<8x32xbf16>
    %cst_49 = arith.constant dense<0.000000e+00> : vector<8x16xf32>
    %108 = tpu.matmul %107, %106, %cst_49 {dimension_numbers = #tpu.dot_dimension_numbers<[1], [0], [0], [1], [0, 0, 1, 1], [], []>} : vector<8x32xbf16>, vector<32x16xbf16>, vector<8x16xf32> -> vector<8x16xf32>
    %c0_50 = arith.constant 0 : index
    %c0_51 = arith.constant 0 : index
    %109 = vector.load %arg12[%c0_50, %c0_51] : memref<8x1xf32, #tpu.memory_space<vmem>>, vector<8x1xf32>
    %110 = vector.broadcast %109 : vector<8x1xf32> to vector<8x16xf32>
    %111 = arith.addf %108, %110 : vector<8x16xf32>
    %112 = arith.truncf %102 : vector<8x16xf32> to vector<8x16xbf16>
    %c0_52 = arith.constant 0 : index
    %c0_53 = arith.constant 0 : index
    %c0_54 = arith.constant 0 : index
    %113 = vector.load %arg13[%c0_52, %c0_53, %c0_54] : memref<1x8x16xbf16, #tpu.memory_space<vmem>>, vector<1x8x16xbf16>
    %114 = vector.shape_cast %113 : vector<1x8x16xbf16> to vector<8x16xbf16>
    %115 = vector.shape_cast %112 : vector<8x16xbf16> to vector<1x8x16xbf16>
    tpu.vector_store %arg13[%c0_52, %c0_53, %c0_54], %115 {strides = array<i32>} : memref<1x8x16xbf16, #tpu.memory_space<vmem>>, vector<1x8x16xbf16>,
    %116 = arith.truncf %111 : vector<8x16xf32> to vector<8x16xbf16>
    %c0_55 = arith.constant 0 : index
    %c0_56 = arith.constant 0 : index
    %c0_57 = arith.constant 0 : index
    %117 = vector.load %arg14[%c0_55, %c0_56, %c0_57] : memref<1x8x16xbf16, #tpu.memory_space<vmem>>, vector<1x8x16xbf16>
    %118 = vector.shape_cast %117 : vector<1x8x16xbf16> to vector<8x16xbf16>
    %119 = vector.shape_cast %116 : vector<8x16xbf16> to vector<1x8x16xbf16>
    tpu.vector_store %arg14[%c0_55, %c0_56, %c0_57], %119 {strides = array<i32>} : memref<1x8x16xbf16, #tpu.memory_space<vmem>>, vector<1x8x16xbf16>,
    return
  }
  func.func @transform_0(%arg0: i32) -> (i32, i32, i32) {
    %c0_i32 = arith.constant 0 : i32
    %c0_i32_0 = arith.constant 0 : i32
    %c0_i32_1 = arith.constant 0 : i32
    return %arg0, %c0_i32, %c0_i32_0 : i32, i32, i32
  }
  func.func @transform_1(%arg0: i32) -> (i32, i32) {
    %c0_i32 = arith.constant 0 : i32
    %c0_i32_0 = arith.constant 0 : i32
    %c0_i32_1 = arith.constant 0 : i32
    return %c0_i32, %c0_i32_0 : i32, i32
  }
  func.func @transform_2(%arg0: i32) -> (i32, i32) {
    %c0_i32 = arith.constant 0 : i32
    %c0_i32_0 = arith.constant 0 : i32
    %c0_i32_1 = arith.constant 0 : i32
    return %c0_i32, %c0_i32_0 : i32, i32
  }
  func.func @transform_3(%arg0: i32) -> (i32, i32) {
    %c0_i32 = arith.constant 0 : i32
    %c0_i32_0 = arith.constant 0 : i32
    %c0_i32_1 = arith.constant 0 : i32
    return %c0_i32, %c0_i32_0 : i32, i32
  }
  func.func @transform_4(%arg0: i32) -> (i32, i32) {
    %c0_i32 = arith.constant 0 : i32
    %c0_i32_0 = arith.constant 0 : i32
    %c0_i32_1 = arith.constant 0 : i32
    return %c0_i32, %c0_i32_0 : i32, i32
  }
  func.func @transform_5(%arg0: i32) -> (i32, i32) {
    %c0_i32 = arith.constant 0 : i32
    %c0_i32_0 = arith.constant 0 : i32
    %c0_i32_1 = arith.constant 0 : i32
    return %c0_i32, %c0_i32_0 : i32, i32
  }
  func.func @transform_6(%arg0: i32) -> (i32, i32) {
    %c0_i32 = arith.constant 0 : i32
    %c0_i32_0 = arith.constant 0 : i32
    %c0_i32_1 = arith.constant 0 : i32
    return %c0_i32, %c0_i32_0 : i32, i32
  }
  func.func @transform_7(%arg0: i32) -> (i32, i32) {
    %c0_i32 = arith.constant 0 : i32
    %c0_i32_0 = arith.constant 0 : i32
    %c0_i32_1 = arith.constant 0 : i32
    return %c0_i32, %c0_i32_0 : i32, i32
  }
  func.func @transform_8(%arg0: i32) -> (i32, i32) {
    %c0_i32 = arith.constant 0 : i32
    %c0_i32_0 = arith.constant 0 : i32
    %c0_i32_1 = arith.constant 0 : i32
    return %c0_i32, %c0_i32_0 : i32, i32
  }
  func.func @transform_9(%arg0: i32) -> (i32, i32) {
    %c0_i32 = arith.constant 0 : i32
    %c0_i32_0 = arith.constant 0 : i32
    %c0_i32_1 = arith.constant 0 : i32
    return %c0_i32, %c0_i32_0 : i32, i32
  }
  func.func @transform_10(%arg0: i32) -> (i32, i32) {
    %c0_i32 = arith.constant 0 : i32
    %c0_i32_0 = arith.constant 0 : i32
    %c0_i32_1 = arith.constant 0 : i32
    return %c0_i32, %c0_i32_0 : i32, i32
  }
  func.func @transform_11(%arg0: i32) -> (i32, i32) {
    %c0_i32 = arith.constant 0 : i32
    %c0_i32_0 = arith.constant 0 : i32
    %c0_i32_1 = arith.constant 0 : i32
    return %c0_i32, %c0_i32_0 : i32, i32
  }
  func.func @transform_12(%arg0: i32) -> (i32, i32, i32) {
    %c0_i32 = arith.constant 0 : i32
    %c0_i32_0 = arith.constant 0 : i32
    %c0_i32_1 = arith.constant 0 : i32
    return %arg0, %c0_i32, %c0_i32_0 : i32, i32, i32
  }
  func.func @transform_13(%arg0: i32) -> (i32, i32, i32) {
    %c0_i32 = arith.constant 0 : i32
    %c0_i32_0 = arith.constant 0 : i32
    %c0_i32_1 = arith.constant 0 : i32
    return %arg0, %c0_i32, %c0_i32_0 : i32, i32, i32
  }
}

module attributes {stable_mosaic.version = 11 : i64} {
  func.func @_stage_post_kernel(%arg0: i32, %arg1: memref<1x8x32xbf16, #tpu.memory_space<vmem>>, %arg2: memref<8x24xbf16, #tpu.memory_space<vmem>>, %arg3: memref<8x1xf32, #tpu.memory_space<vmem>>, %arg4: memref<8x24xbf16, #tpu.memory_space<vmem>>, %arg5: memref<8x1xf32, #tpu.memory_space<vmem>>, %arg6: memref<8x40xbf16, #tpu.memory_space<vmem>>, %arg7: memref<8x1xf32, #tpu.memory_space<vmem>>, %arg8: memref<8x40xbf16, #tpu.memory_space<vmem>>, %arg9: memref<8x1xf32, #tpu.memory_space<vmem>>, %arg10: memref<1x56xbf16, #tpu.memory_space<vmem>>, %arg11: memref<1x1xf32, #tpu.memory_space<vmem>>, %arg12: memref<1x1x32xf32, #tpu.memory_space<vmem>>) attributes {dimension_semantics = [#tpu.dimension_semantics<parallel>], iteration_bounds = array<i64: 2>, scalar_prefetch = 0 : i64, scratch_operands = 0 : i64, tpu.core_type = #tpu.core_type<tc>, window_params = [{transform_indices = @transform_0, window_bounds = array<i64: 1, 8, 32>}, {pipeline_mode = #tpu.pipeline_mode<synchronous>, transform_indices = @transform_1, window_bounds = array<i64: 8, 24>}, {pipeline_mode = #tpu.pipeline_mode<synchronous>, transform_indices = @transform_2, window_bounds = array<i64: 8, 1>}, {pipeline_mode = #tpu.pipeline_mode<synchronous>, transform_indices = @transform_3, window_bounds = array<i64: 8, 24>}, {pipeline_mode = #tpu.pipeline_mode<synchronous>, transform_indices = @transform_4, window_bounds = array<i64: 8, 1>}, {pipeline_mode = #tpu.pipeline_mode<synchronous>, transform_indices = @transform_5, window_bounds = array<i64: 8, 40>}, {pipeline_mode = #tpu.pipeline_mode<synchronous>, transform_indices = @transform_6, window_bounds = array<i64: 8, 1>}, {pipeline_mode = #tpu.pipeline_mode<synchronous>, transform_indices = @transform_7, window_bounds = array<i64: 8, 40>}, {pipeline_mode = #tpu.pipeline_mode<synchronous>, transform_indices = @transform_8, window_bounds = array<i64: 8, 1>}, {pipeline_mode = #tpu.pipeline_mode<synchronous>, transform_indices = @transform_9, window_bounds = array<i64: 1, 56>}, {pipeline_mode = #tpu.pipeline_mode<synchronous>, transform_indices = @transform_10, window_bounds = array<i64: 1, 1>}, {transform_indices = @transform_11, window_bounds = array<i64: 1, 1, 32>}]} {
    %c0 = arith.constant 0 : index
    %c0_0 = arith.constant 0 : index
    %c0_1 = arith.constant 0 : index
    %0 = vector.load %arg1[%c0, %c0_0, %c0_1] : memref<1x8x32xbf16, #tpu.memory_space<vmem>>, vector<1x8x32xbf16>
    %1 = vector.shape_cast %0 : vector<1x8x32xbf16> to vector<8x32xbf16>
    %2 = arith.extf %1 : vector<8x32xbf16> to vector<8x32xf32>
    %cst = arith.constant 0.000000e+00 : f32
    %3 = vector.broadcast %cst : f32 to vector<8x32xf32>
    %4 = arith.cmpf ogt, %2, %3 : vector<8x32xf32>
    %cst_2 = arith.constant 1.000000e-01 : f32
    %5 = vector.broadcast %cst_2 : f32 to vector<8x32xf32>
    %6 = arith.mulf %5, %2 : vector<8x32xf32>
    %7 = arith.select %4, %2, %6 : vector<8x32xi1>, vector<8x32xf32>
    %cst_3 = arith.constant 0.000000e+00 : f32
    %8 = vector.broadcast %cst_3 : f32 to vector<8x1xf32>
    %cst_4 = arith.constant 0.000000e+00 : f32
    %9 = vector.broadcast %cst_4 : f32 to vector<8x1xf32>
    %10 = tpu.concatenate %8, %7, %9 in 1 : vector<8x1xf32>, vector<8x32xf32>, vector<8x1xf32> -> vector<8x34xf32>
    %11 = vector.extract_strided_slice %10 {offsets = [0, 0], sizes = [8, 32], strides = [1, 1]} : vector<8x34xf32> to vector<8x32xf32>
    %12 = vector.extract_strided_slice %10 {offsets = [0, 1], sizes = [8, 32], strides = [1, 1]} : vector<8x34xf32> to vector<8x32xf32>
    %13 = vector.extract_strided_slice %10 {offsets = [0, 2], sizes = [8, 32], strides = [1, 1]} : vector<8x34xf32> to vector<8x32xf32>
    %14 = tpu.concatenate %11, %12, %13 in 0 : vector<8x32xf32>, vector<8x32xf32>, vector<8x32xf32> -> vector<24x32xf32>
    %15 = arith.truncf %14 : vector<24x32xf32> to vector<24x32xbf16>
    %c0_5 = arith.constant 0 : index
    %c0_6 = arith.constant 0 : index
    %16 = vector.load %arg2[%c0_5, %c0_6] : memref<8x24xbf16, #tpu.memory_space<vmem>>, vector<8x24xbf16>
    %cst_7 = arith.constant dense<0.000000e+00> : vector<8x32xf32>
    %17 = tpu.matmul %16, %15, %cst_7 {dimension_numbers = #tpu.dot_dimension_numbers<[1], [0], [0], [1], [0, 0, 1, 1], [], []>} : vector<8x24xbf16>, vector<24x32xbf16>, vector<8x32xf32> -> vector<8x32xf32>
    %c0_8 = arith.constant 0 : index
    %c0_9 = arith.constant 0 : index
    %18 = vector.load %arg3[%c0_8, %c0_9] : memref<8x1xf32, #tpu.memory_space<vmem>>, vector<8x1xf32>
    %19 = vector.broadcast %18 : vector<8x1xf32> to vector<8x32xf32>
    %20 = arith.addf %17, %19 : vector<8x32xf32>
    %21 = arith.addf %2, %20 : vector<8x32xf32>
    %cst_10 = arith.constant 0.000000e+00 : f32
    %22 = vector.broadcast %cst_10 : f32 to vector<8x32xf32>
    %23 = arith.cmpf ogt, %21, %22 : vector<8x32xf32>
    %cst_11 = arith.constant 1.000000e-01 : f32
    %24 = vector.broadcast %cst_11 : f32 to vector<8x32xf32>
    %25 = arith.mulf %24, %21 : vector<8x32xf32>
    %26 = arith.select %23, %21, %25 : vector<8x32xi1>, vector<8x32xf32>
    %cst_12 = arith.constant 0.000000e+00 : f32
    %27 = vector.broadcast %cst_12 : f32 to vector<8x3xf32>
    %cst_13 = arith.constant 0.000000e+00 : f32
    %28 = vector.broadcast %cst_13 : f32 to vector<8x3xf32>
    %29 = tpu.concatenate %27, %26, %28 in 1 : vector<8x3xf32>, vector<8x32xf32>, vector<8x3xf32> -> vector<8x38xf32>
    %30 = vector.extract_strided_slice %29 {offsets = [0, 0], sizes = [8, 32], strides = [1, 1]} : vector<8x38xf32> to vector<8x32xf32>
    %31 = vector.extract_strided_slice %29 {offsets = [0, 3], sizes = [8, 32], strides = [1, 1]} : vector<8x38xf32> to vector<8x32xf32>
    %32 = vector.extract_strided_slice %29 {offsets = [0, 6], sizes = [8, 32], strides = [1, 1]} : vector<8x38xf32> to vector<8x32xf32>
    %33 = tpu.concatenate %30, %31, %32 in 0 : vector<8x32xf32>, vector<8x32xf32>, vector<8x32xf32> -> vector<24x32xf32>
    %34 = arith.truncf %33 : vector<24x32xf32> to vector<24x32xbf16>
    %c0_14 = arith.constant 0 : index
    %c0_15 = arith.constant 0 : index
    %35 = vector.load %arg4[%c0_14, %c0_15] : memref<8x24xbf16, #tpu.memory_space<vmem>>, vector<8x24xbf16>
    %cst_16 = arith.constant dense<0.000000e+00> : vector<8x32xf32>
    %36 = tpu.matmul %35, %34, %cst_16 {dimension_numbers = #tpu.dot_dimension_numbers<[1], [0], [0], [1], [0, 0, 1, 1], [], []>} : vector<8x24xbf16>, vector<24x32xbf16>, vector<8x32xf32> -> vector<8x32xf32>
    %c0_17 = arith.constant 0 : index
    %c0_18 = arith.constant 0 : index
    %37 = vector.load %arg5[%c0_17, %c0_18] : memref<8x1xf32, #tpu.memory_space<vmem>>, vector<8x1xf32>
    %38 = vector.broadcast %37 : vector<8x1xf32> to vector<8x32xf32>
    %39 = arith.addf %36, %38 : vector<8x32xf32>
    %40 = arith.addf %21, %39 : vector<8x32xf32>
    %cst_19 = arith.constant 0.000000e+00 : f32
    %41 = vector.broadcast %cst_19 : f32 to vector<8x32xf32>
    %42 = arith.cmpf ogt, %2, %41 : vector<8x32xf32>
    %cst_20 = arith.constant 1.000000e-01 : f32
    %43 = vector.broadcast %cst_20 : f32 to vector<8x32xf32>
    %44 = arith.mulf %43, %2 : vector<8x32xf32>
    %45 = arith.select %42, %2, %44 : vector<8x32xi1>, vector<8x32xf32>
    %cst_21 = arith.constant 0.000000e+00 : f32
    %46 = vector.broadcast %cst_21 : f32 to vector<8x2xf32>
    %cst_22 = arith.constant 0.000000e+00 : f32
    %47 = vector.broadcast %cst_22 : f32 to vector<8x2xf32>
    %48 = tpu.concatenate %46, %45, %47 in 1 : vector<8x2xf32>, vector<8x32xf32>, vector<8x2xf32> -> vector<8x36xf32>
    %49 = vector.extract_strided_slice %48 {offsets = [0, 0], sizes = [8, 32], strides = [1, 1]} : vector<8x36xf32> to vector<8x32xf32>
    %50 = vector.extract_strided_slice %48 {offsets = [0, 1], sizes = [8, 32], strides = [1, 1]} : vector<8x36xf32> to vector<8x32xf32>
    %51 = vector.extract_strided_slice %48 {offsets = [0, 2], sizes = [8, 32], strides = [1, 1]} : vector<8x36xf32> to vector<8x32xf32>
    %52 = vector.extract_strided_slice %48 {offsets = [0, 3], sizes = [8, 32], strides = [1, 1]} : vector<8x36xf32> to vector<8x32xf32>
    %53 = vector.extract_strided_slice %48 {offsets = [0, 4], sizes = [8, 32], strides = [1, 1]} : vector<8x36xf32> to vector<8x32xf32>
    %54 = tpu.concatenate %49, %50, %51, %52, %53 in 0 : vector<8x32xf32>, vector<8x32xf32>, vector<8x32xf32>, vector<8x32xf32>, vector<8x32xf32> -> vector<40x32xf32>
    %55 = arith.truncf %54 : vector<40x32xf32> to vector<40x32xbf16>
    %c0_23 = arith.constant 0 : index
    %c0_24 = arith.constant 0 : index
    %56 = vector.load %arg6[%c0_23, %c0_24] : memref<8x40xbf16, #tpu.memory_space<vmem>>, vector<8x40xbf16>
    %cst_25 = arith.constant dense<0.000000e+00> : vector<8x32xf32>
    %57 = tpu.matmul %56, %55, %cst_25 {dimension_numbers = #tpu.dot_dimension_numbers<[1], [0], [0], [1], [0, 0, 1, 1], [], []>} : vector<8x40xbf16>, vector<40x32xbf16>, vector<8x32xf32> -> vector<8x32xf32>
    %c0_26 = arith.constant 0 : index
    %c0_27 = arith.constant 0 : index
    %58 = vector.load %arg7[%c0_26, %c0_27] : memref<8x1xf32, #tpu.memory_space<vmem>>, vector<8x1xf32>
    %59 = vector.broadcast %58 : vector<8x1xf32> to vector<8x32xf32>
    %60 = arith.addf %57, %59 : vector<8x32xf32>
    %61 = arith.addf %2, %60 : vector<8x32xf32>
    %cst_28 = arith.constant 0.000000e+00 : f32
    %62 = vector.broadcast %cst_28 : f32 to vector<8x32xf32>
    %63 = arith.cmpf ogt, %61, %62 : vector<8x32xf32>
    %cst_29 = arith.constant 1.000000e-01 : f32
    %64 = vector.broadcast %cst_29 : f32 to vector<8x32xf32>
    %65 = arith.mulf %64, %61 : vector<8x32xf32>
    %66 = arith.select %63, %61, %65 : vector<8x32xi1>, vector<8x32xf32>
    %cst_30 = arith.constant 0.000000e+00 : f32
    %67 = vector.broadcast %cst_30 : f32 to vector<8x6xf32>
    %cst_31 = arith.constant 0.000000e+00 : f32
    %68 = vector.broadcast %cst_31 : f32 to vector<8x6xf32>
    %69 = tpu.concatenate %67, %66, %68 in 1 : vector<8x6xf32>, vector<8x32xf32>, vector<8x6xf32> -> vector<8x44xf32>
    %70 = vector.extract_strided_slice %69 {offsets = [0, 0], sizes = [8, 32], strides = [1, 1]} : vector<8x44xf32> to vector<8x32xf32>
    %71 = vector.extract_strided_slice %69 {offsets = [0, 3], sizes = [8, 32], strides = [1, 1]} : vector<8x44xf32> to vector<8x32xf32>
    %72 = vector.extract_strided_slice %69 {offsets = [0, 6], sizes = [8, 32], strides = [1, 1]} : vector<8x44xf32> to vector<8x32xf32>
    %73 = vector.extract_strided_slice %69 {offsets = [0, 9], sizes = [8, 32], strides = [1, 1]} : vector<8x44xf32> to vector<8x32xf32>
    %74 = vector.extract_strided_slice %69 {offsets = [0, 12], sizes = [8, 32], strides = [1, 1]} : vector<8x44xf32> to vector<8x32xf32>
    %75 = tpu.concatenate %70, %71, %72, %73, %74 in 0 : vector<8x32xf32>, vector<8x32xf32>, vector<8x32xf32>, vector<8x32xf32>, vector<8x32xf32> -> vector<40x32xf32>
    %76 = arith.truncf %75 : vector<40x32xf32> to vector<40x32xbf16>
    %c0_32 = arith.constant 0 : index
    %c0_33 = arith.constant 0 : index
    %77 = vector.load %arg8[%c0_32, %c0_33] : memref<8x40xbf16, #tpu.memory_space<vmem>>, vector<8x40xbf16>
    %cst_34 = arith.constant dense<0.000000e+00> : vector<8x32xf32>
    %78 = tpu.matmul %77, %76, %cst_34 {dimension_numbers = #tpu.dot_dimension_numbers<[1], [0], [0], [1], [0, 0, 1, 1], [], []>} : vector<8x40xbf16>, vector<40x32xbf16>, vector<8x32xf32> -> vector<8x32xf32>
    %c0_35 = arith.constant 0 : index
    %c0_36 = arith.constant 0 : index
    %79 = vector.load %arg9[%c0_35, %c0_36] : memref<8x1xf32, #tpu.memory_space<vmem>>, vector<8x1xf32>
    %80 = vector.broadcast %79 : vector<8x1xf32> to vector<8x32xf32>
    %81 = arith.addf %78, %80 : vector<8x32xf32>
    %82 = arith.addf %61, %81 : vector<8x32xf32>
    %83 = arith.addf %40, %82 : vector<8x32xf32>
    %cst_37 = arith.constant 5.000000e-01 : f32
    %84 = vector.broadcast %cst_37 : f32 to vector<8x32xf32>
    %85 = arith.mulf %83, %84 : vector<8x32xf32>
    %cst_38 = arith.constant 0.000000e+00 : f32
    %86 = vector.broadcast %cst_38 : f32 to vector<8x32xf32>
    %87 = arith.cmpf ogt, %85, %86 : vector<8x32xf32>
    %cst_39 = arith.constant 1.000000e-01 : f32
    %88 = vector.broadcast %cst_39 : f32 to vector<8x32xf32>
    %89 = arith.mulf %88, %85 : vector<8x32xf32>
    %90 = arith.select %87, %85, %89 : vector<8x32xi1>, vector<8x32xf32>
    %cst_40 = arith.constant 0.000000e+00 : f32
    %91 = vector.broadcast %cst_40 : f32 to vector<8x3xf32>
    %cst_41 = arith.constant 0.000000e+00 : f32
    %92 = vector.broadcast %cst_41 : f32 to vector<8x3xf32>
    %93 = tpu.concatenate %91, %90, %92 in 1 : vector<8x3xf32>, vector<8x32xf32>, vector<8x3xf32> -> vector<8x38xf32>
    %94 = vector.extract_strided_slice %93 {offsets = [0, 0], sizes = [8, 32], strides = [1, 1]} : vector<8x38xf32> to vector<8x32xf32>
    %95 = vector.extract_strided_slice %93 {offsets = [0, 1], sizes = [8, 32], strides = [1, 1]} : vector<8x38xf32> to vector<8x32xf32>
    %96 = vector.extract_strided_slice %93 {offsets = [0, 2], sizes = [8, 32], strides = [1, 1]} : vector<8x38xf32> to vector<8x32xf32>
    %97 = vector.extract_strided_slice %93 {offsets = [0, 3], sizes = [8, 32], strides = [1, 1]} : vector<8x38xf32> to vector<8x32xf32>
    %98 = vector.extract_strided_slice %93 {offsets = [0, 4], sizes = [8, 32], strides = [1, 1]} : vector<8x38xf32> to vector<8x32xf32>
    %99 = vector.extract_strided_slice %93 {offsets = [0, 5], sizes = [8, 32], strides = [1, 1]} : vector<8x38xf32> to vector<8x32xf32>
    %100 = vector.extract_strided_slice %93 {offsets = [0, 6], sizes = [8, 32], strides = [1, 1]} : vector<8x38xf32> to vector<8x32xf32>
    %101 = tpu.concatenate %94, %95, %96, %97, %98, %99, %100 in 0 : vector<8x32xf32>, vector<8x32xf32>, vector<8x32xf32>, vector<8x32xf32>, vector<8x32xf32>, vector<8x32xf32>, vector<8x32xf32> -> vector<56x32xf32>
    %102 = arith.truncf %101 : vector<56x32xf32> to vector<56x32xbf16>
    %c0_42 = arith.constant 0 : index
    %c0_43 = arith.constant 0 : index
    %103 = vector.load %arg10[%c0_42, %c0_43] : memref<1x56xbf16, #tpu.memory_space<vmem>>, vector<1x56xbf16>
    %cst_44 = arith.constant dense<0.000000e+00> : vector<1x32xf32>
    %104 = tpu.matmul %103, %102, %cst_44 {dimension_numbers = #tpu.dot_dimension_numbers<[1], [0], [0], [1], [0, 0, 1, 1], [], []>} : vector<1x56xbf16>, vector<56x32xbf16>, vector<1x32xf32> -> vector<1x32xf32>
    %c0_45 = arith.constant 0 : index
    %c0_46 = arith.constant 0 : index
    %105 = vector.load %arg11[%c0_45, %c0_46] : memref<1x1xf32, #tpu.memory_space<vmem>>, vector<1x1xf32>
    %106 = vector.broadcast %105 : vector<1x1xf32> to vector<1x32xf32>
    %107 = arith.addf %104, %106 : vector<1x32xf32>
    %108 = math.tanh %107 : vector<1x32xf32>
    %c0_47 = arith.constant 0 : index
    %c0_48 = arith.constant 0 : index
    %c0_49 = arith.constant 0 : index
    %109 = vector.load %arg12[%c0_47, %c0_48, %c0_49] : memref<1x1x32xf32, #tpu.memory_space<vmem>>, vector<1x1x32xf32>
    %110 = vector.shape_cast %109 : vector<1x1x32xf32> to vector<1x32xf32>
    %111 = vector.shape_cast %108 : vector<1x32xf32> to vector<1x1x32xf32>
    tpu.vector_store %arg12[%c0_47, %c0_48, %c0_49], %111 {strides = array<i32>} : memref<1x1x32xf32, #tpu.memory_space<vmem>>, vector<1x1x32xf32>,
    return
  }
  func.func @transform_0(%arg0: i32) -> (i32, i32, i32) {
    %c0_i32 = arith.constant 0 : i32
    %c0_i32_0 = arith.constant 0 : i32
    %c0_i32_1 = arith.constant 0 : i32
    return %arg0, %c0_i32, %c0_i32_0 : i32, i32, i32
  }
  func.func @transform_1(%arg0: i32) -> (i32, i32) {
    %c0_i32 = arith.constant 0 : i32
    %c0_i32_0 = arith.constant 0 : i32
    %c0_i32_1 = arith.constant 0 : i32
    return %c0_i32, %c0_i32_0 : i32, i32
  }
  func.func @transform_2(%arg0: i32) -> (i32, i32) {
    %c0_i32 = arith.constant 0 : i32
    %c0_i32_0 = arith.constant 0 : i32
    %c0_i32_1 = arith.constant 0 : i32
    return %c0_i32, %c0_i32_0 : i32, i32
  }
  func.func @transform_3(%arg0: i32) -> (i32, i32) {
    %c0_i32 = arith.constant 0 : i32
    %c0_i32_0 = arith.constant 0 : i32
    %c0_i32_1 = arith.constant 0 : i32
    return %c0_i32, %c0_i32_0 : i32, i32
  }
  func.func @transform_4(%arg0: i32) -> (i32, i32) {
    %c0_i32 = arith.constant 0 : i32
    %c0_i32_0 = arith.constant 0 : i32
    %c0_i32_1 = arith.constant 0 : i32
    return %c0_i32, %c0_i32_0 : i32, i32
  }
  func.func @transform_5(%arg0: i32) -> (i32, i32) {
    %c0_i32 = arith.constant 0 : i32
    %c0_i32_0 = arith.constant 0 : i32
    %c0_i32_1 = arith.constant 0 : i32
    return %c0_i32, %c0_i32_0 : i32, i32
  }
  func.func @transform_6(%arg0: i32) -> (i32, i32) {
    %c0_i32 = arith.constant 0 : i32
    %c0_i32_0 = arith.constant 0 : i32
    %c0_i32_1 = arith.constant 0 : i32
    return %c0_i32, %c0_i32_0 : i32, i32
  }
  func.func @transform_7(%arg0: i32) -> (i32, i32) {
    %c0_i32 = arith.constant 0 : i32
    %c0_i32_0 = arith.constant 0 : i32
    %c0_i32_1 = arith.constant 0 : i32
    return %c0_i32, %c0_i32_0 : i32, i32
  }
  func.func @transform_8(%arg0: i32) -> (i32, i32) {
    %c0_i32 = arith.constant 0 : i32
    %c0_i32_0 = arith.constant 0 : i32
    %c0_i32_1 = arith.constant 0 : i32
    return %c0_i32, %c0_i32_0 : i32, i32
  }
  func.func @transform_9(%arg0: i32) -> (i32, i32) {
    %c0_i32 = arith.constant 0 : i32
    %c0_i32_0 = arith.constant 0 : i32
    %c0_i32_1 = arith.constant 0 : i32
    return %c0_i32, %c0_i32_0 : i32, i32
  }
  func.func @transform_10(%arg0: i32) -> (i32, i32) {
    %c0_i32 = arith.constant 0 : i32
    %c0_i32_0 = arith.constant 0 : i32
    %c0_i32_1 = arith.constant 0 : i32
    return %c0_i32, %c0_i32_0 : i32, i32
  }
  func.func @transform_11(%arg0: i32) -> (i32, i32, i32) {
    %c0_i32 = arith.constant 0 : i32
    %c0_i32_0 = arith.constant 0 : i32
    %c0_i32_1 = arith.constant 0 : i32
    return %arg0, %c0_i32, %c0_i32_0 : i32, i32, i32
  }
}

</mosaic_0001>

<llo_original>
// kernel: evagan_big_forward.3
$region0: #{evagan_big_forward.3}
  #allocation0 [shape = 'u32[]', space=smem, size = 0x4, offset = 0x4, fixed_abs, tag = 'smem constant byte address 0x4 - core index']
  #allocation1 [shape = 'u32[72,128]{1,0:T(1,128)}', space=vmem, size = 0x9000, scoped, tag = 'internal scratch']
  %s0 = inlined_call_operand.vmem [shape: f32[2,16,8], index: 0, kind: input, shape index: {}]
  %s1 = inlined_call_operand.vmem [shape: bf16[32,112], index: 1, kind: input, shape index: {}]
  %s2 = inlined_call_operand.vmem [shape: f32[32,1], index: 2, kind: input, shape index: {}]
  %s3 = inlined_call_operand.vmem [shape: bf16[16,64], index: 3, kind: input, shape index: {}]
  %s4 = inlined_call_operand.vmem [shape: bf16[16,64], index: 4, kind: input, shape index: {}]
  %s5 = inlined_call_operand.vmem [shape: f32[16,1], index: 5, kind: input, shape index: {}]
  %s6 = inlined_call_operand.vmem [shape: bf16[2,16,8], index: 6, kind: output, shape index: {0}]
  %s7 = inlined_call_operand.vmem [shape: bf16[2,16,8], index: 7, kind: output, shape index: {1}]
  %8 = xla_tuple %s6, %s7
  %s9 = sld [smem:[#allocation0]]
  $region65: #{evagan_big_forward.3} parent=0
    _
  %s11 = ssub.s32 1, %s9
  %s12 = scalar_select 0, %s11, %s9
  loop: start=0, step=1, limit=4
  $region2: #{evagan_big_forward.3} parent=0 // loop_pre_header
    _
  $region3: #{evagan_big_forward.3} parent=0 // loop_header
    %s14 = sphi 0, %s18
    %p15 = scmp.ge.s32.totalorder %s14, 4
    %s24 = sphi 0, %s26
    %s27 = sphi 0, %s24
    %s28 = sphi 0, %s27
    %s44 = sphi 0, %s28
    %s48 = sphi 0, %s48
    %s50 = sphi 0, %s48
    %s51 = sphi 0, %s50
    %s65 = sphi 0, %s51
    %s69 = sphi 0, %s69
    %s71 = sphi 0, %s69
    %s72 = sphi 0, %s71
    %s86 = sphi 0, %s72
    %s90 = sphi 0, %s90
    %s92 = sphi 0, %s90
    %s93 = sphi 0, %s92
    %s107 = sphi 0, %s93
    %s111 = sphi 0, %s111
    %s113 = sphi 0, %s111
    %s114 = sphi 0, %s113
    %s128 = sphi 0, %s114
    %s132 = sphi 0, %s132
    %s134 = sphi 0, %s132
    %s135 = sphi 0, %s134
    %s149 = sphi 0, %s135
    %s155 = sphi 0, %s157
    %s158 = sphi 0, %s155
    %s159 = sphi 0, %s158
    %s175 = sphi 0, %s159
    %s181 = sphi 0, %s183
    %s184 = sphi 0, %s181
    %s185 = sphi 0, %s184
    %s201 = sphi 0, %s185
  $region4: #{evagan_big_forward.3} parent=0 // loop_header_branch
    %17 = sbr.rel (%p15) target = $region8
  $region5: #{evagan_big_forward.3} parent=0 // loop_body
    %s19 = ssub.s32 %s14, 1
    %s20 = ssub.s32 %s14, 2
    %s21 = sadd.s32 %s14, 1
    %s22 = ssub.s32 %s14, %s21
    %p23 = scmp.eq.s32.totalorder %s22, 0
    %s25 = sadd.s32 %s24, 1
    %s26 = scalar_select %p23, %s24, %s25
    %p29 = pneg %p23
    %p30 = scmp.eq.s32.totalorder %s14, 1
    %p31 = por %p29, %p30
    %p32 = scmp.ne.s32.totalorder %s24, %s27
    %p33 = scmp.eq.s32.totalorder %s14, 0
    %p34 = por %p32, %p33
    %p35 = scmp.ne.s32.totalorder %s24, %s27
    %p36 = scmp.eq.s32.totalorder %s19, 1
    %p37 = por %p35, %p36
    %p38 = scmp.ne.s32.totalorder %s27, %s28
    %p39 = scmp.eq.s32.totalorder %s19, 0
    %p40 = por %p38, %p39
    %p41 = scmp.ne.s32.totalorder %s27, %s28
    %p42 = scmp.eq.s32.totalorder %s20, 1
    %p43 = por %p41, %p42
    %p45 = scmp.ne.s32.totalorder %s28, %s44
    %p46 = scmp.eq.s32.totalorder %s20, 0
    %p47 = por %p45, %p46
    %s49 = sadd.s32 %s48, 1
    %p52 = scmp.eq.s32.totalorder %s14, 1
    %p53 = scmp.ne.s32.totalorder %s48, %s50
    %p54 = scmp.eq.s32.totalorder %s14, 0
    %p55 = por %p53, %p54
    %p56 = scmp.ne.s32.totalorder %s48, %s50
    %p57 = scmp.eq.s32.totalorder %s19, 1
    %p58 = por %p56, %p57
    %p59 = scmp.ne.s32.totalorder %s50, %s51
    %p60 = scmp.eq.s32.totalorder %s19, 0
    %p61 = por %p59, %p60
    %p62 = scmp.ne.s32.totalorder %s50, %s51
    %p63 = scmp.eq.s32.totalorder %s20, 1
    %p64 = por %p62, %p63
    %p66 = scmp.ne.s32.totalorder %s51, %s65
    %p67 = scmp.eq.s32.totalorder %s20, 0
    %p68 = por %p66, %p67
    %s70 = sadd.s32 %s69, 1
    %p73 = scmp.eq.s32.totalorder %s14, 1
    %p74 = scmp.ne.s32.totalorder %s69, %s71
    %p75 = scmp.eq.s32.totalorder %s14, 0
    %p76 = por %p74, %p75
    %p77 = scmp.ne.s32.totalorder %s69, %s71
    %p78 = scmp.eq.s32.totalorder %s19, 1
    %p79 = por %p77, %p78
    %p80 = scmp.ne.s32.totalorder %s71, %s72
    %p81 = scmp.eq.s32.totalorder %s19, 0
    %p82 = por %p80, %p81
    %p83 = scmp.ne.s32.totalorder %s71, %s72
    %p84 = scmp.eq.s32.totalorder %s20, 1
    %p85 = por %p83, %p84
    %p87 = scmp.ne.s32.totalorder %s72, %s86
    %p88 = scmp.eq.s32.totalorder %s20, 0
    %p89 = por %p87, %p88
    %s91 = sadd.s32 %s90, 1
    %p94 = scmp.eq.s32.totalorder %s14, 1
    %p95 = scmp.ne.s32.totalorder %s90, %s92
    %p96 = scmp.eq.s32.totalorder %s14, 0
    %p97 = por %p95, %p96
    %p98 = scmp.ne.s32.totalorder %s90, %s92
    %p99 = scmp.eq.s32.totalorder %s19, 1
    %p100 = por %p98, %p99
    %p101 = scmp.ne.s32.totalorder %s92, %s93
    %p102 = scmp.eq.s32.totalorder %s19, 0
    %p103 = por %p101, %p102
    %p104 = scmp.ne.s32.totalorder %s92, %s93
    %p105 = scmp.eq.s32.totalorder %s20, 1
    %p106 = por %p104, %p105
    %p108 = scmp.ne.s32.totalorder %s93, %s107
    %p109 = scmp.eq.s32.totalorder %s20, 0
    %p110 = por %p108, %p109
    %s112 = sadd.s32 %s111, 1
    %p115 = scmp.eq.s32.totalorder %s14, 1
    %p116 = scmp.ne.s32.totalorder %s111, %s113
    %p117 = scmp.eq.s32.totalorder %s14, 0
    %p118 = por %p116, %p117
    %p119 = scmp.ne.s32.totalorder %s111, %s113
    %p120 = scmp.eq.s32.totalorder %s19, 1
    %p121 = por %p119, %p120
    %p122 = scmp.ne.s32.totalorder %s113, %s114
    %p123 = scmp.eq.s32.totalorder %s19, 0
    %p124 = por %p122, %p123
    %p125 = scmp.ne.s32.totalorder %s113, %s114
    %p126 = scmp.eq.s32.totalorder %s20, 1
    %p127 = por %p125, %p126
    %p129 = scmp.ne.s32.totalorder %s114, %s128
    %p130 = scmp.eq.s32.totalorder %s20, 0
    %p131 = por %p129, %p130
    %s133 = sadd.s32 %s132, 1
    %p136 = scmp.eq.s32.totalorder %s14, 1
    %p137 = scmp.ne.s32.totalorder %s132, %s134
    %p138 = scmp.eq.s32.totalorder %s14, 0
    %p139 = por %p137, %p138
    %p140 = scmp.ne.s32.totalorder %s132, %s134
    %p141 = scmp.eq.s32.totalorder %s19, 1
    %p142 = por %p140, %p141
    %p143 = scmp.ne.s32.totalorder %s134, %s135
    %p144 = scmp.eq.s32.totalorder %s19, 0
    %p145 = por %p143, %p144
    %p146 = scmp.ne.s32.totalorder %s134, %s135
    %p147 = scmp.eq.s32.totalorder %s20, 1
    %p148 = por %p146, %p147
    %p150 = scmp.ne.s32.totalorder %s135, %s149
    %p151 = scmp.eq.s32.totalorder %s20, 0
    %p152 = por %p150, %p151
    %s153 = ssub.s32 %s14, %s21
    %p154 = scmp.eq.s32.totalorder %s153, 0
    %s156 = sadd.s32 %s155, 1
    %s157 = scalar_select %p154, %s155, %s156
    %p160 = pneg %p154
    %p161 = scmp.eq.s32.totalorder %s14, 1
    %p162 = por %p160, %p161
    %p163 = scmp.ne.s32.totalorder %s155, %s158
    %p164 = scmp.eq.s32.totalorder %s14, 0
    %p165 = por %p163, %p164
    %p166 = scmp.ne.s32.totalorder %s155, %s158
    %p167 = scmp.eq.s32.totalorder %s19, 1
    %p168 = por %p166, %p167
    %p169 = scmp.ne.s32.totalorder %s158, %s159
    %p170 = scmp.eq.s32.totalorder %s19, 0
    %p171 = por %p169, %p170
    %p172 = scmp.ne.s32.totalorder %s158, %s159
    %p173 = scmp.eq.s32.totalorder %s20, 1
    %p174 = por %p172, %p173
    %p176 = scmp.ne.s32.totalorder %s159, %s175
    %p177 = scmp.eq.s32.totalorder %s20, 0
    %p178 = por %p176, %p177
    %s179 = ssub.s32 %s14, %s21
    %p180 = scmp.eq.s32.totalorder %s179, 0
    %s182 = sadd.s32 %s181, 1
    %s183 = scalar_select %p180, %s181, %s182
    %p186 = pneg %p180
    %p187 = scmp.eq.s32.totalorder %s14, 1
    %p188 = por %p186, %p187
    %p189 = scmp.ne.s32.totalorder %s181, %s184
    %p190 = scmp.eq.s32.totalorder %s14, 0
    %p191 = por %p189, %p190
    %p192 = scmp.ne.s32.totalorder %s181, %s184
    %p193 = scmp.eq.s32.totalorder %s19, 1
    %p194 = por %p192, %p193
    %p195 = scmp.ne.s32.totalorder %s184, %s185
    %p196 = scmp.eq.s32.totalorder %s19, 0
    %p197 = por %p195, %p196
    %p198 = scmp.ne.s32.totalorder %s184, %s185
    %p199 = scmp.eq.s32.totalorder %s20, 1
    %p200 = por %p198, %p199
    %p202 = scmp.ne.s32.totalorder %s185, %s201
    %p203 = scmp.eq.s32.totalorder %s20, 0
    %p204 = por %p202, %p203
    %p205 = scmp.le.s32.totalorder 1, %s14
    %p206 = scmp.lt.s32.totalorder %s14, 3
    %p207 = pnand %p205, %p206
    %p208 = pneg %p207
    // Predicated region
    $region9: #{evagan_big_forward.3} parent=5 // pred_check
      _
    $region10: #{evagan_big_forward.3} parent=5 // pred_check_branch
      %210 = sbr.rel (%p207) target = $region12
    $region11: #{evagan_big_forward.3} parent=5 // pred_region
      %s211 = ssub.s32 %s14, 1
      // Predicated region
      $region13: #{evagan_big_forward.3} parent=11 // pred_check
        %p212 = pneg %p61
      $region14: #{evagan_big_forward.3} parent=11 // pred_check_branch
        %214 = sbr.rel (%p212) target = $region16
      $region15: #{evagan_big_forward.3} parent=11 // pred_region
        _
      $region16: #{evagan_big_forward.3} parent=11 // pred_fallthru
        _
      // Predicated region
      $region17: #{evagan_big_forward.3} parent=11 // pred_check
        %p215 = pneg %p82
      $region18: #{evagan_big_forward.3} parent=11 // pred_check_branch
        %217 = sbr.rel (%p215) target = $region20
      $region19: #{evagan_big_forward.3} parent=11 // pred_region
        _
      $region20: #{evagan_big_forward.3} parent=11 // pred_fallthru
        _
      // Predicated region
      $region21: #{evagan_big_forward.3} parent=11 // pred_check
        %p218 = pneg %p103
      $region22: #{evagan_big_forward.3} parent=11 // pred_check_branch
        %220 = sbr.rel (%p218) target = $region24
      $region23: #{evagan_big_forward.3} parent=11 // pred_region
        _
      $region24: #{evagan_big_forward.3} parent=11 // pred_fallthru
        _
      // Predicated region
      $region25: #{evagan_big_forward.3} parent=11 // pred_check
        %p221 = pneg %p124
      $region26: #{evagan_big_forward.3} parent=11 // pred_check_branch
        %223 = sbr.rel (%p221) target = $region28
      $region27: #{evagan_big_forward.3} parent=11 // pred_region
        _
      $region28: #{evagan_big_forward.3} parent=11 // pred_fallthru
        _
      // Predicated region
      $region29: #{evagan_big_forward.3} parent=11 // pred_check
        %p224 = pneg %p145
      $region30: #{evagan_big_forward.3} parent=11 // pred_check_branch
        %226 = sbr.rel (%p224) target = $region32
      $region31: #{evagan_big_forward.3} parent=11 // pred_region
        _
      $region32: #{evagan_big_forward.3} parent=11 // pred_fallthru
        _
    $region12: #{evagan_big_forward.3} parent=5 // pred_fallthru
      _
    %p227 = scmp.lt.s32.totalorder %s14, 2
    // Predicated region
    $region33: #{evagan_big_forward.3} parent=5 // pred_check
      %p228 = pneg %p227
    $region34: #{evagan_big_forward.3} parent=5 // pred_check_branch
      %230 = sbr.rel (%p228) target = $region36
    $region35: #{evagan_big_forward.3} parent=5 // pred_region
      // Predicated region
      $region37: #{evagan_big_forward.3} parent=35 // pred_check
        %p231 = pneg %p34
      $region38: #{evagan_big_forward.3} parent=35 // pred_check_branch
        %233 = sbr.rel (%p231) target = $region40
      $region39: #{evagan_big_forward.3} parent=35 // pred_region
        %p234 = scmp.lt.s32.totalorder %s14, 1
        %s235 = scalar_select %p234, %s14, 1
        %s236 = smul.addr %s235, 2
        %s237 = smul.addr %s236, 8
        %s238 = scalar_lea.vmem %s0, %s237
      $region40: #{evagan_big_forward.3} parent=35 // pred_fallthru
        _
    $region36: #{evagan_big_forward.3} parent=5 // pred_fallthru
      _
    %p239 = scmp.le.s32.totalorder 1, %s14
    %p240 = scmp.lt.s32.totalorder %s14, 3
    %p241 = pnand %p239, %p240
    %p242 = pneg %p241
    // Predicated region
    $region41: #{evagan_big_forward.3} parent=5 // pred_check
      _
    $region42: #{evagan_big_forward.3} parent=5 // pred_check_branch
      %244 = sbr.rel (%p241) target = $region44
    $region43: #{evagan_big_forward.3} parent=5 // pred_region
      %s245 = ssub.s32 %s14, 1
      %p246 = scmp.lt.s32.totalorder %s19, 1
      %s247 = scalar_select %p246, %s19, 1
      %s248 = smul.addr %s247, 2
      %s249 = smul.addr %s248, 8
      %s250 = scalar_lea.vmem %s0, %s249
      %p251 = pneg %p40
      %p252 = pneg %p37
      %p253 = pneg %p61
      %p254 = pneg %p58
      %p255 = pneg %p82
      %p256 = pneg %p79
      %p257 = pneg %p103
      %p258 = pneg %p100
      %p259 = pneg %p124
      %p260 = pneg %p121
      %p261 = pneg %p145
      %p262 = pneg %p142
      %p263 = pneg %p171
      %p264 = pneg %p168
      %p265 = scmp.lt.s32.totalorder %s19, 1
      %s266 = scalar_select %p265, %s19, 1
      %s267 = smul.addr %s266, 2
      %s268 = smul.addr %s267, 4
      %s269 = scalar_lea.vmem %s6, %s268
      %p270 = pneg %p197
      %p271 = pneg %p194
      %p272 = scmp.lt.s32.totalorder %s19, 1
      %s273 = scalar_select %p272, %s19, 1
      %s274 = smul.addr %s273, 2
      %s275 = smul.addr %s274, 4
      %s276 = scalar_lea.vmem %s7, %s275
      %p277 = scmp.lt.s32.totalorder %s19, 1
      %s278 = scalar_select %p277, %s19, 1
      %s279 = smul.addr %s278, 2
      %s280 = smul.addr %s279, 8
      %s281 = scalar_lea.vmem %s0, %s280
      %p282 = scmp.lt.s32.totalorder %s19, 1
      %s283 = scalar_select %p282, %s19, 1
      %s284 = smul.addr %s283, 2
      %s285 = smul.addr %s284, 4
      %s286 = scalar_lea.vmem %s6, %s285
      %p287 = scmp.lt.s32.totalorder %s19, 1
      %s288 = scalar_select %p287, %s19, 1
      %s289 = smul.addr %s288, 2
      %s290 = smul.addr %s289, 4
      %s291 = scalar_lea.vmem %s7, %s290
      %v293 = vld [vmem:[%s281] sm:$0xff]
      %v294 = vld [vmem:[%s281 + $0x8] sm:$0xff]
      %297 = vrot.lane.b32.xlu0 %v293, 3
      %v298 = vpop.permute.xlu0 %297
      %299 = vrot.lane.b32.xlu0 %v294, 3
      %v300 = vpop.permute.xlu0 %299
      %vm303 = vcmask 23552
      %v304 = vsel %vm303, 0.0, %v298
      %v305 = vsel %vm303, 0.0, %v300
      %vm306 = vcmask 89088
      %v307 = vsel %vm306, %v304, 0.0
      %v308 = vsel %vm306, %v305, 0.0
      %311 = vrot.lane.b32.xlu0 %v307, 127
      %v312 = vpop.permute.xlu0 %311
      %313 = vrot.lane.b32.xlu0 %v308, 127
      %v314 = vpop.permute.xlu0 %313
      %317 = vrot.lane.b32.xlu0 %v307, 126
      %v318 = vpop.permute.xlu0 %317
      %319 = vrot.lane.b32.xlu0 %v308, 126
      %v320 = vpop.permute.xlu0 %319
      %323 = vrot.lane.b32.xlu0 %v307, 125
      %v324 = vpop.permute.xlu0 %323
      %325 = vrot.lane.b32.xlu0 %v308, 125
      %v326 = vpop.permute.xlu0 %325
      %329 = vrot.lane.b32.xlu0 %v307, 124
      %v330 = vpop.permute.xlu0 %329
      %331 = vrot.lane.b32.xlu0 %v308, 124
      %v332 = vpop.permute.xlu0 %331
      %335 = vrot.lane.b32.xlu0 %v307, 123
      %v336 = vpop.permute.xlu0 %335
      %337 = vrot.lane.b32.xlu0 %v308, 123
      %v338 = vpop.permute.xlu0 %337
      %341 = vrot.lane.b32.xlu0 %v307, 122
      %v342 = vpop.permute.xlu0 %341
      %343 = vrot.lane.b32.xlu0 %v308, 122
      %v344 = vpop.permute.xlu0 %343
      %v347 = vpack.c.bf16 %v308, %v307
      %v348 = vpack.c.bf16 %v314, %v312
      %v349 = vpack.c.bf16 %v320, %v318
      %v350 = vpack.c.bf16 %v326, %v324
      %v351 = vpack.c.bf16 %v332, %v330
      %v352 = vpack.c.bf16 %v338, %v336
      %v353 = vpack.c.bf16 %v344, %v342
      %v354 = vld [vmem:[%s1] sm:$0xf]
      %v355 = vld [vmem:[%s1 + $0x4] sm:$0xf]
      %v356 = vld [vmem:[%s1 + $0x8] sm:$0xf]
      %v357 = vld [vmem:[%s1 + $0xc] sm:$0xf]
      %v358 = vld [vmem:[%s2] sm:$0xff]
      %v359 = vld [vmem:[%s2 + $0x8] sm:$0xff]
      %v360 = vld [vmem:[%s2 + $0x10] sm:$0xff]
      %v361 = vld [vmem:[%s2 + $0x18] sm:$0xff]
      %363 = vset.pattern.permute.xlu0 0
      %364 = vperm.xlu0 %363, %v358
      %v365 = vpop.permute.xlu0 %364
      %368 = vset.pattern.permute.xlu0 0
      %369 = vperm.xlu0 %368, %v359
      %v370 = vpop.permute.xlu0 %369
      %373 = vset.pattern.permute.xlu0 0
      %374 = vperm.xlu0 %373, %v360
      %v375 = vpop.permute.xlu0 %374
      %378 = vset.pattern.permute.xlu0 0
      %379 = vperm.xlu0 %378, %v361
      %v380 = vpop.permute.xlu0 %379
      %v386 = vunpack.c.l.b16 %v354
      %v387 = vunpack.c.l.b16 %v355
      %v388 = vunpack.c.l.b16 %v356
      %v389 = vunpack.c.l.b16 %v357
      %v390 = vpack.c.b16 %v387, %v386
      %v391 = vpack.c.b16 %v389, %v388
      %vm392 = vcmask 916480
      %v394 = vsel %vm392, %v390, 0
      %v397 = vsel %vm392, %v391, 0
      %399 = vmatpush.bf16.msra.mxu0 0
      %400 = vmatpush.bf16.msra.mxu0 %v353
      %401 = vmatpush.bf16.msra.mxu0 %v352
      %402 = vmatpush.bf16.msra.mxu0 %v351
      %403 = vmatpush.bf16.msra.mxu0 %v350
      %404 = vmatpush.bf16.msra.mxu0 %v349
      %405 = vmatpush.bf16.msra.mxu0 %v348
      %406 = vmatpush.bf16.msra.mxu0 %v347
      %407 = vmatmul.bf16.gmra.mxu0 %v394
      %v408 = vpop.f32.mrf.mxu0
      %v409 = vadd.f32 %v365, %v408
      %v410 = vpop.f32.mrf.mxu0
      %v411 = vadd.f32 %v370, %v410
      %412 = vmatmul.bf16.gmra.mxu0 %v397
      %v413 = vpop.f32.mrf.mxu0
      %v414 = vadd.f32 %v375, %v413
      %v415 = vpop.f32.mrf.mxu0
      %v416 = vadd.f32 %v380, %v415
      %417 = vdwg.mxu0
      %vm418 = vcmp.gt.f32.partialorder %v409, 0.0
      %vm419 = vcmp.gt.f32.partialorder %v411, 0.0
      %vm420 = vcmp.gt.f32.partialorder %v414, 0.0
      %vm421 = vcmp.gt.f32.partialorder %v416, 0.0
      %v422 = vmul.f32 %v409, 0.1
      %v423 = vmul.f32 %v411, 0.1
      %v424 = vmul.f32 %v414, 0.1
      %v425 = vmul.f32 %v416, 0.1
      %v426 = vsel %vm418, %v409, %v422
      %v427 = vsel %vm419, %v411, %v423
      %v428 = vsel %vm420, %v414, %v424
      %v429 = vsel %vm421, %v416, %v425
      %434 = vrot.lane.b32.xlu0 %v426, 1
      %v435 = vpop.permute.xlu0 %434
      %436 = vrot.lane.b32.xlu0 %v427, 1
      %v437 = vpop.permute.xlu0 %436
      %438 = vrot.lane.b32.xlu0 %v428, 1
      %v439 = vpop.permute.xlu0 %438
      %440 = vrot.lane.b32.xlu0 %v429, 1
      %v441 = vpop.permute.xlu0 %440
      %vm446 = vcmask 7168
      %v447 = vsel %vm446, 0.0, %v435
      %v448 = vsel %vm446, 0.0, %v437
      %v449 = vsel %vm446, 0.0, %v439
      %v450 = vsel %vm446, 0.0, %v441
      %vm451 = vcmask 72704
      %v452 = vsel %vm451, %v447, 0.0
      %v453 = vsel %vm451, %v448, 0.0
      %v454 = vsel %vm451, %v449, 0.0
      %v455 = vsel %vm451, %v450, 0.0
      %460 = vrot.lane.b32.xlu0 %v452, 127
      %v461 = vpop.permute.xlu0 %460
      %462 = vrot.lane.b32.xlu0 %v453, 127
      %v463 = vpop.permute.xlu0 %462
      %464 = vrot.lane.b32.xlu0 %v454, 127
      %v465 = vpop.permute.xlu0 %464
      %466 = vrot.lane.b32.xlu0 %v455, 127
      %v467 = vpop.permute.xlu0 %466
      %v472 = vpack.c.bf16 %v453, %v452
      %v473 = vpack.c.bf16 %v455, %v454
      %v474 = vpack.c.bf16 %v463, %v461
      %v475 = vpack.c.bf16 %v467, %v465
      %v476 = vld [vmem:[%s3] sm:$0xf]
      %v477 = vld [vmem:[%s3 + $0x4] sm:$0xf]
      %v478 = vld [vmem:[%s5] sm:$0xff]
      %v479 = vld [vmem:[%s5 + $0x8] sm:$0xff]
      %481 = vset.pattern.permute.xlu0 0
      %482 = vperm.xlu0 %481, %v478
      %v483 = vpop.permute.xlu0 %482
      %486 = vset.pattern.permute.xlu0 0
      %487 = vperm.xlu0 %486, %v479
      %v488 = vpop.permute.xlu0 %487
      %v492 = vunpack.c.l.b16 %v476
      %v493 = vunpack.c.l.b16 %v477
      %v494 = vpack.c.b16 %v493, %v492
      %vm495 = vcmask 523264
      %v497 = vsel %vm495, %v494, 0
      %499 = vmatpush.bf16.msra.mxu0 0
      %500 = vmatpush.bf16.msra.mxu0 0
      %501 = vmatpush.bf16.msra.mxu0 0
      %502 = vmatpush.bf16.msra.mxu0 0
      %503 = vmatpush.bf16.msra.mxu0 %v475
      %504 = vmatpush.bf16.msra.mxu0 %v474
      %505 = vmatpush.bf16.msra.mxu0 %v473
      %506 = vmatpush.bf16.msra.mxu0 %v472
      %507 = vmatmul.bf16.gmra.mxu0 %v497
      %v508 = vpop.f32.mrf.mxu0
      %v509 = vadd.f32 %v483, %v508
      %v510 = vpop.f32.mrf.mxu0
      %v511 = vadd.f32 %v488, %v510
      %512 = vdwg.mxu0
      %v513 = vld [vmem:[%s4] sm:$0xf]
      %v514 = vld [vmem:[%s4 + $0x4] sm:$0xf]
      %v517 = vunpack.c.l.b16 %v513
      %v518 = vunpack.c.l.b16 %v514
      %v519 = vpack.c.b16 %v518, %v517
      %524 = vrot.lane.b32.xlu0 %v472, 127
      %v525 = vpop.permute.xlu0 %524
      %526 = vrot.lane.b32.xlu0 %v473, 127
      %v527 = vpop.permute.xlu0 %526
      %528 = vrot.lane.b32.xlu0 %v474, 127
      %v529 = vpop.permute.xlu0 %528
      %530 = vrot.lane.b32.xlu0 %v475, 127
      %v531 = vpop.permute.xlu0 %530
      %v537 = vsel %vm495, %v519, 0
      %539 = vmatpush.bf16.msra.mxu0 0
      %540 = vmatpush.bf16.msra.mxu0 0
      %541 = vmatpush.bf16.msra.mxu0 0
      %542 = vmatpush.bf16.msra.mxu0 0
      %543 = vmatpush.bf16.msra.mxu0 %v531
      %544 = vmatpush.bf16.msra.mxu0 %v529
      %545 = vmatpush.bf16.msra.mxu0 %v527
      %546 = vmatpush.bf16.msra.mxu0 %v525
      %547 = vmatmul.bf16.gmra.mxu0 %v537
      %v548 = vpop.f32.mrf.mxu0
      %v549 = vadd.f32 %v483, %v548
      %v550 = vpop.f32.mrf.mxu0
      %v551 = vadd.f32 %v488, %v550
      %552 = vdwg.mxu0
      %v553 = vpack.c.bf16 %v509, %v509
      %v554 = vpack.c.bf16 %v511, %v511
      %vm555 = vcmask 60416
      %556 = vst.msk [vmem:[%s286] sm:$0xf] %vm555, %v553
      %557 = vst.msk [vmem:[%s286 + $0x4] sm:$0xf] %vm555, %v554
      %v558 = vpack.c.bf16 %v549, %v549
      %v559 = vpack.c.bf16 %v551, %v551
      %560 = vst.msk [vmem:[%s291] sm:$0xf] %vm555, %v558
      %561 = vst.msk [vmem:[%s291 + $0x4] sm:$0xf] %vm555, %v559
      %p562 = scmp.lt.s32.totalorder %s19, 1
      %s563 = scalar_select %p562, %s19, 1
      %s564 = smul.addr %s563, 2
      %s565 = smul.addr %s564, 4
      %s566 = scalar_lea.vmem %s6, %s565
      %p567 = scmp.lt.s32.totalorder %s19, 1
      %s568 = scalar_select %p567, %s19, 1
      %s569 = smul.addr %s568, 2
      %s570 = smul.addr %s569, 4
      %s571 = scalar_lea.vmem %s7, %s570
      // Predicated region
      $region45: #{evagan_big_forward.3} parent=43 // pred_check
        %p572 = pneg %p168
      $region46: #{evagan_big_forward.3} parent=43 // pred_check_branch
        %574 = sbr.rel (%p572) target = $region48
      $region47: #{evagan_big_forward.3} parent=43 // pred_region
        _
      $region48: #{evagan_big_forward.3} parent=43 // pred_fallthru
        _
      // Predicated region
      $region49: #{evagan_big_forward.3} parent=43 // pred_check
        %p575 = pneg %p194
      $region50: #{evagan_big_forward.3} parent=43 // pred_check_branch
        %577 = sbr.rel (%p575) target = $region52
      $region51: #{evagan_big_forward.3} parent=43 // pred_region
        _
      $region52: #{evagan_big_forward.3} parent=43 // pred_fallthru
        _
    $region44: #{evagan_big_forward.3} parent=5 // pred_fallthru
      _
    %p578 = scmp.le.s32.totalorder 2, %s14
    // Predicated region
    $region53: #{evagan_big_forward.3} parent=5 // pred_check
      %p579 = pneg %p578
    $region54: #{evagan_big_forward.3} parent=5 // pred_check_branch
      %581 = sbr.rel (%p579) target = $region56
    $region55: #{evagan_big_forward.3} parent=5 // pred_region
      %s582 = ssub.s32 %s14, 2
      // Predicated region
      $region57: #{evagan_big_forward.3} parent=55 // pred_check
        %p583 = pneg %p174
      $region58: #{evagan_big_forward.3} parent=55 // pred_check_branch
        %585 = sbr.rel (%p583) target = $region60
      $region59: #{evagan_big_forward.3} parent=55 // pred_region
        %p586 = scmp.lt.s32.totalorder %s20, 1
        %s587 = scalar_select %p586, %s20, 1
        %s588 = smul.addr %s587, 2
        %s589 = smul.addr %s588, 4
        %s590 = scalar_lea.vmem %s6, %s589
      $region60: #{evagan_big_forward.3} parent=55 // pred_fallthru
        _
      // Predicated region
      $region61: #{evagan_big_forward.3} parent=55 // pred_check
        %p591 = pneg %p200
      $region62: #{evagan_big_forward.3} parent=55 // pred_check_branch
        %593 = sbr.rel (%p591) target = $region64
      $region63: #{evagan_big_forward.3} parent=55 // pred_region
        %p594 = scmp.lt.s32.totalorder %s20, 1
        %s595 = scalar_select %p594, %s20, 1
        %s596 = smul.addr %s595, 2
        %s597 = smul.addr %s596, 4
        %s598 = scalar_lea.vmem %s7, %s597
      $region64: #{evagan_big_forward.3} parent=55 // pred_fallthru
        _
    $region56: #{evagan_big_forward.3} parent=5 // pred_fallthru
      _
  $region6: #{evagan_big_forward.3} parent=0 // loop_footer
    %s18 = sadd.s32 1, %s14
  $region7: #{evagan_big_forward.3} parent=0 // loop_footer_branch
    %13 = sbr.rel target = $region3
  $region8: #{evagan_big_forward.3} parent=0 // loop_exit
    _

// kernel: evagan_big_forward.5
$region0: #{evagan_big_forward.5}
  #allocation0 [shape = 'u32[]', space=smem, size = 0x4, offset = 0x4, fixed_abs, tag = 'smem constant byte address 0x4 - core index']
  #allocation1 [shape = 'u32[72,128]{1,0:T(1,128)}', space=vmem, size = 0x9000, scoped, tag = 'internal scratch']
  #allocation2 [shape = 'f32[1,1]{1,0:T(1,128)S(1)}', space=vmem, size = 0x200, scoped, tag = 'scoped memory for evagan_big_forward.5']
  %s0 = inlined_call_operand.vmem [shape: bf16[2,8,32], index: 0, kind: input, shape index: {}]
  %s1 = inlined_call_operand.vmem [shape: bf16[8,24], index: 1, kind: input, shape index: {}]
  %s2 = inlined_call_operand.vmem [shape: f32[8,1], index: 2, kind: input, shape index: {}]
  %s3 = inlined_call_operand.vmem [shape: bf16[8,24], index: 3, kind: input, shape index: {}]
  %s4 = inlined_call_operand.vmem [shape: f32[8,1], index: 4, kind: input, shape index: {}]
  %s5 = inlined_call_operand.vmem [shape: bf16[8,40], index: 5, kind: input, shape index: {}]
  %s6 = inlined_call_operand.vmem [shape: f32[8,1], index: 6, kind: input, shape index: {}]
  %s7 = inlined_call_operand.vmem [shape: bf16[8,40], index: 7, kind: input, shape index: {}]
  %s8 = inlined_call_operand.vmem [shape: f32[8,1], index: 8, kind: input, shape index: {}]
  %s9 = inlined_call_operand.vmem [shape: bf16[1,56], index: 9, kind: input, shape index: {}]
  %s10 = inlined_call_operand.<no memory space> [shape: f32[1,1], index: 10, kind: input, shape index: {}]
  %s11 = inlined_call_operand.hbm [shape: f32[2,1,32], index: 11, kind: output, shape index: {}]
  %s12 = sld [smem:[#allocation0]]
  $region77: #{evagan_big_forward.5} parent=0
    _
  %s14 = ssub.s32 1, %s12
  %s15 = scalar_select 0, %s14, %s12
  %v16 = vstv %s10
  %17 = vst [vmem:[#allocation2] sm:$0x1] %v16
  $region1: #{evagan_big_forward.5} parent=0
    #allocation3 [shape = 'u8[1024]{0}', space=vmem, size = 0x400, scoped, tag = 'output window, operand 0']
    #allocation4 [shape = 's32[2]{0}', space=sflag, size = 0x8, scoped, tag = 'scoped memory for evagan_big_forward.5']
    %18 = vsyncpa [#allocation4], 0
    %s19 = scalar_lea.sflag [#allocation4], 1
    %20 = vsyncpa %s19, 0
    loop: start=0, step=1, limit=4
    $region2: #{evagan_big_forward.5} parent=1 // loop_pre_header
      _
    $region3: #{evagan_big_forward.5} parent=1 // loop_header
      %s22 = sphi 0, %s26
      %p23 = scmp.ge.s32.totalorder %s22, 4
      %s32 = sphi 0, %s34
      %s35 = sphi 0, %s32
      %s36 = sphi 0, %s35
      %s52 = sphi 0, %s36
      %s56 = sphi 0, %s56
      %s58 = sphi 0, %s56
      %s59 = sphi 0, %s58
      %s73 = sphi 0, %s59
      %s77 = sphi 0, %s77
      %s79 = sphi 0, %s77
      %s80 = sphi 0, %s79
      %s94 = sphi 0, %s80
      %s98 = sphi 0, %s98
      %s100 = sphi 0, %s98
      %s101 = sphi 0, %s100
      %s115 = sphi 0, %s101
      %s119 = sphi 0, %s119
      %s121 = sphi 0, %s119
      %s122 = sphi 0, %s121
      %s136 = sphi 0, %s122
      %s140 = sphi 0, %s140
      %s142 = sphi 0, %s140
      %s143 = sphi 0, %s142
      %s157 = sphi 0, %s143
      %s161 = sphi 0, %s161
      %s163 = sphi 0, %s161
      %s164 = sphi 0, %s163
      %s178 = sphi 0, %s164
      %s182 = sphi 0, %s182
      %s184 = sphi 0, %s182
      %s185 = sphi 0, %s184
      %s199 = sphi 0, %s185
      %s203 = sphi 0, %s203
      %s205 = sphi 0, %s203
      %s206 = sphi 0, %s205
      %s220 = sphi 0, %s206
      %s224 = sphi 0, %s224
      %s226 = sphi 0, %s224
      %s227 = sphi 0, %s226
      %s241 = sphi 0, %s227
      %s245 = sphi 0, %s245
      %s247 = sphi 0, %s245
      %s248 = sphi 0, %s247
      %s262 = sphi 0, %s248
      %s268 = sphi 0, %s270
      %s271 = sphi 0, %s268
      %s272 = sphi 0, %s271
      %s288 = sphi 0, %s272
    $region4: #{evagan_big_forward.5} parent=1 // loop_header_branch
      %25 = sbr.rel (%p23) target = $region8
    $region5: #{evagan_big_forward.5} parent=1 // loop_body
      %s27 = ssub.s32 %s22, 1
      %s28 = ssub.s32 %s22, 2
      %s29 = sadd.s32 %s22, 1
      %s30 = ssub.s32 %s22, %s29
      %p31 = scmp.eq.s32.totalorder %s30, 0
      %s33 = sadd.s32 %s32, 1
      %s34 = scalar_select %p31, %s32, %s33
      %p37 = pneg %p31
      %p38 = scmp.eq.s32.totalorder %s22, 1
      %p39 = por %p37, %p38
      %p40 = scmp.ne.s32.totalorder %s32, %s35
      %p41 = scmp.eq.s32.totalorder %s22, 0
      %p42 = por %p40, %p41
      %p43 = scmp.ne.s32.totalorder %s32, %s35
      %p44 = scmp.eq.s32.totalorder %s27, 1
      %p45 = por %p43, %p44
      %p46 = scmp.ne.s32.totalorder %s35, %s36
      %p47 = scmp.eq.s32.totalorder %s27, 0
      %p48 = por %p46, %p47
      %p49 = scmp.ne.s32.totalorder %s35, %s36
      %p50 = scmp.eq.s32.totalorder %s28, 1
      %p51 = por %p49, %p50
      %p53 = scmp.ne.s32.totalorder %s36, %s52
      %p54 = scmp.eq.s32.totalorder %s28, 0
      %p55 = por %p53, %p54
      %s57 = sadd.s32 %s56, 1
      %p60 = scmp.eq.s32.totalorder %s22, 1
      %p61 = scmp.ne.s32.totalorder %s56, %s58
      %p62 = scmp.eq.s32.totalorder %s22, 0
      %p63 = por %p61, %p62
      %p64 = scmp.ne.s32.totalorder %s56, %s58
      %p65 = scmp.eq.s32.totalorder %s27, 1
      %p66 = por %p64, %p65
      %p67 = scmp.ne.s32.totalorder %s58, %s59
      %p68 = scmp.eq.s32.totalorder %s27, 0
      %p69 = por %p67, %p68
      %p70 = scmp.ne.s32.totalorder %s58, %s59
      %p71 = scmp.eq.s32.totalorder %s28, 1
      %p72 = por %p70, %p71
      %p74 = scmp.ne.s32.totalorder %s59, %s73
      %p75 = scmp.eq.s32.totalorder %s28, 0
      %p76 = por %p74, %p75
      %s78 = sadd.s32 %s77, 1
      %p81 = scmp.eq.s32.totalorder %s22, 1
      %p82 = scmp.ne.s32.totalorder %s77, %s79
      %p83 = scmp.eq.s32.totalorder %s22, 0
      %p84 = por %p82, %p83
      %p85 = scmp.ne.s32.totalorder %s77, %s79
      %p86 = scmp.eq.s32.totalorder %s27, 1
      %p87 = por %p85, %p86
      %p88 = scmp.ne.s32.totalorder %s79, %s80
      %p89 = scmp.eq.s32.totalorder %s27, 0
      %p90 = por %p88, %p89
      %p91 = scmp.ne.s32.totalorder %s79, %s80
      %p92 = scmp.eq.s32.totalorder %s28, 1
      %p93 = por %p91, %p92
      %p95 = scmp.ne.s32.totalorder %s80, %s94
      %p96 = scmp.eq.s32.totalorder %s28, 0
      %p97 = por %p95, %p96
      %s99 = sadd.s32 %s98, 1
      %p102 = scmp.eq.s32.totalorder %s22, 1
      %p103 = scmp.ne.s32.totalorder %s98, %s100
      %p104 = scmp.eq.s32.totalorder %s22, 0
      %p105 = por %p103, %p104
      %p106 = scmp.ne.s32.totalorder %s98, %s100
      %p107 = scmp.eq.s32.totalorder %s27, 1
      %p108 = por %p106, %p107
      %p109 = scmp.ne.s32.totalorder %s100, %s101
      %p110 = scmp.eq.s32.totalorder %s27, 0
      %p111 = por %p109, %p110
      %p112 = scmp.ne.s32.totalorder %s100, %s101
      %p113 = scmp.eq.s32.totalorder %s28, 1
      %p114 = por %p112, %p113
      %p116 = scmp.ne.s32.totalorder %s101, %s115
      %p117 = scmp.eq.s32.totalorder %s28, 0
      %p118 = por %p116, %p117
      %s120 = sadd.s32 %s119, 1
      %p123 = scmp.eq.s32.totalorder %s22, 1
      %p124 = scmp.ne.s32.totalorder %s119, %s121
      %p125 = scmp.eq.s32.totalorder %s22, 0
      %p126 = por %p124, %p125
      %p127 = scmp.ne.s32.totalorder %s119, %s121
      %p128 = scmp.eq.s32.totalorder %s27, 1
      %p129 = por %p127, %p128
      %p130 = scmp.ne.s32.totalorder %s121, %s122
      %p131 = scmp.eq.s32.totalorder %s27, 0
      %p132 = por %p130, %p131
      %p133 = scmp.ne.s32.totalorder %s121, %s122
      %p134 = scmp.eq.s32.totalorder %s28, 1
      %p135 = por %p133, %p134
      %p137 = scmp.ne.s32.totalorder %s122, %s136
      %p138 = scmp.eq.s32.totalorder %s28, 0
      %p139 = por %p137, %p138
      %s141 = sadd.s32 %s140, 1
      %p144 = scmp.eq.s32.totalorder %s22, 1
      %p145 = scmp.ne.s32.totalorder %s140, %s142
      %p146 = scmp.eq.s32.totalorder %s22, 0
      %p147 = por %p145, %p146
      %p148 = scmp.ne.s32.totalorder %s140, %s142
      %p149 = scmp.eq.s32.totalorder %s27, 1
      %p150 = por %p148, %p149
      %p151 = scmp.ne.s32.totalorder %s142, %s143
      %p152 = scmp.eq.s32.totalorder %s27, 0
      %p153 = por %p151, %p152
      %p154 = scmp.ne.s32.totalorder %s142, %s143
      %p155 = scmp.eq.s32.totalorder %s28, 1
      %p156 = por %p154, %p155
      %p158 = scmp.ne.s32.totalorder %s143, %s157
      %p159 = scmp.eq.s32.totalorder %s28, 0
      %p160 = por %p158, %p159
      %s162 = sadd.s32 %s161, 1
      %p165 = scmp.eq.s32.totalorder %s22, 1
      %p166 = scmp.ne.s32.totalorder %s161, %s163
      %p167 = scmp.eq.s32.totalorder %s22, 0
      %p168 = por %p166, %p167
      %p169 = scmp.ne.s32.totalorder %s161, %s163
      %p170 = scmp.eq.s32.totalorder %s27, 1
      %p171 = por %p169, %p170
      %p172 = scmp.ne.s32.totalorder %s163, %s164
      %p173 = scmp.eq.s32.totalorder %s27, 0
      %p174 = por %p172, %p173
      %p175 = scmp.ne.s32.totalorder %s163, %s164
      %p176 = scmp.eq.s32.totalorder %s28, 1
      %p177 = por %p175, %p176
      %p179 = scmp.ne.s32.totalorder %s164, %s178
      %p180 = scmp.eq.s32.totalorder %s28, 0
      %p181 = por %p179, %p180
      %s183 = sadd.s32 %s182, 1
      %p186 = scmp.eq.s32.totalorder %s22, 1
      %p187 = scmp.ne.s32.totalorder %s182, %s184
      %p188 = scmp.eq.s32.totalorder %s22, 0
      %p189 = por %p187, %p188
      %p190 = scmp.ne.s32.totalorder %s182, %s184
      %p191 = scmp.eq.s32.totalorder %s27, 1
      %p192 = por %p190, %p191
      %p193 = scmp.ne.s32.totalorder %s184, %s185
      %p194 = scmp.eq.s32.totalorder %s27, 0
      %p195 = por %p193, %p194
      %p196 = scmp.ne.s32.totalorder %s184, %s185
      %p197 = scmp.eq.s32.totalorder %s28, 1
      %p198 = por %p196, %p197
      %p200 = scmp.ne.s32.totalorder %s185, %s199
      %p201 = scmp.eq.s32.totalorder %s28, 0
      %p202 = por %p200, %p201
      %s204 = sadd.s32 %s203, 1
      %p207 = scmp.eq.s32.totalorder %s22, 1
      %p208 = scmp.ne.s32.totalorder %s203, %s205
      %p209 = scmp.eq.s32.totalorder %s22, 0
      %p210 = por %p208, %p209
      %p211 = scmp.ne.s32.totalorder %s203, %s205
      %p212 = scmp.eq.s32.totalorder %s27, 1
      %p213 = por %p211, %p212
      %p214 = scmp.ne.s32.totalorder %s205, %s206
      %p215 = scmp.eq.s32.totalorder %s27, 0
      %p216 = por %p214, %p215
      %p217 = scmp.ne.s32.totalorder %s205, %s206
      %p218 = scmp.eq.s32.totalorder %s28, 1
      %p219 = por %p217, %p218
      %p221 = scmp.ne.s32.totalorder %s206, %s220
      %p222 = scmp.eq.s32.totalorder %s28, 0
      %p223 = por %p221, %p222
      %s225 = sadd.s32 %s224, 1
      %p228 = scmp.eq.s32.totalorder %s22, 1
      %p229 = scmp.ne.s32.totalorder %s224, %s226
      %p230 = scmp.eq.s32.totalorder %s22, 0
      %p231 = por %p229, %p230
      %p232 = scmp.ne.s32.totalorder %s224, %s226
      %p233 = scmp.eq.s32.totalorder %s27, 1
      %p234 = por %p232, %p233
      %p235 = scmp.ne.s32.totalorder %s226, %s227
      %p236 = scmp.eq.s32.totalorder %s27, 0
      %p237 = por %p235, %p236
      %p238 = scmp.ne.s32.totalorder %s226, %s227
      %p239 = scmp.eq.s32.totalorder %s28, 1
      %p240 = por %p238, %p239
      %p242 = scmp.ne.s32.totalorder %s227, %s241
      %p243 = scmp.eq.s32.totalorder %s28, 0
      %p244 = por %p242, %p243
      %s246 = sadd.s32 %s245, 1
      %p249 = scmp.eq.s32.totalorder %s22, 1
      %p250 = scmp.ne.s32.totalorder %s245, %s247
      %p251 = scmp.eq.s32.totalorder %s22, 0
      %p252 = por %p250, %p251
      %p253 = scmp.ne.s32.totalorder %s245, %s247
      %p254 = scmp.eq.s32.totalorder %s27, 1
      %p255 = por %p253, %p254
      %p256 = scmp.ne.s32.totalorder %s247, %s248
      %p257 = scmp.eq.s32.totalorder %s27, 0
      %p258 = por %p256, %p257
      %p259 = scmp.ne.s32.totalorder %s247, %s248
      %p260 = scmp.eq.s32.totalorder %s28, 1
      %p261 = por %p259, %p260
      %p263 = scmp.ne.s32.totalorder %s248, %s262
      %p264 = scmp.eq.s32.totalorder %s28, 0
      %p265 = por %p263, %p264
      %s266 = ssub.s32 %s22, %s29
      %p267 = scmp.eq.s32.totalorder %s266, 0
      %s269 = sadd.s32 %s268, 1
      %s270 = scalar_select %p267, %s268, %s269
      %p273 = pneg %p267
      %p274 = scmp.eq.s32.totalorder %s22, 1
      %p275 = por %p273, %p274
      %p276 = scmp.ne.s32.totalorder %s268, %s271
      %p277 = scmp.eq.s32.totalorder %s22, 0
      %p278 = por %p276, %p277
      %p279 = scmp.ne.s32.totalorder %s268, %s271
      %p280 = scmp.eq.s32.totalorder %s27, 1
      %p281 = por %p279, %p280
      %p282 = scmp.ne.s32.totalorder %s271, %s272
      %p283 = scmp.eq.s32.totalorder %s27, 0
      %p284 = por %p282, %p283
      %p285 = scmp.ne.s32.totalorder %s271, %s272
      %p286 = scmp.eq.s32.totalorder %s28, 1
      %p287 = por %p285, %p286
      %p289 = scmp.ne.s32.totalorder %s272, %s288
      %p290 = scmp.eq.s32.totalorder %s28, 0
      %p291 = por %p289, %p290
      %p292 = scmp.le.s32.totalorder 1, %s22
      %p293 = scmp.lt.s32.totalorder %s22, 3
      %p294 = pnand %p292, %p293
      %p295 = pneg %p294
      // Predicated region
      $region9: #{evagan_big_forward.5} parent=5 // pred_check
        _
      $region10: #{evagan_big_forward.5} parent=5 // pred_check_branch
        %297 = sbr.rel (%p294) target = $region12
      $region11: #{evagan_big_forward.5} parent=5 // pred_region
        %s298 = ssub.s32 %s22, 1
        // Predicated region
        $region13: #{evagan_big_forward.5} parent=11 // pred_check
          %p299 = pneg %p69
        $region14: #{evagan_big_forward.5} parent=11 // pred_check_branch
          %301 = sbr.rel (%p299) target = $region16
        $region15: #{evagan_big_forward.5} parent=11 // pred_region
          _
        $region16: #{evagan_big_forward.5} parent=11 // pred_fallthru
          _
        // Predicated region
        $region17: #{evagan_big_forward.5} parent=11 // pred_check
          %p302 = pneg %p90
        $region18: #{evagan_big_forward.5} parent=11 // pred_check_branch
          %304 = sbr.rel (%p302) target = $region20
        $region19: #{evagan_big_forward.5} parent=11 // pred_region
          _
        $region20: #{evagan_big_forward.5} parent=11 // pred_fallthru
          _
        // Predicated region
        $region21: #{evagan_big_forward.5} parent=11 // pred_check
          %p305 = pneg %p111
        $region22: #{evagan_big_forward.5} parent=11 // pred_check_branch
          %307 = sbr.rel (%p305) target = $region24
        $region23: #{evagan_big_forward.5} parent=11 // pred_region
          _
        $region24: #{evagan_big_forward.5} parent=11 // pred_fallthru
          _
        // Predicated region
        $region25: #{evagan_big_forward.5} parent=11 // pred_check
          %p308 = pneg %p132
        $region26: #{evagan_big_forward.5} parent=11 // pred_check_branch
          %310 = sbr.rel (%p308) target = $region28
        $region27: #{evagan_big_forward.5} parent=11 // pred_region
          _
        $region28: #{evagan_big_forward.5} parent=11 // pred_fallthru
          _
        // Predicated region
        $region29: #{evagan_big_forward.5} parent=11 // pred_check
          %p311 = pneg %p153
        $region30: #{evagan_big_forward.5} parent=11 // pred_check_branch
          %313 = sbr.rel (%p311) target = $region32
        $region31: #{evagan_big_forward.5} parent=11 // pred_region
          _
        $region32: #{evagan_big_forward.5} parent=11 // pred_fallthru
          _
        // Predicated region
        $region33: #{evagan_big_forward.5} parent=11 // pred_check
          %p314 = pneg %p174
        $region34: #{evagan_big_forward.5} parent=11 // pred_check_branch
          %316 = sbr.rel (%p314) target = $region36
        $region35: #{evagan_big_forward.5} parent=11 // pred_region
          _
        $region36: #{evagan_big_forward.5} parent=11 // pred_fallthru
          _
        // Predicated region
        $region37: #{evagan_big_forward.5} parent=11 // pred_check
          %p317 = pneg %p195
        $region38: #{evagan_big_forward.5} parent=11 // pred_check_branch
          %319 = sbr.rel (%p317) target = $region40
        $region39: #{evagan_big_forward.5} parent=11 // pred_region
          _
        $region40: #{evagan_big_forward.5} parent=11 // pred_fallthru
          _
        // Predicated region
        $region41: #{evagan_big_forward.5} parent=11 // pred_check
          %p320 = pneg %p216
        $region42: #{evagan_big_forward.5} parent=11 // pred_check_branch
          %322 = sbr.rel (%p320) target = $region44
        $region43: #{evagan_big_forward.5} parent=11 // pred_region
          _
        $region44: #{evagan_big_forward.5} parent=11 // pred_fallthru
          _
        // Predicated region
        $region45: #{evagan_big_forward.5} parent=11 // pred_check
          %p323 = pneg %p237
        $region46: #{evagan_big_forward.5} parent=11 // pred_check_branch
          %325 = sbr.rel (%p323) target = $region48
        $region47: #{evagan_big_forward.5} parent=11 // pred_region
          _
        $region48: #{evagan_big_forward.5} parent=11 // pred_fallthru
          _
        // Predicated region
        $region49: #{evagan_big_forward.5} parent=11 // pred_check
          %p326 = pneg %p258
        $region50: #{evagan_big_forward.5} parent=11 // pred_check_branch
          %328 = sbr.rel (%p326) target = $region52
        $region51: #{evagan_big_forward.5} parent=11 // pred_region
          _
        $region52: #{evagan_big_forward.5} parent=11 // pred_fallthru
          _
      $region12: #{evagan_big_forward.5} parent=5 // pred_fallthru
        _
      %p329 = scmp.lt.s32.totalorder %s22, 2
      // Predicated region
      $region53: #{evagan_big_forward.5} parent=5 // pred_check
        %p330 = pneg %p329
      $region54: #{evagan_big_forward.5} parent=5 // pred_check_branch
        %332 = sbr.rel (%p330) target = $region56
      $region55: #{evagan_big_forward.5} parent=5 // pred_region
        // Predicated region
        $region57: #{evagan_big_forward.5} parent=55 // pred_check
          %p333 = pneg %p42
        $region58: #{evagan_big_forward.5} parent=55 // pred_check_branch
          %335 = sbr.rel (%p333) target = $region60
        $region59: #{evagan_big_forward.5} parent=55 // pred_region
          %p336 = scmp.lt.s32.totalorder %s22, 1
          %s337 = scalar_select %p336, %s22, 1
          %s338 = smul.addr %s337, 4
          %s339 = scalar_lea.vmem %s0, %s338
        $region60: #{evagan_big_forward.5} parent=55 // pred_fallthru
          _
      $region56: #{evagan_big_forward.5} parent=5 // pred_fallthru
        _
      %p340 = scmp.le.s32.totalorder 1, %s22
      %p341 = scmp.lt.s32.totalorder %s22, 3
      %p342 = pnand %p340, %p341
      %p343 = pneg %p342
      // Predicated region
      $region61: #{evagan_big_forward.5} parent=5 // pred_check
        _
      $region62: #{evagan_big_forward.5} parent=5 // pred_check_branch
        %345 = sbr.rel (%p342) target = $region64
      $region63: #{evagan_big_forward.5} parent=5 // pred_region
        %s346 = ssub.s32 %s22, 1
        %p347 = scmp.lt.s32.totalorder %s27, 1
        %s348 = scalar_select %p347, %s27, 1
        %s349 = smul.addr %s348, 4
        %s350 = scalar_lea.vmem %s0, %s349
        %p351 = pneg %p48
        %p352 = pneg %p45
        %p353 = pneg %p69
        %p354 = pneg %p66
        %p355 = pneg %p90
        %p356 = pneg %p87
        %p357 = pneg %p111
        %p358 = pneg %p108
        %p359 = pneg %p132
        %p360 = pneg %p129
        %p361 = pneg %p153
        %p362 = pneg %p150
        %p363 = pneg %p174
        %p364 = pneg %p171
        %p365 = pneg %p195
        %p366 = pneg %p192
        %p367 = pneg %p216
        %p368 = pneg %p213
        %p369 = pneg %p237
        %p370 = pneg %p234
        %p371 = pneg %p258
        %p372 = pneg %p255
        %p373 = pneg %p284
        %p374 = pneg %p281
        %s375 = sand.u32 %s271, 1
        %s376 = scalar_lea.sflag [#allocation4], %s375
        %s377 = sand.u32 %s271, 1
        %s378 = scalar_lea.vmem [#allocation3], %s377
        %p379 = scmp.lt.s32.totalorder %s27, 1
        %s380 = scalar_select %p379, %s27, 1
        %s381 = smul.addr %s380, 4
        %s382 = scalar_lea.vmem %s0, %s381
        %v384 = vld [vmem:[%s382] sm:$0xf]
        %v385 = vunpack.c.l.bf16 %v384
        %vm386 = vcmp.gt.f32.partialorder %v385, 0.0
        %v387 = vmul.f32 %v385, 0.1
        %v388 = vsel %vm386, %v385, %v387
        %390 = vrot.lane.b32.xlu0 %v388, 1
        %v391 = vpop.permute.xlu0 %390
        %vm393 = vcmask 7168
        %v394 = vsel %vm393, 0.0, %v391
        %vm395 = vcmask 269312
        %v396 = vsel %vm395, %v394, 0.0
        %398 = vrot.lane.b32.xlu0 %v396, 127
        %v399 = vpop.permute.xlu0 %398
        %401 = vrot.lane.b32.xlu0 %v396, 126
        %v402 = vpop.permute.xlu0 %401
        %v404 = vpack.c.bf16 %v399, %v396
        %v405 = vpack.c.bf16 %v402, %v402
        %v406 = vld [vmem:[%s1] sm:$0xf]
        %v407 = vld [vmem:[%s2] sm:$0xff]
        %409 = vset.pattern.permute.xlu0 0
        %410 = vperm.xlu0 %409, %v407
        %v411 = vpop.permute.xlu0 %410
        %vm413 = vcmask 195584
        %v415 = vsel %vm413, %v406, 0
        %vm417 = vcmask 1043456
        %v419 = vsel %vm417, %v405, 0
        %421 = vmatpush.bf16.msra.mxu0 0
        %422 = vmatpush.bf16.msra.mxu0 0
        %423 = vmatpush.bf16.msra.mxu0 0
        %424 = vmatpush.bf16.msra.mxu0 0
        %425 = vmatpush.bf16.msra.mxu0 0
        %426 = vmatpush.bf16.msra.mxu0 0
        %427 = vmatpush.bf16.msra.mxu0 %v419
        %428 = vmatpush.bf16.msra.mxu0 %v404
        %429 = vmatmul.bf16.gmra.mxu0 %v415
        %v430 = vpop.f32.mrf.mxu0
        %v431 = vadd.f32 %v411, %v430
        %v432 = vpop.f32.mrf.mxu0
        %433 = vdwg.mxu0
        %v434 = vadd.f32 %v385, %v431
        %vm435 = vcmp.gt.f32.partialorder %v434, 0.0
        %v436 = vmul.f32 %v434, 0.1
        %v437 = vsel %vm435, %v434, %v436
        %439 = vrot.lane.b32.xlu0 %v437, 3
        %v440 = vpop.permute.xlu0 %439
        %vm442 = vcmask 23552
        %v443 = vsel %vm442, 0.0, %v440
        %vm444 = vcmask 285696
        %v445 = vsel %vm444, %v443, 0.0
        %447 = vrot.lane.b32.xlu0 %v445, 125
        %v448 = vpop.permute.xlu0 %447
        %450 = vrot.lane.b32.xlu0 %v445, 122
        %v451 = vpop.permute.xlu0 %450
        %v453 = vpack.c.bf16 %v448, %v445
        %v454 = vpack.c.bf16 %v451, %v451
        %v455 = vld [vmem:[%s3] sm:$0xf]
        %v456 = vld [vmem:[%s4] sm:$0xff]
        %458 = vset.pattern.permute.xlu0 0
        %459 = vperm.xlu0 %458, %v456
        %v460 = vpop.permute.xlu0 %459
        %v463 = vsel %vm413, %v455, 0
        %v466 = vsel %vm417, %v454, 0
        %468 = vmatpush.bf16.msra.mxu0 0
        %469 = vmatpush.bf16.msra.mxu0 0
        %470 = vmatpush.bf16.msra.mxu0 0
        %471 = vmatpush.bf16.msra.mxu0 0
        %472 = vmatpush.bf16.msra.mxu0 0
        %473 = vmatpush.bf16.msra.mxu0 0
        %474 = vmatpush.bf16.msra.mxu0 %v466
        %475 = vmatpush.bf16.msra.mxu0 %v453
        %476 = vmatmul.bf16.gmra.mxu0 %v463
        %v477 = vpop.f32.mrf.mxu0
        %v478 = vadd.f32 %v460, %v477
        %v479 = vpop.f32.mrf.mxu0
        %480 = vdwg.mxu0
        %v481 = vadd.f32 %v434, %v478
        %482 = vrot.lane.b32.xlu0 %v388, 2
        %v483 = vpop.permute.xlu0 %482
        %vm485 = vcmask 15360
        %v486 = vsel %vm485, 0.0, %v483
        %vm487 = vcmask 277504
        %v488 = vsel %vm487, %v486, 0.0
        %490 = vrot.lane.b32.xlu0 %v488, 127
        %v491 = vpop.permute.xlu0 %490
        %493 = vrot.lane.b32.xlu0 %v488, 126
        %v494 = vpop.permute.xlu0 %493
        %496 = vrot.lane.b32.xlu0 %v488, 125
        %v497 = vpop.permute.xlu0 %496
        %499 = vrot.lane.b32.xlu0 %v488, 124
        %v500 = vpop.permute.xlu0 %499
        %v502 = vpack.c.bf16 %v491, %v488
        %v503 = vpack.c.bf16 %v497, %v494
        %v504 = vpack.c.bf16 %v500, %v500
        %v505 = vld [vmem:[%s5] sm:$0xf]
        %v506 = vld [vmem:[%s6] sm:$0xff]
        %508 = vset.pattern.permute.xlu0 0
        %509 = vperm.xlu0 %508, %v506
        %v510 = vpop.permute.xlu0 %509
        %vm512 = vcmask 326656
        %v514 = vsel %vm512, %v505, 0
        %v517 = vsel %vm417, %v504, 0
        %519 = vmatpush.bf16.msra.mxu0 0
        %520 = vmatpush.bf16.msra.mxu0 0
        %521 = vmatpush.bf16.msra.mxu0 0
        %522 = vmatpush.bf16.msra.mxu0 0
        %523 = vmatpush.bf16.msra.mxu0 0
        %524 = vmatpush.bf16.msra.mxu0 %v517
        %525 = vmatpush.bf16.msra.mxu0 %v503
        %526 = vmatpush.bf16.msra.mxu0 %v502
        %527 = vmatmul.bf16.gmra.mxu0 %v514
        %v528 = vpop.f32.mrf.mxu0
        %v529 = vadd.f32 %v510, %v528
        %v530 = vpop.f32.mrf.mxu0
        %531 = vdwg.mxu0
        %v532 = vadd.f32 %v385, %v529
        %vm533 = vcmp.gt.f32.partialorder %v532, 0.0
        %v534 = vmul.f32 %v532, 0.1
        %v535 = vsel %vm533, %v532, %v534
        %537 = vrot.lane.b32.xlu0 %v535, 6
        %v538 = vpop.permute.xlu0 %537
        %vm540 = vcmask 48128
        %v541 = vsel %vm540, 0.0, %v538
        %vm542 = vcmask 310272
        %v543 = vsel %vm542, %v541, 0.0
        %545 = vrot.lane.b32.xlu0 %v543, 125
        %v546 = vpop.permute.xlu0 %545
        %548 = vrot.lane.b32.xlu0 %v543, 122
        %v549 = vpop.permute.xlu0 %548
        %551 = vrot.lane.b32.xlu0 %v543, 119
        %v552 = vpop.permute.xlu0 %551
        %554 = vrot.lane.b32.xlu0 %v543, 116
        %v555 = vpop.permute.xlu0 %554
        %v557 = vpack.c.bf16 %v546, %v543
        %v558 = vpack.c.bf16 %v552, %v549
        %v559 = vpack.c.bf16 %v555, %v555
        %v560 = vld [vmem:[%s7] sm:$0xf]
        %v561 = vld [vmem:[%s8] sm:$0xff]
        %563 = vset.pattern.permute.xlu0 0
        %564 = vperm.xlu0 %563, %v561
        %v565 = vpop.permute.xlu0 %564
        %v568 = vsel %vm512, %v560, 0
        %v571 = vsel %vm417, %v559, 0
        %573 = vmatpush.bf16.msra.mxu0 0
        %574 = vmatpush.bf16.msra.mxu0 0
        %575 = vmatpush.bf16.msra.mxu0 0
        %576 = vmatpush.bf16.msra.mxu0 0
        %577 = vmatpush.bf16.msra.mxu0 0
        %578 = vmatpush.bf16.msra.mxu0 %v571
        %579 = vmatpush.bf16.msra.mxu0 %v558
        %580 = vmatpush.bf16.msra.mxu0 %v557
        %581 = vmatmul.bf16.gmra.mxu0 %v568
        %v582 = vpop.f32.mrf.mxu0
        %v583 = vadd.f32 %v565, %v582
        %v584 = vpop.f32.mrf.mxu0
        %585 = vdwg.mxu0
        %v586 = vadd.f32 %v532, %v583
        %v587 = vadd.f32 %v481, %v586
        %v588 = vmul.f32 %v587, 0.5
        %vm589 = vcmp.gt.f32.partialorder %v588, 0.0
        %v590 = vmul.f32 %v588, 0.1
        %v591 = vsel %vm589, %v588, %v590
        %593 = vrot.lane.b32.xlu0 %v591, 3
        %v594 = vpop.permute.xlu0 %593
        %v596 = vsel %vm442, 0.0, %v594
        %v597 = vsel %vm444, %v596, 0.0
        %599 = vrot.lane.b32.xlu0 %v597, 127
        %v600 = vpop.permute.xlu0 %599
        %602 = vrot.lane.b32.xlu0 %v597, 126
        %v603 = vpop.permute.xlu0 %602
        %605 = vrot.lane.b32.xlu0 %v597, 125
        %v606 = vpop.permute.xlu0 %605
        %608 = vrot.lane.b32.xlu0 %v597, 124
        %v609 = vpop.permute.xlu0 %608
        %611 = vrot.lane.b32.xlu0 %v597, 123
        %v612 = vpop.permute.xlu0 %611
        %614 = vrot.lane.b32.xlu0 %v597, 122
        %v615 = vpop.permute.xlu0 %614
        %v617 = vpack.c.bf16 %v600, %v597
        %v618 = vpack.c.bf16 %v606, %v603
        %v619 = vpack.c.bf16 %v612, %v609
        %v620 = vpack.c.bf16 %v615, %v615
        %v621 = vld [vmem:[%s9] sm:$0x1]
        %v622 = vld [vmem:[#allocation2] sm:$0x1]
        %624 = vset.pattern.permute.xlu0 0
        %625 = vperm.xlu0 %624, %v622
        %v626 = vpop.permute.xlu0 %625
        %v628 = vperm.slane %v626, 0
        %vm629 = vcmask 457728
        %v631 = vsel %vm629, %v621, 0
        %v634 = vsel %vm417, %v620, 0
        %636 = vmatpush.bf16.msra.mxu0 0
        %637 = vmatpush.bf16.msra.mxu0 0
        %638 = vmatpush.bf16.msra.mxu0 0
        %639 = vmatpush.bf16.msra.mxu0 0
        %640 = vmatpush.bf16.msra.mxu0 %v634
        %641 = vmatpush.bf16.msra.mxu0 %v619
        %642 = vmatpush.bf16.msra.mxu0 %v618
        %643 = vmatpush.bf16.msra.mxu0 %v617
        %644 = vmatmul.bf16.gmra.mxu0 %v631
        %v645 = vpop.f32.mrf.mxu0
        %v646 = vadd.f32 %v628, %v645
        %v647 = vpop.f32.mrf.mxu0
        %648 = vdwg.mxu0
        %v649 = vtanh.pop %v646
        %vm650 = vcmask 253952
        %651 = vst.msk [vmem:[%s378] sm:$0x1] %vm650, %v649
        %s652 = sand.u32 %s271, 1
        %s653 = scalar_lea.sflag [#allocation4], %s652
        %s654 = sand.u32 %s271, 1
        %s655 = scalar_lea.vmem [#allocation3], %s654
        // Predicated region
        $region65: #{evagan_big_forward.5} parent=63 // pred_check
          %p656 = pneg %p281
        $region66: #{evagan_big_forward.5} parent=63 // pred_check_branch
          %658 = sbr.rel (%p656) target = $region68
        $region67: #{evagan_big_forward.5} parent=63 // pred_region
          %660 = vsyncadd %s653, 0
          %s661 = scalar_lea.hbm %s11, %s27
          %s663 = sshll.u32 %s655, 4
          %s664 = int_to_ptr.vmem [resolvable:$true] %s663
          %s665 = sshll.u32 %s661, 4
          %s666 = int_to_ptr.hbm [resolvable:$true] %s665
          %668 = dma.vmem_to_hbm [thread:$0]  %s664, 16, %s666, %s653
        $region68: #{evagan_big_forward.5} parent=63 // pred_fallthru
          _
      $region64: #{evagan_big_forward.5} parent=5 // pred_fallthru
        _
      %p669 = scmp.le.s32.totalorder 2, %s22
      // Predicated region
      $region69: #{evagan_big_forward.5} parent=5 // pred_check
        %p670 = pneg %p669
      $region70: #{evagan_big_forward.5} parent=5 // pred_check_branch
        %672 = sbr.rel (%p670) target = $region72
      $region71: #{evagan_big_forward.5} parent=5 // pred_region
        %s673 = ssub.s32 %s22, 2
        // Predicated region
        $region73: #{evagan_big_forward.5} parent=71 // pred_check
          %p674 = pneg %p287
        $region74: #{evagan_big_forward.5} parent=71 // pred_check_branch
          %676 = sbr.rel (%p674) target = $region76
        $region75: #{evagan_big_forward.5} parent=71 // pred_region
          %s677 = sand.u32 %s272, 1
          %s678 = scalar_lea.sflag [#allocation4], %s677
          %s679 = sand.u32 %s272, 1
          %s680 = scalar_lea.vmem [#allocation3], %s679
          %682 = dma.done %s678, 16
        $region76: #{evagan_big_forward.5} parent=71 // pred_fallthru
          _
      $region72: #{evagan_big_forward.5} parent=5 // pred_fallthru
        _
    $region6: #{evagan_big_forward.5} parent=1 // loop_footer
      %s26 = sadd.s32 1, %s22
    $region7: #{evagan_big_forward.5} parent=1 // loop_footer_branch
      %21 = sbr.rel target = $region3
    $region8: #{evagan_big_forward.5} parent=1 // loop_exit
      _
    %683 = vsyncpa [#allocation4], 1
    %s684 = scalar_lea.sflag [#allocation4], 1
    %685 = vsyncpa %s684, 1

// kernel: evagan_big_forward.4
$region0: #{evagan_big_forward.4}
  #allocation0 [shape = 'u32[]', space=smem, size = 0x4, offset = 0x4, fixed_abs, tag = 'smem constant byte address 0x4 - core index']
  #allocation1 [shape = 'u32[72,128]{1,0:T(1,128)}', space=vmem, size = 0x9000, scoped, tag = 'internal scratch']
  %s0 = inlined_call_operand.vmem [shape: bf16[2,16,16], index: 0, kind: input, shape index: {}]
  %s1 = inlined_call_operand.vmem [shape: bf16[16,48], index: 1, kind: input, shape index: {}]
  %s2 = inlined_call_operand.vmem [shape: f32[16,1], index: 2, kind: input, shape index: {}]
  %s3 = inlined_call_operand.vmem [shape: bf16[16,48], index: 3, kind: input, shape index: {}]
  %s4 = inlined_call_operand.vmem [shape: f32[16,1], index: 4, kind: input, shape index: {}]
  %s5 = inlined_call_operand.vmem [shape: bf16[16,80], index: 5, kind: input, shape index: {}]
  %s6 = inlined_call_operand.vmem [shape: f32[16,1], index: 6, kind: input, shape index: {}]
  %s7 = inlined_call_operand.vmem [shape: bf16[16,80], index: 7, kind: input, shape index: {}]
  %s8 = inlined_call_operand.vmem [shape: f32[16,1], index: 8, kind: input, shape index: {}]
  %s9 = inlined_call_operand.vmem [shape: bf16[8,32], index: 9, kind: input, shape index: {}]
  %s10 = inlined_call_operand.vmem [shape: bf16[8,32], index: 10, kind: input, shape index: {}]
  %s11 = inlined_call_operand.vmem [shape: f32[8,1], index: 11, kind: input, shape index: {}]
  %s12 = inlined_call_operand.vmem [shape: bf16[2,8,16], index: 12, kind: output, shape index: {0}]
  %s13 = inlined_call_operand.vmem [shape: bf16[2,8,16], index: 13, kind: output, shape index: {1}]
  %14 = xla_tuple %s12, %s13
  %s15 = sld [smem:[#allocation0]]
  $region89: #{evagan_big_forward.4} parent=0
    _
  %s17 = ssub.s32 1, %s15
  %s18 = scalar_select 0, %s17, %s15
  loop: start=0, step=1, limit=4
  $region2: #{evagan_big_forward.4} parent=0 // loop_pre_header
    _
  $region3: #{evagan_big_forward.4} parent=0 // loop_header
    %s20 = sphi 0, %s24
    %p21 = scmp.ge.s32.totalorder %s20, 4
    %s30 = sphi 0, %s32
    %s33 = sphi 0, %s30
    %s34 = sphi 0, %s33
    %s50 = sphi 0, %s34
    %s54 = sphi 0, %s54
    %s56 = sphi 0, %s54
    %s57 = sphi 0, %s56
    %s71 = sphi 0, %s57
    %s75 = sphi 0, %s75
    %s77 = sphi 0, %s75
    %s78 = sphi 0, %s77
    %s92 = sphi 0, %s78
    %s96 = sphi 0, %s96
    %s98 = sphi 0, %s96
    %s99 = sphi 0, %s98
    %s113 = sphi 0, %s99
    %s117 = sphi 0, %s117
    %s119 = sphi 0, %s117
    %s120 = sphi 0, %s119
    %s134 = sphi 0, %s120
    %s138 = sphi 0, %s138
    %s140 = sphi 0, %s138
    %s141 = sphi 0, %s140
    %s155 = sphi 0, %s141
    %s159 = sphi 0, %s159
    %s161 = sphi 0, %s159
    %s162 = sphi 0, %s161
    %s176 = sphi 0, %s162
    %s180 = sphi 0, %s180
    %s182 = sphi 0, %s180
    %s183 = sphi 0, %s182
    %s197 = sphi 0, %s183
    %s201 = sphi 0, %s201
    %s203 = sphi 0, %s201
    %s204 = sphi 0, %s203
    %s218 = sphi 0, %s204
    %s222 = sphi 0, %s222
    %s224 = sphi 0, %s222
    %s225 = sphi 0, %s224
    %s239 = sphi 0, %s225
    %s243 = sphi 0, %s243
    %s245 = sphi 0, %s243
    %s246 = sphi 0, %s245
    %s260 = sphi 0, %s246
    %s264 = sphi 0, %s264
    %s266 = sphi 0, %s264
    %s267 = sphi 0, %s266
    %s281 = sphi 0, %s267
    %s287 = sphi 0, %s289
    %s290 = sphi 0, %s287
    %s291 = sphi 0, %s290
    %s307 = sphi 0, %s291
    %s313 = sphi 0, %s315
    %s316 = sphi 0, %s313
    %s317 = sphi 0, %s316
    %s333 = sphi 0, %s317
  $region4: #{evagan_big_forward.4} parent=0 // loop_header_branch
    %23 = sbr.rel (%p21) target = $region8
  $region5: #{evagan_big_forward.4} parent=0 // loop_body
    %s25 = ssub.s32 %s20, 1
    %s26 = ssub.s32 %s20, 2
    %s27 = sadd.s32 %s20, 1
    %s28 = ssub.s32 %s20, %s27
    %p29 = scmp.eq.s32.totalorder %s28, 0
    %s31 = sadd.s32 %s30, 1
    %s32 = scalar_select %p29, %s30, %s31
    %p35 = pneg %p29
    %p36 = scmp.eq.s32.totalorder %s20, 1
    %p37 = por %p35, %p36
    %p38 = scmp.ne.s32.totalorder %s30, %s33
    %p39 = scmp.eq.s32.totalorder %s20, 0
    %p40 = por %p38, %p39
    %p41 = scmp.ne.s32.totalorder %s30, %s33
    %p42 = scmp.eq.s32.totalorder %s25, 1
    %p43 = por %p41, %p42
    %p44 = scmp.ne.s32.totalorder %s33, %s34
    %p45 = scmp.eq.s32.totalorder %s25, 0
    %p46 = por %p44, %p45
    %p47 = scmp.ne.s32.totalorder %s33, %s34
    %p48 = scmp.eq.s32.totalorder %s26, 1
    %p49 = por %p47, %p48
    %p51 = scmp.ne.s32.totalorder %s34, %s50
    %p52 = scmp.eq.s32.totalorder %s26, 0
    %p53 = por %p51, %p52
    %s55 = sadd.s32 %s54, 1
    %p58 = scmp.eq.s32.totalorder %s20, 1
    %p59 = scmp.ne.s32.totalorder %s54, %s56
    %p60 = scmp.eq.s32.totalorder %s20, 0
    %p61 = por %p59, %p60
    %p62 = scmp.ne.s32.totalorder %s54, %s56
    %p63 = scmp.eq.s32.totalorder %s25, 1
    %p64 = por %p62, %p63
    %p65 = scmp.ne.s32.totalorder %s56, %s57
    %p66 = scmp.eq.s32.totalorder %s25, 0
    %p67 = por %p65, %p66
    %p68 = scmp.ne.s32.totalorder %s56, %s57
    %p69 = scmp.eq.s32.totalorder %s26, 1
    %p70 = por %p68, %p69
    %p72 = scmp.ne.s32.totalorder %s57, %s71
    %p73 = scmp.eq.s32.totalorder %s26, 0
    %p74 = por %p72, %p73
    %s76 = sadd.s32 %s75, 1
    %p79 = scmp.eq.s32.totalorder %s20, 1
    %p80 = scmp.ne.s32.totalorder %s75, %s77
    %p81 = scmp.eq.s32.totalorder %s20, 0
    %p82 = por %p80, %p81
    %p83 = scmp.ne.s32.totalorder %s75, %s77
    %p84 = scmp.eq.s32.totalorder %s25, 1
    %p85 = por %p83, %p84
    %p86 = scmp.ne.s32.totalorder %s77, %s78
    %p87 = scmp.eq.s32.totalorder %s25, 0
    %p88 = por %p86, %p87
    %p89 = scmp.ne.s32.totalorder %s77, %s78
    %p90 = scmp.eq.s32.totalorder %s26, 1
    %p91 = por %p89, %p90
    %p93 = scmp.ne.s32.totalorder %s78, %s92
    %p94 = scmp.eq.s32.totalorder %s26, 0
    %p95 = por %p93, %p94
    %s97 = sadd.s32 %s96, 1
    %p100 = scmp.eq.s32.totalorder %s20, 1
    %p101 = scmp.ne.s32.totalorder %s96, %s98
    %p102 = scmp.eq.s32.totalorder %s20, 0
    %p103 = por %p101, %p102
    %p104 = scmp.ne.s32.totalorder %s96, %s98
    %p105 = scmp.eq.s32.totalorder %s25, 1
    %p106 = por %p104, %p105
    %p107 = scmp.ne.s32.totalorder %s98, %s99
    %p108 = scmp.eq.s32.totalorder %s25, 0
    %p109 = por %p107, %p108
    %p110 = scmp.ne.s32.totalorder %s98, %s99
    %p111 = scmp.eq.s32.totalorder %s26, 1
    %p112 = por %p110, %p111
    %p114 = scmp.ne.s32.totalorder %s99, %s113
    %p115 = scmp.eq.s32.totalorder %s26, 0
    %p116 = por %p114, %p115
    %s118 = sadd.s32 %s117, 1
    %p121 = scmp.eq.s32.totalorder %s20, 1
    %p122 = scmp.ne.s32.totalorder %s117, %s119
    %p123 = scmp.eq.s32.totalorder %s20, 0
    %p124 = por %p122, %p123
    %p125 = scmp.ne.s32.totalorder %s117, %s119
    %p126 = scmp.eq.s32.totalorder %s25, 1
    %p127 = por %p125, %p126
    %p128 = scmp.ne.s32.totalorder %s119, %s120
    %p129 = scmp.eq.s32.totalorder %s25, 0
    %p130 = por %p128, %p129
    %p131 = scmp.ne.s32.totalorder %s119, %s120
    %p132 = scmp.eq.s32.totalorder %s26, 1
    %p133 = por %p131, %p132
    %p135 = scmp.ne.s32.totalorder %s120, %s134
    %p136 = scmp.eq.s32.totalorder %s26, 0
    %p137 = por %p135, %p136
    %s139 = sadd.s32 %s138, 1
    %p142 = scmp.eq.s32.totalorder %s20, 1
    %p143 = scmp.ne.s32.totalorder %s138, %s140
    %p144 = scmp.eq.s32.totalorder %s20, 0
    %p145 = por %p143, %p144
    %p146 = scmp.ne.s32.totalorder %s138, %s140
    %p147 = scmp.eq.s32.totalorder %s25, 1
    %p148 = por %p146, %p147
    %p149 = scmp.ne.s32.totalorder %s140, %s141
    %p150 = scmp.eq.s32.totalorder %s25, 0
    %p151 = por %p149, %p150
    %p152 = scmp.ne.s32.totalorder %s140, %s141
    %p153 = scmp.eq.s32.totalorder %s26, 1
    %p154 = por %p152, %p153
    %p156 = scmp.ne.s32.totalorder %s141, %s155
    %p157 = scmp.eq.s32.totalorder %s26, 0
    %p158 = por %p156, %p157
    %s160 = sadd.s32 %s159, 1
    %p163 = scmp.eq.s32.totalorder %s20, 1
    %p164 = scmp.ne.s32.totalorder %s159, %s161
    %p165 = scmp.eq.s32.totalorder %s20, 0
    %p166 = por %p164, %p165
    %p167 = scmp.ne.s32.totalorder %s159, %s161
    %p168 = scmp.eq.s32.totalorder %s25, 1
    %p169 = por %p167, %p168
    %p170 = scmp.ne.s32.totalorder %s161, %s162
    %p171 = scmp.eq.s32.totalorder %s25, 0
    %p172 = por %p170, %p171
    %p173 = scmp.ne.s32.totalorder %s161, %s162
    %p174 = scmp.eq.s32.totalorder %s26, 1
    %p175 = por %p173, %p174
    %p177 = scmp.ne.s32.totalorder %s162, %s176
    %p178 = scmp.eq.s32.totalorder %s26, 0
    %p179 = por %p177, %p178
    %s181 = sadd.s32 %s180, 1
    %p184 = scmp.eq.s32.totalorder %s20, 1
    %p185 = scmp.ne.s32.totalorder %s180, %s182
    %p186 = scmp.eq.s32.totalorder %s20, 0
    %p187 = por %p185, %p186
    %p188 = scmp.ne.s32.totalorder %s180, %s182
    %p189 = scmp.eq.s32.totalorder %s25, 1
    %p190 = por %p188, %p189
    %p191 = scmp.ne.s32.totalorder %s182, %s183
    %p192 = scmp.eq.s32.totalorder %s25, 0
    %p193 = por %p191, %p192
    %p194 = scmp.ne.s32.totalorder %s182, %s183
    %p195 = scmp.eq.s32.totalorder %s26, 1
    %p196 = por %p194, %p195
    %p198 = scmp.ne.s32.totalorder %s183, %s197
    %p199 = scmp.eq.s32.totalorder %s26, 0
    %p200 = por %p198, %p199
    %s202 = sadd.s32 %s201, 1
    %p205 = scmp.eq.s32.totalorder %s20, 1
    %p206 = scmp.ne.s32.totalorder %s201, %s203
    %p207 = scmp.eq.s32.totalorder %s20, 0
    %p208 = por %p206, %p207
    %p209 = scmp.ne.s32.totalorder %s201, %s203
    %p210 = scmp.eq.s32.totalorder %s25, 1
    %p211 = por %p209, %p210
    %p212 = scmp.ne.s32.totalorder %s203, %s204
    %p213 = scmp.eq.s32.totalorder %s25, 0
    %p214 = por %p212, %p213
    %p215 = scmp.ne.s32.totalorder %s203, %s204
    %p216 = scmp.eq.s32.totalorder %s26, 1
    %p217 = por %p215, %p216
    %p219 = scmp.ne.s32.totalorder %s204, %s218
    %p220 = scmp.eq.s32.totalorder %s26, 0
    %p221 = por %p219, %p220
    %s223 = sadd.s32 %s222, 1
    %p226 = scmp.eq.s32.totalorder %s20, 1
    %p227 = scmp.ne.s32.totalorder %s222, %s224
    %p228 = scmp.eq.s32.totalorder %s20, 0
    %p229 = por %p227, %p228
    %p230 = scmp.ne.s32.totalorder %s222, %s224
    %p231 = scmp.eq.s32.totalorder %s25, 1
    %p232 = por %p230, %p231
    %p233 = scmp.ne.s32.totalorder %s224, %s225
    %p234 = scmp.eq.s32.totalorder %s25, 0
    %p235 = por %p233, %p234
    %p236 = scmp.ne.s32.totalorder %s224, %s225
    %p237 = scmp.eq.s32.totalorder %s26, 1
    %p238 = por %p236, %p237
    %p240 = scmp.ne.s32.totalorder %s225, %s239
    %p241 = scmp.eq.s32.totalorder %s26, 0
    %p242 = por %p240, %p241
    %s244 = sadd.s32 %s243, 1
    %p247 = scmp.eq.s32.totalorder %s20, 1
    %p248 = scmp.ne.s32.totalorder %s243, %s245
    %p249 = scmp.eq.s32.totalorder %s20, 0
    %p250 = por %p248, %p249
    %p251 = scmp.ne.s32.totalorder %s243, %s245
    %p252 = scmp.eq.s32.totalorder %s25, 1
    %p253 = por %p251, %p252
    %p254 = scmp.ne.s32.totalorder %s245, %s246
    %p255 = scmp.eq.s32.totalorder %s25, 0
    %p256 = por %p254, %p255
    %p257 = scmp.ne.s32.totalorder %s245, %s246
    %p258 = scmp.eq.s32.totalorder %s26, 1
    %p259 = por %p257, %p258
    %p261 = scmp.ne.s32.totalorder %s246, %s260
    %p262 = scmp.eq.s32.totalorder %s26, 0
    %p263 = por %p261, %p262
    %s265 = sadd.s32 %s264, 1
    %p268 = scmp.eq.s32.totalorder %s20, 1
    %p269 = scmp.ne.s32.totalorder %s264, %s266
    %p270 = scmp.eq.s32.totalorder %s20, 0
    %p271 = por %p269, %p270
    %p272 = scmp.ne.s32.totalorder %s264, %s266
    %p273 = scmp.eq.s32.totalorder %s25, 1
    %p274 = por %p272, %p273
    %p275 = scmp.ne.s32.totalorder %s266, %s267
    %p276 = scmp.eq.s32.totalorder %s25, 0
    %p277 = por %p275, %p276
    %p278 = scmp.ne.s32.totalorder %s266, %s267
    %p279 = scmp.eq.s32.totalorder %s26, 1
    %p280 = por %p278, %p279
    %p282 = scmp.ne.s32.totalorder %s267, %s281
    %p283 = scmp.eq.s32.totalorder %s26, 0
    %p284 = por %p282, %p283
    %s285 = ssub.s32 %s20, %s27
    %p286 = scmp.eq.s32.totalorder %s285, 0
    %s288 = sadd.s32 %s287, 1
    %s289 = scalar_select %p286, %s287, %s288
    %p292 = pneg %p286
    %p293 = scmp.eq.s32.totalorder %s20, 1
    %p294 = por %p292, %p293
    %p295 = scmp.ne.s32.totalorder %s287, %s290
    %p296 = scmp.eq.s32.totalorder %s20, 0
    %p297 = por %p295, %p296
    %p298 = scmp.ne.s32.totalorder %s287, %s290
    %p299 = scmp.eq.s32.totalorder %s25, 1
    %p300 = por %p298, %p299
    %p301 = scmp.ne.s32.totalorder %s290, %s291
    %p302 = scmp.eq.s32.totalorder %s25, 0
    %p303 = por %p301, %p302
    %p304 = scmp.ne.s32.totalorder %s290, %s291
    %p305 = scmp.eq.s32.totalorder %s26, 1
    %p306 = por %p304, %p305
    %p308 = scmp.ne.s32.totalorder %s291, %s307
    %p309 = scmp.eq.s32.totalorder %s26, 0
    %p310 = por %p308, %p309
    %s311 = ssub.s32 %s20, %s27
    %p312 = scmp.eq.s32.totalorder %s311, 0
    %s314 = sadd.s32 %s313, 1
    %s315 = scalar_select %p312, %s313, %s314
    %p318 = pneg %p312
    %p319 = scmp.eq.s32.totalorder %s20, 1
    %p320 = por %p318, %p319
    %p321 = scmp.ne.s32.totalorder %s313, %s316
    %p322 = scmp.eq.s32.totalorder %s20, 0
    %p323 = por %p321, %p322
    %p324 = scmp.ne.s32.totalorder %s313, %s316
    %p325 = scmp.eq.s32.totalorder %s25, 1
    %p326 = por %p324, %p325
    %p327 = scmp.ne.s32.totalorder %s316, %s317
    %p328 = scmp.eq.s32.totalorder %s25, 0
    %p329 = por %p327, %p328
    %p330 = scmp.ne.s32.totalorder %s316, %s317
    %p331 = scmp.eq.s32.totalorder %s26, 1
    %p332 = por %p330, %p331
    %p334 = scmp.ne.s32.totalorder %s317, %s333
    %p335 = scmp.eq.s32.totalorder %s26, 0
    %p336 = por %p334, %p335
    %p337 = scmp.le.s32.totalorder 1, %s20
    %p338 = scmp.lt.s32.totalorder %s20, 3
    %p339 = pnand %p337, %p338
    %p340 = pneg %p339
    // Predicated region
    $region9: #{evagan_big_forward.4} parent=5 // pred_check
      _
    $region10: #{evagan_big_forward.4} parent=5 // pred_check_branch
      %342 = sbr.rel (%p339) target = $region12
    $region11: #{evagan_big_forward.4} parent=5 // pred_region
      %s343 = ssub.s32 %s20, 1
      // Predicated region
      $region13: #{evagan_big_forward.4} parent=11 // pred_check
        %p344 = pneg %p67
      $region14: #{evagan_big_forward.4} parent=11 // pred_check_branch
        %346 = sbr.rel (%p344) target = $region16
      $region15: #{evagan_big_forward.4} parent=11 // pred_region
        _
      $region16: #{evagan_big_forward.4} parent=11 // pred_fallthru
        _
      // Predicated region
      $region17: #{evagan_big_forward.4} parent=11 // pred_check
        %p347 = pneg %p88
      $region18: #{evagan_big_forward.4} parent=11 // pred_check_branch
        %349 = sbr.rel (%p347) target = $region20
      $region19: #{evagan_big_forward.4} parent=11 // pred_region
        _
      $region20: #{evagan_big_forward.4} parent=11 // pred_fallthru
        _
      // Predicated region
      $region21: #{evagan_big_forward.4} parent=11 // pred_check
        %p350 = pneg %p109
      $region22: #{evagan_big_forward.4} parent=11 // pred_check_branch
        %352 = sbr.rel (%p350) target = $region24
      $region23: #{evagan_big_forward.4} parent=11 // pred_region
        _
      $region24: #{evagan_big_forward.4} parent=11 // pred_fallthru
        _
      // Predicated region
      $region25: #{evagan_big_forward.4} parent=11 // pred_check
        %p353 = pneg %p130
      $region26: #{evagan_big_forward.4} parent=11 // pred_check_branch
        %355 = sbr.rel (%p353) target = $region28
      $region27: #{evagan_big_forward.4} parent=11 // pred_region
        _
      $region28: #{evagan_big_forward.4} parent=11 // pred_fallthru
        _
      // Predicated region
      $region29: #{evagan_big_forward.4} parent=11 // pred_check
        %p356 = pneg %p151
      $region30: #{evagan_big_forward.4} parent=11 // pred_check_branch
        %358 = sbr.rel (%p356) target = $region32
      $region31: #{evagan_big_forward.4} parent=11 // pred_region
        _
      $region32: #{evagan_big_forward.4} parent=11 // pred_fallthru
        _
      // Predicated region
      $region33: #{evagan_big_forward.4} parent=11 // pred_check
        %p359 = pneg %p172
      $region34: #{evagan_big_forward.4} parent=11 // pred_check_branch
        %361 = sbr.rel (%p359) target = $region36
      $region35: #{evagan_big_forward.4} parent=11 // pred_region
        _
      $region36: #{evagan_big_forward.4} parent=11 // pred_fallthru
        _
      // Predicated region
      $region37: #{evagan_big_forward.4} parent=11 // pred_check
        %p362 = pneg %p193
      $region38: #{evagan_big_forward.4} parent=11 // pred_check_branch
        %364 = sbr.rel (%p362) target = $region40
      $region39: #{evagan_big_forward.4} parent=11 // pred_region
        _
      $region40: #{evagan_big_forward.4} parent=11 // pred_fallthru
        _
      // Predicated region
      $region41: #{evagan_big_forward.4} parent=11 // pred_check
        %p365 = pneg %p214
      $region42: #{evagan_big_forward.4} parent=11 // pred_check_branch
        %367 = sbr.rel (%p365) target = $region44
      $region43: #{evagan_big_forward.4} parent=11 // pred_region
        _
      $region44: #{evagan_big_forward.4} parent=11 // pred_fallthru
        _
      // Predicated region
      $region45: #{evagan_big_forward.4} parent=11 // pred_check
        %p368 = pneg %p235
      $region46: #{evagan_big_forward.4} parent=11 // pred_check_branch
        %370 = sbr.rel (%p368) target = $region48
      $region47: #{evagan_big_forward.4} parent=11 // pred_region
        _
      $region48: #{evagan_big_forward.4} parent=11 // pred_fallthru
        _
      // Predicated region
      $region49: #{evagan_big_forward.4} parent=11 // pred_check
        %p371 = pneg %p256
      $region50: #{evagan_big_forward.4} parent=11 // pred_check_branch
        %373 = sbr.rel (%p371) target = $region52
      $region51: #{evagan_big_forward.4} parent=11 // pred_region
        _
      $region52: #{evagan_big_forward.4} parent=11 // pred_fallthru
        _
      // Predicated region
      $region53: #{evagan_big_forward.4} parent=11 // pred_check
        %p374 = pneg %p277
      $region54: #{evagan_big_forward.4} parent=11 // pred_check_branch
        %376 = sbr.rel (%p374) target = $region56
      $region55: #{evagan_big_forward.4} parent=11 // pred_region
        _
      $region56: #{evagan_big_forward.4} parent=11 // pred_fallthru
        _
    $region12: #{evagan_big_forward.4} parent=5 // pred_fallthru
      _
    %p377 = scmp.lt.s32.totalorder %s20, 2
    // Predicated region
    $region57: #{evagan_big_forward.4} parent=5 // pred_check
      %p378 = pneg %p377
    $region58: #{evagan_big_forward.4} parent=5 // pred_check_branch
      %380 = sbr.rel (%p378) target = $region60
    $region59: #{evagan_big_forward.4} parent=5 // pred_region
      // Predicated region
      $region61: #{evagan_big_forward.4} parent=59 // pred_check
        %p381 = pneg %p40
      $region62: #{evagan_big_forward.4} parent=59 // pred_check_branch
        %383 = sbr.rel (%p381) target = $region64
      $region63: #{evagan_big_forward.4} parent=59 // pred_region
        %p384 = scmp.lt.s32.totalorder %s20, 1
        %s385 = scalar_select %p384, %s20, 1
        %s386 = smul.addr %s385, 2
        %s387 = smul.addr %s386, 4
        %s388 = scalar_lea.vmem %s0, %s387
      $region64: #{evagan_big_forward.4} parent=59 // pred_fallthru
        _
    $region60: #{evagan_big_forward.4} parent=5 // pred_fallthru
      _
    %p389 = scmp.le.s32.totalorder 1, %s20
    %p390 = scmp.lt.s32.totalorder %s20, 3
    %p391 = pnand %p389, %p390
    %p392 = pneg %p391
    // Predicated region
    $region65: #{evagan_big_forward.4} parent=5 // pred_check
      _
    $region66: #{evagan_big_forward.4} parent=5 // pred_check_branch
      %394 = sbr.rel (%p391) target = $region68
    $region67: #{evagan_big_forward.4} parent=5 // pred_region
      %s395 = ssub.s32 %s20, 1
      %p396 = scmp.lt.s32.totalorder %s25, 1
      %s397 = scalar_select %p396, %s25, 1
      %s398 = smul.addr %s397, 2
      %s399 = smul.addr %s398, 4
      %s400 = scalar_lea.vmem %s0, %s399
      %p401 = pneg %p46
      %p402 = pneg %p43
      %p403 = pneg %p67
      %p404 = pneg %p64
      %p405 = pneg %p88
      %p406 = pneg %p85
      %p407 = pneg %p109
      %p408 = pneg %p106
      %p409 = pneg %p130
      %p410 = pneg %p127
      %p411 = pneg %p151
      %p412 = pneg %p148
      %p413 = pneg %p172
      %p414 = pneg %p169
      %p415 = pneg %p193
      %p416 = pneg %p190
      %p417 = pneg %p214
      %p418 = pneg %p211
      %p419 = pneg %p235
      %p420 = pneg %p232
      %p421 = pneg %p256
      %p422 = pneg %p253
      %p423 = pneg %p277
      %p424 = pneg %p274
      %p425 = pneg %p303
      %p426 = pneg %p300
      %p427 = scmp.lt.s32.totalorder %s25, 1
      %s428 = scalar_select %p427, %s25, 1
      %s429 = smul.addr %s428, 4
      %s430 = scalar_lea.vmem %s12, %s429
      %p431 = pneg %p329
      %p432 = pneg %p326
      %p433 = scmp.lt.s32.totalorder %s25, 1
      %s434 = scalar_select %p433, %s25, 1
      %s435 = smul.addr %s434, 4
      %s436 = scalar_lea.vmem %s13, %s435
      %p437 = scmp.lt.s32.totalorder %s25, 1
      %s438 = scalar_select %p437, %s25, 1
      %s439 = smul.addr %s438, 2
      %s440 = smul.addr %s439, 4
      %s441 = scalar_lea.vmem %s0, %s440
      %p442 = scmp.lt.s32.totalorder %s25, 1
      %s443 = scalar_select %p442, %s25, 1
      %s444 = smul.addr %s443, 4
      %s445 = scalar_lea.vmem %s12, %s444
      %p446 = scmp.lt.s32.totalorder %s25, 1
      %s447 = scalar_select %p446, %s25, 1
      %s448 = smul.addr %s447, 4
      %s449 = scalar_lea.vmem %s13, %s448
      %v451 = vld [vmem:[%s441] sm:$0xf]
      %v452 = vld [vmem:[%s441 + $0x4] sm:$0xf]
      %v453 = vunpack.c.l.bf16 %v451
      %v454 = vunpack.c.l.bf16 %v452
      %vm455 = vcmp.gt.f32.partialorder %v453, 0.0
      %vm456 = vcmp.gt.f32.partialorder %v454, 0.0
      %v457 = vmul.f32 %v453, 0.1
      %v458 = vmul.f32 %v454, 0.1
      %v459 = vsel %vm455, %v453, %v457
      %v460 = vsel %vm456, %v454, %v458
      %463 = vrot.lane.b32.xlu0 %v459, 1
      %v464 = vpop.permute.xlu0 %463
      %465 = vrot.lane.b32.xlu0 %v460, 1
      %v466 = vpop.permute.xlu0 %465
      %vm469 = vcmask 7168
      %v470 = vsel %vm469, 0.0, %v464
      %v471 = vsel %vm469, 0.0, %v466
      %vm472 = vcmask 138240
      %v473 = vsel %vm472, %v470, 0.0
      %v474 = vsel %vm472, %v471, 0.0
      %477 = vrot.lane.b32.xlu0 %v473, 127
      %v478 = vpop.permute.xlu0 %477
      %479 = vrot.lane.b32.xlu0 %v474, 127
      %v480 = vpop.permute.xlu0 %479
      %483 = vrot.lane.b32.xlu0 %v473, 126
      %v484 = vpop.permute.xlu0 %483
      %485 = vrot.lane.b32.xlu0 %v474, 126
      %v486 = vpop.permute.xlu0 %485
      %v489 = vpack.c.bf16 %v474, %v473
      %v490 = vpack.c.bf16 %v480, %v478
      %v491 = vpack.c.bf16 %v486, %v484
      %v492 = vld [vmem:[%s1] sm:$0xf]
      %v493 = vld [vmem:[%s1 + $0x4] sm:$0xf]
      %v494 = vld [vmem:[%s2] sm:$0xff]
      %v495 = vld [vmem:[%s2 + $0x8] sm:$0xff]
      %497 = vset.pattern.permute.xlu0 0
      %498 = vperm.xlu0 %497, %v494
      %v499 = vpop.permute.xlu0 %498
      %502 = vset.pattern.permute.xlu0 0
      %503 = vperm.xlu0 %502, %v495
      %v504 = vpop.permute.xlu0 %503
      %v508 = vunpack.c.l.b16 %v492
      %v509 = vunpack.c.l.b16 %v493
      %v510 = vpack.c.b16 %v509, %v508
      %vm511 = vcmask 392192
      %v513 = vsel %vm511, %v510, 0
      %515 = vmatpush.bf16.msra.mxu0 0
      %516 = vmatpush.bf16.msra.mxu0 0
      %517 = vmatpush.bf16.msra.mxu0 0
      %518 = vmatpush.bf16.msra.mxu0 0
      %519 = vmatpush.bf16.msra.mxu0 0
      %520 = vmatpush.bf16.msra.mxu0 %v491
      %521 = vmatpush.bf16.msra.mxu0 %v490
      %522 = vmatpush.bf16.msra.mxu0 %v489
      %523 = vmatmul.bf16.gmra.mxu0 %v513
      %v524 = vpop.f32.mrf.mxu0
      %v525 = vadd.f32 %v499, %v524
      %v526 = vpop.f32.mrf.mxu0
      %v527 = vadd.f32 %v504, %v526
      %528 = vdwg.mxu0
      %v529 = vadd.f32 %v453, %v525
      %v530 = vadd.f32 %v454, %v527
      %vm531 = vcmp.gt.f32.partialorder %v529, 0.0
      %vm532 = vcmp.gt.f32.partialorder %v530, 0.0
      %v533 = vmul.f32 %v529, 0.1
      %v534 = vmul.f32 %v530, 0.1
      %v535 = vsel %vm531, %v529, %v533
      %v536 = vsel %vm532, %v530, %v534
      %539 = vrot.lane.b32.xlu0 %v535, 3
      %v540 = vpop.permute.xlu0 %539
      %541 = vrot.lane.b32.xlu0 %v536, 3
      %v542 = vpop.permute.xlu0 %541
      %vm545 = vcmask 23552
      %v546 = vsel %vm545, 0.0, %v540
      %v547 = vsel %vm545, 0.0, %v542
      %vm548 = vcmask 154624
      %v549 = vsel %vm548, %v546, 0.0
      %v550 = vsel %vm548, %v547, 0.0
      %553 = vrot.lane.b32.xlu0 %v549, 125
      %v554 = vpop.permute.xlu0 %553
      %555 = vrot.lane.b32.xlu0 %v550, 125
      %v556 = vpop.permute.xlu0 %555
      %559 = vrot.lane.b32.xlu0 %v549, 122
      %v560 = vpop.permute.xlu0 %559
      %561 = vrot.lane.b32.xlu0 %v550, 122
      %v562 = vpop.permute.xlu0 %561
      %v565 = vpack.c.bf16 %v550, %v549
      %v566 = vpack.c.bf16 %v556, %v554
      %v567 = vpack.c.bf16 %v562, %v560
      %v568 = vld [vmem:[%s3] sm:$0xf]
      %v569 = vld [vmem:[%s3 + $0x4] sm:$0xf]
      %v570 = vld [vmem:[%s4] sm:$0xff]
      %v571 = vld [vmem:[%s4 + $0x8] sm:$0xff]
      %573 = vset.pattern.permute.xlu0 0
      %574 = vperm.xlu0 %573, %v570
      %v575 = vpop.permute.xlu0 %574
      %578 = vset.pattern.permute.xlu0 0
      %579 = vperm.xlu0 %578, %v571
      %v580 = vpop.permute.xlu0 %579
      %v584 = vunpack.c.l.b16 %v568
      %v585 = vunpack.c.l.b16 %v569
      %v586 = vpack.c.b16 %v585, %v584
      %v588 = vsel %vm511, %v586, 0
      %590 = vmatpush.bf16.msra.mxu0 0
      %591 = vmatpush.bf16.msra.mxu0 0
      %592 = vmatpush.bf16.msra.mxu0 0
      %593 = vmatpush.bf16.msra.mxu0 0
      %594 = vmatpush.bf16.msra.mxu0 0
      %595 = vmatpush.bf16.msra.mxu0 %v567
      %596 = vmatpush.bf16.msra.mxu0 %v566
      %597 = vmatpush.bf16.msra.mxu0 %v565
      %598 = vmatmul.bf16.gmra.mxu0 %v588
      %v599 = vpop.f32.mrf.mxu0
      %v600 = vadd.f32 %v575, %v599
      %v601 = vpop.f32.mrf.mxu0
      %v602 = vadd.f32 %v580, %v601
      %603 = vdwg.mxu0
      %v604 = vadd.f32 %v529, %v600
      %v605 = vadd.f32 %v530, %v602
      %606 = vrot.lane.b32.xlu0 %v459, 2
      %v607 = vpop.permute.xlu0 %606
      %608 = vrot.lane.b32.xlu0 %v460, 2
      %v609 = vpop.permute.xlu0 %608
      %vm612 = vcmask 15360
      %v613 = vsel %vm612, 0.0, %v607
      %v614 = vsel %vm612, 0.0, %v609
      %vm615 = vcmask 146432
      %v616 = vsel %vm615, %v613, 0.0
      %v617 = vsel %vm615, %v614, 0.0
      %620 = vrot.lane.b32.xlu0 %v616, 127
      %v621 = vpop.permute.xlu0 %620
      %622 = vrot.lane.b32.xlu0 %v617, 127
      %v623 = vpop.permute.xlu0 %622
      %626 = vrot.lane.b32.xlu0 %v616, 126
      %v627 = vpop.permute.xlu0 %626
      %628 = vrot.lane.b32.xlu0 %v617, 126
      %v629 = vpop.permute.xlu0 %628
      %632 = vrot.lane.b32.xlu0 %v616, 125
      %v633 = vpop.permute.xlu0 %632
      %634 = vrot.lane.b32.xlu0 %v617, 125
      %v635 = vpop.permute.xlu0 %634
      %638 = vrot.lane.b32.xlu0 %v616, 124
      %v639 = vpop.permute.xlu0 %638
      %640 = vrot.lane.b32.xlu0 %v617, 124
      %v641 = vpop.permute.xlu0 %640
      %v644 = vpack.c.bf16 %v617, %v616
      %v645 = vpack.c.bf16 %v623, %v621
      %v646 = vpack.c.bf16 %v629, %v627
      %v647 = vpack.c.bf16 %v635, %v633
      %v648 = vpack.c.bf16 %v641, %v639
      %v649 = vld [vmem:[%s5] sm:$0xf]
      %v650 = vld [vmem:[%s5 + $0x4] sm:$0xf]
      %v651 = vld [vmem:[%s6] sm:$0xff]
      %v652 = vld [vmem:[%s6 + $0x8] sm:$0xff]
      %654 = vset.pattern.permute.xlu0 0
      %655 = vperm.xlu0 %654, %v651
      %v656 = vpop.permute.xlu0 %655
      %659 = vset.pattern.permute.xlu0 0
      %660 = vperm.xlu0 %659, %v652
      %v661 = vpop.permute.xlu0 %660
      %v665 = vunpack.c.l.b16 %v649
      %v666 = vunpack.c.l.b16 %v650
      %v667 = vpack.c.b16 %v666, %v665
      %vm668 = vcmask 654336
      %v670 = vsel %vm668, %v667, 0
      %672 = vmatpush.bf16.msra.mxu0 0
      %673 = vmatpush.bf16.msra.mxu0 0
      %674 = vmatpush.bf16.msra.mxu0 0
      %675 = vmatpush.bf16.msra.mxu0 %v648
      %676 = vmatpush.bf16.msra.mxu0 %v647
      %677 = vmatpush.bf16.msra.mxu0 %v646
      %678 = vmatpush.bf16.msra.mxu0 %v645
      %679 = vmatpush.bf16.msra.mxu0 %v644
      %680 = vmatmul.bf16.gmra.mxu0 %v670
      %v681 = vpop.f32.mrf.mxu0
      %v682 = vadd.f32 %v656, %v681
      %v683 = vpop.f32.mrf.mxu0
      %v684 = vadd.f32 %v661, %v683
      %685 = vdwg.mxu0
      %v686 = vadd.f32 %v453, %v682
      %v687 = vadd.f32 %v454, %v684
      %vm688 = vcmp.gt.f32.partialorder %v686, 0.0
      %vm689 = vcmp.gt.f32.partialorder %v687, 0.0
      %v690 = vmul.f32 %v686, 0.1
      %v691 = vmul.f32 %v687, 0.1
      %v692 = vsel %vm688, %v686, %v690
      %v693 = vsel %vm689, %v687, %v691
      %696 = vrot.lane.b32.xlu0 %v692, 6
      %v697 = vpop.permute.xlu0 %696
      %698 = vrot.lane.b32.xlu0 %v693, 6
      %v699 = vpop.permute.xlu0 %698
      %vm702 = vcmask 48128
      %v703 = vsel %vm702, 0.0, %v697
      %v704 = vsel %vm702, 0.0, %v699
      %vm705 = vcmask 179200
      %v706 = vsel %vm705, %v703, 0.0
      %v707 = vsel %vm705, %v704, 0.0
      %710 = vrot.lane.b32.xlu0 %v706, 125
      %v711 = vpop.permute.xlu0 %710
      %712 = vrot.lane.b32.xlu0 %v707, 125
      %v713 = vpop.permute.xlu0 %712
      %716 = vrot.lane.b32.xlu0 %v706, 122
      %v717 = vpop.permute.xlu0 %716
      %718 = vrot.lane.b32.xlu0 %v707, 122
      %v719 = vpop.permute.xlu0 %718
      %722 = vrot.lane.b32.xlu0 %v706, 119
      %v723 = vpop.permute.xlu0 %722
      %724 = vrot.lane.b32.xlu0 %v707, 119
      %v725 = vpop.permute.xlu0 %724
      %728 = vrot.lane.b32.xlu0 %v706, 116
      %v729 = vpop.permute.xlu0 %728
      %730 = vrot.lane.b32.xlu0 %v707, 116
      %v731 = vpop.permute.xlu0 %730
      %v734 = vpack.c.bf16 %v707, %v706
      %v735 = vpack.c.bf16 %v713, %v711
      %v736 = vpack.c.bf16 %v719, %v717
      %v737 = vpack.c.bf16 %v725, %v723
      %v738 = vpack.c.bf16 %v731, %v729
      %v739 = vld [vmem:[%s7] sm:$0xf]
      %v740 = vld [vmem:[%s7 + $0x4] sm:$0xf]
      %v741 = vld [vmem:[%s8] sm:$0xff]
      %v742 = vld [vmem:[%s8 + $0x8] sm:$0xff]
      %744 = vset.pattern.permute.xlu0 0
      %745 = vperm.xlu0 %744, %v741
      %v746 = vpop.permute.xlu0 %745
      %749 = vset.pattern.permute.xlu0 0
      %750 = vperm.xlu0 %749, %v742
      %v751 = vpop.permute.xlu0 %750
      %v755 = vunpack.c.l.b16 %v739
      %v756 = vunpack.c.l.b16 %v740
      %v757 = vpack.c.b16 %v756, %v755
      %v759 = vsel %vm668, %v757, 0
      %761 = vmatpush.bf16.msra.mxu0 0
      %762 = vmatpush.bf16.msra.mxu0 0
      %763 = vmatpush.bf16.msra.mxu0 0
      %764 = vmatpush.bf16.msra.mxu0 %v738
      %765 = vmatpush.bf16.msra.mxu0 %v737
      %766 = vmatpush.bf16.msra.mxu0 %v736
      %767 = vmatpush.bf16.msra.mxu0 %v735
      %768 = vmatpush.bf16.msra.mxu0 %v734
      %769 = vmatmul.bf16.gmra.mxu0 %v759
      %v770 = vpop.f32.mrf.mxu0
      %v771 = vadd.f32 %v746, %v770
      %v772 = vpop.f32.mrf.mxu0
      %v773 = vadd.f32 %v751, %v772
      %774 = vdwg.mxu0
      %v775 = vadd.f32 %v686, %v771
      %v776 = vadd.f32 %v687, %v773
      %v777 = vadd.f32 %v604, %v775
      %v778 = vadd.f32 %v605, %v776
      %v779 = vmul.f32 %v777, 0.5
      %v780 = vmul.f32 %v778, 0.5
      %vm781 = vcmp.gt.f32.partialorder %v779, 0.0
      %vm782 = vcmp.gt.f32.partialorder %v780, 0.0
      %v783 = vmul.f32 %v779, 0.1
      %v784 = vmul.f32 %v780, 0.1
      %v785 = vsel %vm781, %v779, %v783
      %v786 = vsel %vm782, %v780, %v784
      %789 = vrot.lane.b32.xlu0 %v785, 1
      %v790 = vpop.permute.xlu0 %789
      %791 = vrot.lane.b32.xlu0 %v786, 1
      %v792 = vpop.permute.xlu0 %791
      %v795 = vsel %vm469, 0.0, %v790
      %v796 = vsel %vm469, 0.0, %v792
      %v797 = vsel %vm472, %v795, 0.0
      %v798 = vsel %vm472, %v796, 0.0
      %801 = vrot.lane.b32.xlu0 %v797, 127
      %v802 = vpop.permute.xlu0 %801
      %803 = vrot.lane.b32.xlu0 %v798, 127
      %v804 = vpop.permute.xlu0 %803
      %v807 = vpack.c.bf16 %v798, %v797
      %v808 = vpack.c.bf16 %v804, %v802
      %v809 = vld [vmem:[%s9] sm:$0xf]
      %v810 = vld [vmem:[%s11] sm:$0xff]
      %812 = vset.pattern.permute.xlu0 0
      %813 = vperm.xlu0 %812, %v810
      %v814 = vpop.permute.xlu0 %813
      %vm816 = vcmask 261120
      %v818 = vsel %vm816, %v809, 0
      %820 = vmatpush.bf16.msra.mxu0 0
      %821 = vmatpush.bf16.msra.mxu0 0
      %822 = vmatpush.bf16.msra.mxu0 0
      %823 = vmatpush.bf16.msra.mxu0 0
      %824 = vmatpush.bf16.msra.mxu0 0
      %825 = vmatpush.bf16.msra.mxu0 0
      %826 = vmatpush.bf16.msra.mxu0 %v808
      %827 = vmatpush.bf16.msra.mxu0 %v807
      %828 = vmatmul.bf16.gmra.mxu0 %v818
      %v829 = vpop.f32.mrf.mxu0
      %v830 = vadd.f32 %v814, %v829
      %v831 = vpop.f32.mrf.mxu0
      %832 = vdwg.mxu0
      %v833 = vld [vmem:[%s10] sm:$0xf]
      %836 = vrot.lane.b32.xlu0 %v807, 127
      %v837 = vpop.permute.xlu0 %836
      %838 = vrot.lane.b32.xlu0 %v808, 127
      %v839 = vpop.permute.xlu0 %838
      %v843 = vsel %vm816, %v833, 0
      %845 = vmatpush.bf16.msra.mxu0 0
      %846 = vmatpush.bf16.msra.mxu0 0
      %847 = vmatpush.bf16.msra.mxu0 0
      %848 = vmatpush.bf16.msra.mxu0 0
      %849 = vmatpush.bf16.msra.mxu0 0
      %850 = vmatpush.bf16.msra.mxu0 0
      %851 = vmatpush.bf16.msra.mxu0 %v839
      %852 = vmatpush.bf16.msra.mxu0 %v837
      %853 = vmatmul.bf16.gmra.mxu0 %v843
      %v854 = vpop.f32.mrf.mxu0
      %v855 = vadd.f32 %v814, %v854
      %v856 = vpop.f32.mrf.mxu0
      %857 = vdwg.mxu0
      %v858 = vpack.c.bf16 %v830, %v830
      %vm859 = vcmask 125952
      %860 = vst.msk [vmem:[%s445] sm:$0xf] %vm859, %v858
      %v861 = vpack.c.bf16 %v855, %v855
      %862 = vst.msk [vmem:[%s449] sm:$0xf] %vm859, %v861
      %p863 = scmp.lt.s32.totalorder %s25, 1
      %s864 = scalar_select %p863, %s25, 1
      %s865 = smul.addr %s864, 4
      %s866 = scalar_lea.vmem %s12, %s865
      %p867 = scmp.lt.s32.totalorder %s25, 1
      %s868 = scalar_select %p867, %s25, 1
      %s869 = smul.addr %s868, 4
      %s870 = scalar_lea.vmem %s13, %s869
      // Predicated region
      $region69: #{evagan_big_forward.4} parent=67 // pred_check
        %p871 = pneg %p300
      $region70: #{evagan_big_forward.4} parent=67 // pred_check_branch
        %873 = sbr.rel (%p871) target = $region72
      $region71: #{evagan_big_forward.4} parent=67 // pred_region
        _
      $region72: #{evagan_big_forward.4} parent=67 // pred_fallthru
        _
      // Predicated region
      $region73: #{evagan_big_forward.4} parent=67 // pred_check
        %p874 = pneg %p326
      $region74: #{evagan_big_forward.4} parent=67 // pred_check_branch
        %876 = sbr.rel (%p874) target = $region76
      $region75: #{evagan_big_forward.4} parent=67 // pred_region
        _
      $region76: #{evagan_big_forward.4} parent=67 // pred_fallthru
        _
    $region68: #{evagan_big_forward.4} parent=5 // pred_fallthru
      _
    %p877 = scmp.le.s32.totalorder 2, %s20
    // Predicated region
    $region77: #{evagan_big_forward.4} parent=5 // pred_check
      %p878 = pneg %p877
    $region78: #{evagan_big_forward.4} parent=5 // pred_check_branch
      %880 = sbr.rel (%p878) target = $region80
    $region79: #{evagan_big_forward.4} parent=5 // pred_region
      %s881 = ssub.s32 %s20, 2
      // Predicated region
      $region81: #{evagan_big_forward.4} parent=79 // pred_check
        %p882 = pneg %p306
      $region82: #{evagan_big_forward.4} parent=79 // pred_check_branch
        %884 = sbr.rel (%p882) target = $region84
      $region83: #{evagan_big_forward.4} parent=79 // pred_region
        %p885 = scmp.lt.s32.totalorder %s26, 1
        %s886 = scalar_select %p885, %s26, 1
        %s887 = smul.addr %s886, 4
        %s888 = scalar_lea.vmem %s12, %s887
      $region84: #{evagan_big_forward.4} parent=79 // pred_fallthru
        _
      // Predicated region
      $region85: #{evagan_big_forward.4} parent=79 // pred_check
        %p889 = pneg %p332
      $region86: #{evagan_big_forward.4} parent=79 // pred_check_branch
        %891 = sbr.rel (%p889) target = $region88
      $region87: #{evagan_big_forward.4} parent=79 // pred_region
        %p892 = scmp.lt.s32.totalorder %s26, 1
        %s893 = scalar_select %p892, %s26, 1
        %s894 = smul.addr %s893, 4
        %s895 = scalar_lea.vmem %s13, %s894
      $region88: #{evagan_big_forward.4} parent=79 // pred_fallthru
        _
    $region80: #{evagan_big_forward.4} parent=5 // pred_fallthru
      _
  $region6: #{evagan_big_forward.4} parent=0 // loop_footer
    %s24 = sadd.s32 1, %s20
  $region7: #{evagan_big_forward.4} parent=0 // loop_footer_branch
    %19 = sbr.rel target = $region3
  $region8: #{evagan_big_forward.4} parent=0 // loop_exit
    _

</llo_original>
